<compile_context>
chip_gen: v5e
topology: v5e:2x2
jax: 0.10.0
libtpu: 0.0.40
codegen_flags: <defaults>
</compile_context>

<pallas_src>
import functools

import jax
import jax.numpy as jnp
from jax import lax
from jax.experimental import pallas as pl
from jax.experimental.pallas import tpu as pltpu

LANES = 128  # pad the batch onto the full vreg lane width


# ----------------------------------------------------------------------------
# Fused kernel: all BiLSTM layers + classifier, everything VMEM resident.
# ----------------------------------------------------------------------------
def _seq_classifier_kernel(*refs, num_layers, L, H, N, Bp, n_pairs, unroll):
    # ref order:
    #   inputs : x, (w_in_0, w_h_0, b_0), ..., (w_in_{nl-1}, w_h_{nl-1}, b_{nl-1}),
    #            w_cls, b_cls
    #   outputs: out
    #   scratch: n_pairs * (seq_fwd, seq_bwd)
    it = iter(refs)
    x_ref = next(it)                                         # (L, E, Bp)
    layer_refs = [(next(it), next(it), next(it)) for _ in range(num_layers)]
    w_cls_ref = next(it)                                     # (L, N, 2H)
    b_cls_ref = next(it)                                     # (N, 1)
    out_ref = next(it)                                       # (N, Bp)
    seq_pairs = [(next(it), next(it)) for _ in range(n_pairs)]  # (L, H, Bp) each

    H2 = 2 * H   # concatenated [h_fwd ; h_bwd] rows
    G6 = 6 * H   # sigmoid gate rows: [i_f,i_b, f_f,f_b, o_f,o_b]

    def run_layer(in_parts, w_in_ref, w_h_ref, b_ref, out_pair, accumulate):
        # in_parts(t) -> list of (rows, Bp) blocks forming the time-t input.
        def step(t, carry):
            rt = L - 1 - t
            if accumulate:
                h, c, acc = carry
            else:
                h, c = carry

            # Input projection: independent of h, can be scheduled ahead of the
            # recurrent chain (fwd direction consumes time t, bwd time L-1-t).
            in_cat = jnp.concatenate(in_parts(t) + in_parts(rt), axis=0)
            u = (jnp.dot(w_in_ref[...], in_cat,
                         preferred_element_type=jnp.float32) + b_ref[...])
            # Recurrent projection: the actual per-step dependency chain.
            g = u + jnp.dot(w_h_ref[...], h, preferred_element_type=jnp.float32)

            # Packed gate rows: [i_f,i_b, f_f,f_b, o_f,o_b, g_f,g_b] (H rows each)
            sig = jax.nn.sigmoid(g[:G6, :])      # one wide EUP push (6H x Bp)
            g_gate = jnp.tanh(g[G6:, :])         # one wide EUP push (2H x Bp)
            i_gate = sig[:H2, :]
            f_gate = sig[H2:2 * H2, :]
            o_gate = sig[2 * H2:, :]
            c = f_gate * c + i_gate * g_gate                  # (2H, Bp)
            h = o_gate * jnp.tanh(c)             # rows [h_fwd(t) ; h_bwd(L-1-t)]

            if accumulate:
                # Fused classifier contraction (off the recurrent chain).
                acc = acc + jnp.dot(w_cls_ref[t], h,
                                    preferred_element_type=jnp.float32)
                return h, c, acc
            fwd_ref, bwd_ref = out_pair
            fwd_ref[t] = h[:H, :]
            bwd_ref[rt] = h[H:, :]
            return h, c

        def block(tb, carry):
            for k in range(unroll):              # manual 4x unroll
                carry = step(tb * unroll + k, carry)
            return carry

        h0 = jnp.zeros((H2, Bp), jnp.float32)
        c0 = jnp.zeros((H2, Bp), jnp.float32)
        if accumulate:
            acc0 = jnp.zeros((N, Bp), jnp.float32)
            _, _, acc = lax.fori_loop(0, L // unroll, block, (h0, c0, acc0))
            return acc
        lax.fori_loop(0, L // unroll, block, (h0, c0))
        return None

    in_parts = lambda t: [x_ref[t]]
    acc = None
    for layer in range(num_layers):
        w_in_ref, w_h_ref, b_ref = layer_refs[layer]
        is_last = layer == num_layers - 1
        out_pair = None if is_last else seq_pairs[layer % n_pairs]
        res = run_layer(in_parts, w_in_ref, w_h_ref, b_ref, out_pair, is_last)
        if is_last:
            acc = res
        else:
            f_ref, b2_ref = out_pair
            in_parts = (lambda fr, br: (lambda t: [fr[t], br[t]]))(f_ref, b2_ref)

    out_ref[...] = acc + b_cls_ref[...]


# ----------------------------------------------------------------------------
# Weight packing (torch layout -> fused lane-dense kernel layout)
# ----------------------------------------------------------------------------
def _gate_block(a, g, H):
    # torch gate order along rows: i=0, f=1, g=2, o=3
    return a[g * H:(g + 1) * H]


def _pack_bilstm_layer(p_fwd, p_bwd, *, H, d_in):
    """One bidirectional layer -> (w_in, w_h, b) with packed gate rows.

    Packed row order (H rows each): [i_f,i_b, f_f,f_b, o_f,o_b, g_f,g_b].
    w_in: (8H, 2*d_in) acting on [input(t) ; input(L-1-t)]
    w_h : (8H, 2H)     acting on [h_fwd ; h_bwd]   (block diagonal)
    b   : (8H, 1)      b_ih + b_hh
    """
    z_in = jnp.zeros((H, d_in), jnp.float32)
    z_h = jnp.zeros((H, H), jnp.float32)
    b_f = p_fwd["b_ih"] + p_fwd["b_hh"]
    b_b = p_bwd["b_ih"] + p_bwd["b_hh"]
    w_in_rows, w_h_rows, b_rows = [], [], []
    for g in (0, 1, 3, 2):  # i, f, o, then g (tanh block last)
        w_in_rows.append(jnp.concatenate([_gate_block(p_fwd["w_ih"], g, H), z_in], axis=1))
        w_h_rows.append(jnp.concatenate([_gate_block(p_fwd["w_hh"], g, H), z_h], axis=1))
        b_rows.append(_gate_block(b_f, g, H))
        w_in_rows.append(jnp.concatenate([z_in, _gate_block(p_bwd["w_ih"], g, H)], axis=1))
        w_h_rows.append(jnp.concatenate([z_h, _gate_block(p_bwd["w_hh"], g, H)], axis=1))
        b_rows.append(_gate_block(b_b, g, H))
    w_in = jnp.concatenate(w_in_rows, axis=0)
    w_h = jnp.concatenate(w_h_rows, axis=0)
    b = jnp.concatenate(b_rows, axis=0).reshape(8 * H, 1)
    return w_in, w_h, b


def _pack_classifier(w, b, *, L, H, N):
    # torch Linear weight w: (N, L*2H); input features are time-major, [fwd|bwd].
    w3 = w.reshape(N, L, 2 * H)
    w_fwd = jnp.transpose(w3[:, :, :H], (1, 0, 2))      # (L, N, H) for h_fwd(t)
    w_bwd = jnp.transpose(w3[:, ::-1, H:], (1, 0, 2))   # (L, N, H) for h_bwd(L-1-t)
    w_cls = jnp.concatenate([w_fwd, w_bwd], axis=2)     # (L, N, 2H)
    return w_cls, b.reshape(N, 1)


# ----------------------------------------------------------------------------
# Parameter init (deterministic, synthetic, torch layout) and forward
# ----------------------------------------------------------------------------
def make_params(key, vocab, emb_dim, hidden, num_layers, bidirectional, num_class):
    num_dir = 2 if bidirectional else 1
    ks = iter(jax.random.split(key, 1 + num_layers * num_dir * 4 + 2))
    params = {"embeddings": jax.random.normal(next(ks), (vocab, emb_dim), jnp.float32) * 0.1}
    scale = hidden ** -0.5
    lstm = {}
    for layer in range(num_layers):
        in_dim = emb_dim if layer == 0 else num_dir * hidden
        for d in range(num_dir):
            lstm[(layer, d)] = {
                "w_ih": jax.random.uniform(next(ks), (4 * hidden, in_dim), jnp.float32, -scale, scale),
                "w_hh": jax.random.uniform(next(ks), (4 * hidden, hidden), jnp.float32, -scale, scale),
                "b_ih": jax.random.uniform(next(ks), (4 * hidden,), jnp.float32, -scale, scale),
                "b_hh": jax.random.uniform(next(ks), (4 * hidden,), jnp.float32, -scale, scale),
            }
    params["lstm"] = lstm
    cls_in = hidden * 256
    cs = cls_in ** -0.5
    params["cls_w"] = jax.random.uniform(next(ks), (num_class, cls_in), jnp.float32, -cs, cs)
    params["cls_b"] = jax.random.uniform(next(ks), (num_class,), jnp.float32, -cs, cs)
    return params


def seq_classifier_forward(params, batch_ids, *, num_layers, bidirectional,
                           hidden_size, num_class):
    # TODO(synk): unidirectional variant not implemented (module then needs L=256).
    if not bidirectional:
        raise NotImplementedError("fused kernel assumes bidirectional=True")
    B, L = batch_ids.shape
    H = hidden_size
    E = params["embeddings"].shape[1]
    N = num_class
    Bp = LANES
    assert B <= Bp
    assert params["cls_w"].shape[1] == L * 2 * H

    unroll = 4 if L % 4 == 0 else (2 if L % 2 == 0 else 1)

    # Embedding gather on time-major, batch-padded indices (small XLA glue only).
    ids_tm = jnp.pad(jnp.transpose(batch_ids), ((0, 0), (0, Bp - B)))          # (L, Bp)
    emb = jnp.take(params["embeddings"].astype(jnp.float32), ids_tm, axis=0)   # (L, Bp, E)
    x = jnp.transpose(emb, (0, 2, 1))                                          # (L, E, Bp)

    # Pack weights into the fused lane-dense layout.
    layer_ops = []
    for layer in range(num_layers):
        d_in = E if layer == 0 else 2 * H
        w_in, w_h, b = _pack_bilstm_layer(params["lstm"][(layer, 0)],
                                          params["lstm"][(layer, 1)],
                                          H=H, d_in=d_in)
        layer_ops += [w_in, w_h, b]
    w_cls, b_cls = _pack_classifier(params["cls_w"], params["cls_b"], L=L, H=H, N=N)

    # Ping-pong layer-output scratch (only needed between consecutive layers).
    n_pairs = 0 if num_layers == 1 else min(num_layers - 1, 2)
    scratch_shapes = []
    for _ in range(n_pairs):
        scratch_shapes += [pltpu.VMEM((L, H, Bp), jnp.float32),
                           pltpu.VMEM((L, H, Bp), jnp.float32)]

    kernel = functools.partial(_seq_classifier_kernel, num_layers=num_layers,
                               L=L, H=H, N=N, Bp=Bp, n_pairs=n_pairs, unroll=unroll)
    operands = [x] + layer_ops + [w_cls, b_cls]
    vmem = functools.partial(pl.BlockSpec, memory_space=pltpu.MemorySpace.VMEM)
    out = pl.pallas_call(
        kernel,
        out_shape=jax.ShapeDtypeStruct((N, Bp), jnp.float32),
        in_specs=[vmem() for _ in operands],
        out_specs=vmem(),
        scratch_shapes=scratch_shapes,
        compiler_params=pltpu.CompilerParams(vmem_limit_bytes=32 * 1024 * 1024),
    )(*operands)

    # Back to batch-first; module hard-codes batch = 100 via x.reshape(100, -1).
    # nn.Dropout before the Linear is identity in eval mode; LogSoftmax is
    # defined in __init__ but never applied in forward().
    # TODO(synk): training-mode dropout mask (torch RNG) not reproduced; eval semantics used.
    return jnp.transpose(out)[:B]


if __name__ == "__main__":
    VOCAB, EMB_DIM, HIDDEN = 64, 16, 16
    NUM_LAYERS, DROPOUT, BIDIR, NUM_CLASS = 2, 0.1, True, 8
    B, L = 100, 128  # forced by x.reshape(100, -1) and Linear(hidden*256, num_class)

    key = jax.random.PRNGKey(0)
    k_param, k_data = jax.random.split(key)
    params = make_params(k_param, VOCAB, EMB_DIM, HIDDEN, NUM_LAYERS, BIDIR, NUM_CLASS)
    batch = jax.random.randint(k_data, (B, L), 0, VOCAB, dtype=jnp.int32)

    fwd = jax.jit(functools.partial(seq_classifier_forward,
                                    num_layers=NUM_LAYERS, bidirectional=BIDIR,
                                    hidden_size=HIDDEN, num_class=NUM_CLASS))
    out = fwd(params, batch)
    out = jax.block_until_ready(out)
    assert out.shape == (100, NUM_CLASS), out.shape
    assert bool(jnp.all(jnp.isfinite(out)))
    print("KERNEL_OK")
</pallas_src>

<mosaic_0001>
module attributes {stable_mosaic.version = 11 : i64} {
  func.func @_seq_classifier_kernel(%arg0: memref<128x16x128xf32, #tpu.memory_space<vmem>>, %arg1: memref<128x32xf32, #tpu.memory_space<vmem>>, %arg2: memref<128x32xf32, #tpu.memory_space<vmem>>, %arg3: memref<128x1xf32, #tpu.memory_space<vmem>>, %arg4: memref<128x64xf32, #tpu.memory_space<vmem>>, %arg5: memref<128x32xf32, #tpu.memory_space<vmem>>, %arg6: memref<128x1xf32, #tpu.memory_space<vmem>>, %arg7: memref<128x8x32xf32, #tpu.memory_space<vmem>>, %arg8: memref<8x1xf32, #tpu.memory_space<vmem>>, %arg9: memref<8x128xf32, #tpu.memory_space<vmem>>, %arg10: memref<128x16x128xf32, #tpu.memory_space<vmem>>, %arg11: memref<128x16x128xf32, #tpu.memory_space<vmem>>) attributes {dimension_semantics = [], scalar_prefetch = 0 : i64, scratch_operands = 2 : i64, tpu.core_type = #tpu.core_type<tc>} {
    %cst = arith.constant 0.000000e+00 : f32
    %0 = vector.broadcast %cst : f32 to vector<32x128xf32>
    %cst_0 = arith.constant 0.000000e+00 : f32
    %1 = vector.broadcast %cst_0 : f32 to vector<32x128xf32>
    %c0_i32 = arith.constant 0 : i32
    %c32_i32 = arith.constant 32 : i32
    %2 = arith.addi %c0_i32, %c32_i32 : i32
    %c1_i32 = arith.constant 1 : i32
    %3:2 = scf.for %arg12 = %c0_i32 to %2 step %c1_i32 iter_args(%arg13 = %0, %arg14 = %1) -> (vector<32x128xf32>, vector<32x128xf32>)  : i32 {
      %c4_i32 = arith.constant 4 : i32
      %13 = arith.muli %arg12, %c4_i32 : i32
      %c0_i32_12 = arith.constant 0 : i32
      %14 = arith.addi %13, %c0_i32_12 : i32
      %c127_i32 = arith.constant 127 : i32
      %15 = arith.subi %c127_i32, %14 : i32
      %16 = arith.index_cast %14 : i32 to index
      %c0_13 = arith.constant 0 : index
      %c0_14 = arith.constant 0 : index
      %17 = vector.load %arg0[%16, %c0_13, %c0_14] : memref<128x16x128xf32, #tpu.memory_space<vmem>>, vector<1x16x128xf32>
      %18 = vector.shape_cast %17 : vector<1x16x128xf32> to vector<16x128xf32>
      %19 = arith.index_cast %15 : i32 to index
      %c0_15 = arith.constant 0 : index
      %c0_16 = arith.constant 0 : index
      %20 = vector.load %arg0[%19, %c0_15, %c0_16] : memref<128x16x128xf32, #tpu.memory_space<vmem>>, vector<1x16x128xf32>
      %21 = vector.shape_cast %20 : vector<1x16x128xf32> to vector<16x128xf32>
      %22 = tpu.concatenate %18, %21 in 0 : vector<16x128xf32>, vector<16x128xf32> -> vector<32x128xf32>
      %c0_17 = arith.constant 0 : index
      %c0_18 = arith.constant 0 : index
      %23 = vector.load %arg1[%c0_17, %c0_18] : memref<128x32xf32, #tpu.memory_space<vmem>>, vector<128x32xf32>
      %cst_19 = arith.constant dense<0.000000e+00> : vector<128x128xf32>
      %24 = tpu.matmul %23, %22, %cst_19 {dimension_numbers = #tpu.dot_dimension_numbers<[1], [0], [0], [1], [0, 0, 1, 1], [], []>} : vector<128x32xf32>, vector<32x128xf32>, vector<128x128xf32> -> vector<128x128xf32>
      %c0_20 = arith.constant 0 : index
      %c0_21 = arith.constant 0 : index
      %25 = vector.load %arg3[%c0_20, %c0_21] : memref<128x1xf32, #tpu.memory_space<vmem>>, vector<128x1xf32>
      %26 = vector.broadcast %25 : vector<128x1xf32> to vector<128x128xf32>
      %27 = arith.addf %24, %26 : vector<128x128xf32>
      %c0_22 = arith.constant 0 : index
      %c0_23 = arith.constant 0 : index
      %28 = vector.load %arg2[%c0_22, %c0_23] : memref<128x32xf32, #tpu.memory_space<vmem>>, vector<128x32xf32>
      %cst_24 = arith.constant dense<0.000000e+00> : vector<128x128xf32>
      %29 = tpu.matmul %28, %arg13, %cst_24 {dimension_numbers = #tpu.dot_dimension_numbers<[1], [0], [0], [1], [0, 0, 1, 1], [], []>} : vector<128x32xf32>, vector<32x128xf32>, vector<128x128xf32> -> vector<128x128xf32>
      %30 = arith.addf %27, %29 : vector<128x128xf32>
      %31 = vector.extract_strided_slice %30 {offsets = [0, 0], sizes = [96, 128], strides = [1, 1]} : vector<128x128xf32> to vector<96x128xf32>
      %32 = arith.negf %31 : vector<96x128xf32>
      %33 = math.exp %32 : vector<96x128xf32>
      %cst_25 = arith.constant 1.000000e+00 : f32
      %34 = vector.broadcast %cst_25 : f32 to vector<96x128xf32>
      %35 = arith.addf %34, %33 : vector<96x128xf32>
      %36 = arith.divf %34, %35 : vector<96x128xf32>
      %37 = vector.extract_strided_slice %30 {offsets = [96, 0], sizes = [32, 128], strides = [1, 1]} : vector<128x128xf32> to vector<32x128xf32>
      %38 = math.tanh %37 : vector<32x128xf32>
      %39 = vector.extract_strided_slice %36 {offsets = [0, 0], sizes = [32, 128], strides = [1, 1]} : vector<96x128xf32> to vector<32x128xf32>
      %40 = vector.extract_strided_slice %36 {offsets = [32, 0], sizes = [32, 128], strides = [1, 1]} : vector<96x128xf32> to vector<32x128xf32>
      %41 = vector.extract_strided_slice %36 {offsets = [64, 0], sizes = [32, 128], strides = [1, 1]} : vector<96x128xf32> to vector<32x128xf32>
      %42 = arith.mulf %40, %arg14 : vector<32x128xf32>
      %43 = arith.mulf %39, %38 : vector<32x128xf32>
      %44 = arith.addf %42, %43 : vector<32x128xf32>
      %45 = math.tanh %44 : vector<32x128xf32>
      %46 = arith.mulf %41, %45 : vector<32x128xf32>
      %47 = vector.extract_strided_slice %46 {offsets = [0, 0], sizes = [16, 128], strides = [1, 1]} : vector<32x128xf32> to vector<16x128xf32>
      %48 = arith.index_cast %14 : i32 to index
      %c0_26 = arith.constant 0 : index
      %c0_27 = arith.constant 0 : index
      %49 = vector.load %arg10[%48, %c0_26, %c0_27] : memref<128x16x128xf32, #tpu.memory_space<vmem>>, vector<1x16x128xf32>
      %50 = vector.shape_cast %49 : vector<1x16x128xf32> to vector<16x128xf32>
      %51 = vector.shape_cast %47 : vector<16x128xf32> to vector<1x16x128xf32>
      tpu.vector_store %arg10[%48, %c0_26, %c0_27], %51 {strides = array<i32>} : memref<128x16x128xf32, #tpu.memory_space<vmem>>, vector<1x16x128xf32>,
      %52 = vector.extract_strided_slice %46 {offsets = [16, 0], sizes = [16, 128], strides = [1, 1]} : vector<32x128xf32> to vector<16x128xf32>
      %53 = arith.index_cast %15 : i32 to index
      %c0_28 = arith.constant 0 : index
      %c0_29 = arith.constant 0 : index
      %54 = vector.load %arg11[%53, %c0_28, %c0_29] : memref<128x16x128xf32, #tpu.memory_space<vmem>>, vector<1x16x128xf32>
      %55 = vector.shape_cast %54 : vector<1x16x128xf32> to vector<16x128xf32>
      %56 = vector.shape_cast %52 : vector<16x128xf32> to vector<1x16x128xf32>
      tpu.vector_store %arg11[%53, %c0_28, %c0_29], %56 {strides = array<i32>} : memref<128x16x128xf32, #tpu.memory_space<vmem>>, vector<1x16x128xf32>,
      %c4_i32_30 = arith.constant 4 : i32
      %57 = arith.muli %arg12, %c4_i32_30 : i32
      %c1_i32_31 = arith.constant 1 : i32
      %58 = arith.addi %57, %c1_i32_31 : i32
      %c127_i32_32 = arith.constant 127 : i32
      %59 = arith.subi %c127_i32_32, %58 : i32
      %60 = arith.index_cast %58 : i32 to index
      %c0_33 = arith.constant 0 : index
      %c0_34 = arith.constant 0 : index
      %61 = vector.load %arg0[%60, %c0_33, %c0_34] : memref<128x16x128xf32, #tpu.memory_space<vmem>>, vector<1x16x128xf32>
      %62 = vector.shape_cast %61 : vector<1x16x128xf32> to vector<16x128xf32>
      %63 = arith.index_cast %59 : i32 to index
      %c0_35 = arith.constant 0 : index
      %c0_36 = arith.constant 0 : index
      %64 = vector.load %arg0[%63, %c0_35, %c0_36] : memref<128x16x128xf32, #tpu.memory_space<vmem>>, vector<1x16x128xf32>
      %65 = vector.shape_cast %64 : vector<1x16x128xf32> to vector<16x128xf32>
      %66 = tpu.concatenate %62, %65 in 0 : vector<16x128xf32>, vector<16x128xf32> -> vector<32x128xf32>
      %c0_37 = arith.constant 0 : index
      %c0_38 = arith.constant 0 : index
      %67 = vector.load %arg1[%c0_37, %c0_38] : memref<128x32xf32, #tpu.memory_space<vmem>>, vector<128x32xf32>
      %cst_39 = arith.constant dense<0.000000e+00> : vector<128x128xf32>
      %68 = tpu.matmul %67, %66, %cst_39 {dimension_numbers = #tpu.dot_dimension_numbers<[1], [0], [0], [1], [0, 0, 1, 1], [], []>} : vector<128x32xf32>, vector<32x128xf32>, vector<128x128xf32> -> vector<128x128xf32>
      %c0_40 = arith.constant 0 : index
      %c0_41 = arith.constant 0 : index
      %69 = vector.load %arg3[%c0_40, %c0_41] : memref<128x1xf32, #tpu.memory_space<vmem>>, vector<128x1xf32>
      %70 = vector.broadcast %69 : vector<128x1xf32> to vector<128x128xf32>
      %71 = arith.addf %68, %70 : vector<128x128xf32>
      %c0_42 = arith.constant 0 : index
      %c0_43 = arith.constant 0 : index
      %72 = vector.load %arg2[%c0_42, %c0_43] : memref<128x32xf32, #tpu.memory_space<vmem>>, vector<128x32xf32>
      %cst_44 = arith.constant dense<0.000000e+00> : vector<128x128xf32>
      %73 = tpu.matmul %72, %46, %cst_44 {dimension_numbers = #tpu.dot_dimension_numbers<[1], [0], [0], [1], [0, 0, 1, 1], [], []>} : vector<128x32xf32>, vector<32x128xf32>, vector<128x128xf32> -> vector<128x128xf32>
      %74 = arith.addf %71, %73 : vector<128x128xf32>
      %75 = vector.extract_strided_slice %74 {offsets = [0, 0], sizes = [96, 128], strides = [1, 1]} : vector<128x128xf32> to vector<96x128xf32>
      %76 = arith.negf %75 : vector<96x128xf32>
      %77 = math.exp %76 : vector<96x128xf32>
      %cst_45 = arith.constant 1.000000e+00 : f32
      %78 = vector.broadcast %cst_45 : f32 to vector<96x128xf32>
      %79 = arith.addf %78, %77 : vector<96x128xf32>
      %80 = arith.divf %78, %79 : vector<96x128xf32>
      %81 = vector.extract_strided_slice %74 {offsets = [96, 0], sizes = [32, 128], strides = [1, 1]} : vector<128x128xf32> to vector<32x128xf32>
      %82 = math.tanh %81 : vector<32x128xf32>
      %83 = vector.extract_strided_slice %80 {offsets = [0, 0], sizes = [32, 128], strides = [1, 1]} : vector<96x128xf32> to vector<32x128xf32>
      %84 = vector.extract_strided_slice %80 {offsets = [32, 0], sizes = [32, 128], strides = [1, 1]} : vector<96x128xf32> to vector<32x128xf32>
      %85 = vector.extract_strided_slice %80 {offsets = [64, 0], sizes = [32, 128], strides = [1, 1]} : vector<96x128xf32> to vector<32x128xf32>
      %86 = arith.mulf %84, %44 : vector<32x128xf32>
      %87 = arith.mulf %83, %82 : vector<32x128xf32>
      %88 = arith.addf %86, %87 : vector<32x128xf32>
      %89 = math.tanh %88 : vector<32x128xf32>
      %90 = arith.mulf %85, %89 : vector<32x128xf32>
      %91 = vector.extract_strided_slice %90 {offsets = [0, 0], sizes = [16, 128], strides = [1, 1]} : vector<32x128xf32> to vector<16x128xf32>
      %92 = arith.index_cast %58 : i32 to index
      %c0_46 = arith.constant 0 : index
      %c0_47 = arith.constant 0 : index
      %93 = vector.load %arg10[%92, %c0_46, %c0_47] : memref<128x16x128xf32, #tpu.memory_space<vmem>>, vector<1x16x128xf32>
      %94 = vector.shape_cast %93 : vector<1x16x128xf32> to vector<16x128xf32>
      %95 = vector.shape_cast %91 : vector<16x128xf32> to vector<1x16x128xf32>
      tpu.vector_store %arg10[%92, %c0_46, %c0_47], %95 {strides = array<i32>} : memref<128x16x128xf32, #tpu.memory_space<vmem>>, vector<1x16x128xf32>,
      %96 = vector.extract_strided_slice %90 {offsets = [16, 0], sizes = [16, 128], strides = [1, 1]} : vector<32x128xf32> to vector<16x128xf32>
      %97 = arith.index_cast %59 : i32 to index
      %c0_48 = arith.constant 0 : index
      %c0_49 = arith.constant 0 : index
      %98 = vector.load %arg11[%97, %c0_48, %c0_49] : memref<128x16x128xf32, #tpu.memory_space<vmem>>, vector<1x16x128xf32>
      %99 = vector.shape_cast %98 : vector<1x16x128xf32> to vector<16x128xf32>
      %100 = vector.shape_cast %96 : vector<16x128xf32> to vector<1x16x128xf32>
      tpu.vector_store %arg11[%97, %c0_48, %c0_49], %100 {strides = array<i32>} : memref<128x16x128xf32, #tpu.memory_space<vmem>>, vector<1x16x128xf32>,
      %c4_i32_50 = arith.constant 4 : i32
      %101 = arith.muli %arg12, %c4_i32_50 : i32
      %c2_i32 = arith.constant 2 : i32
      %102 = arith.addi %101, %c2_i32 : i32
      %c127_i32_51 = arith.constant 127 : i32
      %103 = arith.subi %c127_i32_51, %102 : i32
      %104 = arith.index_cast %102 : i32 to index
      %c0_52 = arith.constant 0 : index
      %c0_53 = arith.constant 0 : index
      %105 = vector.load %arg0[%104, %c0_52, %c0_53] : memref<128x16x128xf32, #tpu.memory_space<vmem>>, vector<1x16x128xf32>
      %106 = vector.shape_cast %105 : vector<1x16x128xf32> to vector<16x128xf32>
      %107 = arith.index_cast %103 : i32 to index
      %c0_54 = arith.constant 0 : index
      %c0_55 = arith.constant 0 : index
      %108 = vector.load %arg0[%107, %c0_54, %c0_55] : memref<128x16x128xf32, #tpu.memory_space<vmem>>, vector<1x16x128xf32>
      %109 = vector.shape_cast %108 : vector<1x16x128xf32> to vector<16x128xf32>
      %110 = tpu.concatenate %106, %109 in 0 : vector<16x128xf32>, vector<16x128xf32> -> vector<32x128xf32>
      %c0_56 = arith.constant 0 : index
      %c0_57 = arith.constant 0 : index
      %111 = vector.load %arg1[%c0_56, %c0_57] : memref<128x32xf32, #tpu.memory_space<vmem>>, vector<128x32xf32>
      %cst_58 = arith.constant dense<0.000000e+00> : vector<128x128xf32>
      %112 = tpu.matmul %111, %110, %cst_58 {dimension_numbers = #tpu.dot_dimension_numbers<[1], [0], [0], [1], [0, 0, 1, 1], [], []>} : vector<128x32xf32>, vector<32x128xf32>, vector<128x128xf32> -> vector<128x128xf32>
      %c0_59 = arith.constant 0 : index
      %c0_60 = arith.constant 0 : index
      %113 = vector.load %arg3[%c0_59, %c0_60] : memref<128x1xf32, #tpu.memory_space<vmem>>, vector<128x1xf32>
      %114 = vector.broadcast %113 : vector<128x1xf32> to vector<128x128xf32>
      %115 = arith.addf %112, %114 : vector<128x128xf32>
      %c0_61 = arith.constant 0 : index
      %c0_62 = arith.constant 0 : index
      %116 = vector.load %arg2[%c0_61, %c0_62] : memref<128x32xf32, #tpu.memory_space<vmem>>, vector<128x32xf32>
      %cst_63 = arith.constant dense<0.000000e+00> : vector<128x128xf32>
      %117 = tpu.matmul %116, %90, %cst_63 {dimension_numbers = #tpu.dot_dimension_numbers<[1], [0], [0], [1], [0, 0, 1, 1], [], []>} : vector<128x32xf32>, vector<32x128xf32>, vector<128x128xf32> -> vector<128x128xf32>
      %118 = arith.addf %115, %117 : vector<128x128xf32>
      %119 = vector.extract_strided_slice %118 {offsets = [0, 0], sizes = [96, 128], strides = [1, 1]} : vector<128x128xf32> to vector<96x128xf32>
      %120 = arith.negf %119 : vector<96x128xf32>
      %121 = math.exp %120 : vector<96x128xf32>
      %cst_64 = arith.constant 1.000000e+00 : f32
      %122 = vector.broadcast %cst_64 : f32 to vector<96x128xf32>
      %123 = arith.addf %122, %121 : vector<96x128xf32>
      %124 = arith.divf %122, %123 : vector<96x128xf32>
      %125 = vector.extract_strided_slice %118 {offsets = [96, 0], sizes = [32, 128], strides = [1, 1]} : vector<128x128xf32> to vector<32x128xf32>
      %126 = math.tanh %125 : vector<32x128xf32>
      %127 = vector.extract_strided_slice %124 {offsets = [0, 0], sizes = [32, 128], strides = [1, 1]} : vector<96x128xf32> to vector<32x128xf32>
      %128 = vector.extract_strided_slice %124 {offsets = [32, 0], sizes = [32, 128], strides = [1, 1]} : vector<96x128xf32> to vector<32x128xf32>
      %129 = vector.extract_strided_slice %124 {offsets = [64, 0], sizes = [32, 128], strides = [1, 1]} : vector<96x128xf32> to vector<32x128xf32>
      %130 = arith.mulf %128, %88 : vector<32x128xf32>
      %131 = arith.mulf %127, %126 : vector<32x128xf32>
      %132 = arith.addf %130, %131 : vector<32x128xf32>
      %133 = math.tanh %132 : vector<32x128xf32>
      %134 = arith.mulf %129, %133 : vector<32x128xf32>
      %135 = vector.extract_strided_slice %134 {offsets = [0, 0], sizes = [16, 128], strides = [1, 1]} : vector<32x128xf32> to vector<16x128xf32>
      %136 = arith.index_cast %102 : i32 to index
      %c0_65 = arith.constant 0 : index
      %c0_66 = arith.constant 0 : index
      %137 = vector.load %arg10[%136, %c0_65, %c0_66] : memref<128x16x128xf32, #tpu.memory_space<vmem>>, vector<1x16x128xf32>
      %138 = vector.shape_cast %137 : vector<1x16x128xf32> to vector<16x128xf32>
      %139 = vector.shape_cast %135 : vector<16x128xf32> to vector<1x16x128xf32>
      tpu.vector_store %arg10[%136, %c0_65, %c0_66], %139 {strides = array<i32>} : memref<128x16x128xf32, #tpu.memory_space<vmem>>, vector<1x16x128xf32>,
      %140 = vector.extract_strided_slice %134 {offsets = [16, 0], sizes = [16, 128], strides = [1, 1]} : vector<32x128xf32> to vector<16x128xf32>
      %141 = arith.index_cast %103 : i32 to index
      %c0_67 = arith.constant 0 : index
      %c0_68 = arith.constant 0 : index
      %142 = vector.load %arg11[%141, %c0_67, %c0_68] : memref<128x16x128xf32, #tpu.memory_space<vmem>>, vector<1x16x128xf32>
      %143 = vector.shape_cast %142 : vector<1x16x128xf32> to vector<16x128xf32>
      %144 = vector.shape_cast %140 : vector<16x128xf32> to vector<1x16x128xf32>
      tpu.vector_store %arg11[%141, %c0_67, %c0_68], %144 {strides = array<i32>} : memref<128x16x128xf32, #tpu.memory_space<vmem>>, vector<1x16x128xf32>,
      %c4_i32_69 = arith.constant 4 : i32
      %145 = arith.muli %arg12, %c4_i32_69 : i32
      %c3_i32 = arith.constant 3 : i32
      %146 = arith.addi %145, %c3_i32 : i32
      %c127_i32_70 = arith.constant 127 : i32
      %147 = arith.subi %c127_i32_70, %146 : i32
      %148 = arith.index_cast %146 : i32 to index
      %c0_71 = arith.constant 0 : index
      %c0_72 = arith.constant 0 : index
      %149 = vector.load %arg0[%148, %c0_71, %c0_72] : memref<128x16x128xf32, #tpu.memory_space<vmem>>, vector<1x16x128xf32>
      %150 = vector.shape_cast %149 : vector<1x16x128xf32> to vector<16x128xf32>
      %151 = arith.index_cast %147 : i32 to index
      %c0_73 = arith.constant 0 : index
      %c0_74 = arith.constant 0 : index
      %152 = vector.load %arg0[%151, %c0_73, %c0_74] : memref<128x16x128xf32, #tpu.memory_space<vmem>>, vector<1x16x128xf32>
      %153 = vector.shape_cast %152 : vector<1x16x128xf32> to vector<16x128xf32>
      %154 = tpu.concatenate %150, %153 in 0 : vector<16x128xf32>, vector<16x128xf32> -> vector<32x128xf32>
      %c0_75 = arith.constant 0 : index
      %c0_76 = arith.constant 0 : index
      %155 = vector.load %arg1[%c0_75, %c0_76] : memref<128x32xf32, #tpu.memory_space<vmem>>, vector<128x32xf32>
      %cst_77 = arith.constant dense<0.000000e+00> : vector<128x128xf32>
      %156 = tpu.matmul %155, %154, %cst_77 {dimension_numbers = #tpu.dot_dimension_numbers<[1], [0], [0], [1], [0, 0, 1, 1], [], []>} : vector<128x32xf32>, vector<32x128xf32>, vector<128x128xf32> -> vector<128x128xf32>
      %c0_78 = arith.constant 0 : index
      %c0_79 = arith.constant 0 : index
      %157 = vector.load %arg3[%c0_78, %c0_79] : memref<128x1xf32, #tpu.memory_space<vmem>>, vector<128x1xf32>
      %158 = vector.broadcast %157 : vector<128x1xf32> to vector<128x128xf32>
      %159 = arith.addf %156, %158 : vector<128x128xf32>
      %c0_80 = arith.constant 0 : index
      %c0_81 = arith.constant 0 : index
      %160 = vector.load %arg2[%c0_80, %c0_81] : memref<128x32xf32, #tpu.memory_space<vmem>>, vector<128x32xf32>
      %cst_82 = arith.constant dense<0.000000e+00> : vector<128x128xf32>
      %161 = tpu.matmul %160, %134, %cst_82 {dimension_numbers = #tpu.dot_dimension_numbers<[1], [0], [0], [1], [0, 0, 1, 1], [], []>} : vector<128x32xf32>, vector<32x128xf32>, vector<128x128xf32> -> vector<128x128xf32>
      %162 = arith.addf %159, %161 : vector<128x128xf32>
      %163 = vector.extract_strided_slice %162 {offsets = [0, 0], sizes = [96, 128], strides = [1, 1]} : vector<128x128xf32> to vector<96x128xf32>
      %164 = arith.negf %163 : vector<96x128xf32>
      %165 = math.exp %164 : vector<96x128xf32>
      %cst_83 = arith.constant 1.000000e+00 : f32
      %166 = vector.broadcast %cst_83 : f32 to vector<96x128xf32>
      %167 = arith.addf %166, %165 : vector<96x128xf32>
      %168 = arith.divf %166, %167 : vector<96x128xf32>
      %169 = vector.extract_strided_slice %162 {offsets = [96, 0], sizes = [32, 128], strides = [1, 1]} : vector<128x128xf32> to vector<32x128xf32>
      %170 = math.tanh %169 : vector<32x128xf32>
      %171 = vector.extract_strided_slice %168 {offsets = [0, 0], sizes = [32, 128], strides = [1, 1]} : vector<96x128xf32> to vector<32x128xf32>
      %172 = vector.extract_strided_slice %168 {offsets = [32, 0], sizes = [32, 128], strides = [1, 1]} : vector<96x128xf32> to vector<32x128xf32>
      %173 = vector.extract_strided_slice %168 {offsets = [64, 0], sizes = [32, 128], strides = [1, 1]} : vector<96x128xf32> to vector<32x128xf32>
      %174 = arith.mulf %172, %132 : vector<32x128xf32>
      %175 = arith.mulf %171, %170 : vector<32x128xf32>
      %176 = arith.addf %174, %175 : vector<32x128xf32>
      %177 = math.tanh %176 : vector<32x128xf32>
      %178 = arith.mulf %173, %177 : vector<32x128xf32>
      %179 = vector.extract_strided_slice %178 {offsets = [0, 0], sizes = [16, 128], strides = [1, 1]} : vector<32x128xf32> to vector<16x128xf32>
      %180 = arith.index_cast %146 : i32 to index
      %c0_84 = arith.constant 0 : index
      %c0_85 = arith.constant 0 : index
      %181 = vector.load %arg10[%180, %c0_84, %c0_85] : memref<128x16x128xf32, #tpu.memory_space<vmem>>, vector<1x16x128xf32>
      %182 = vector.shape_cast %181 : vector<1x16x128xf32> to vector<16x128xf32>
      %183 = vector.shape_cast %179 : vector<16x128xf32> to vector<1x16x128xf32>
      tpu.vector_store %arg10[%180, %c0_84, %c0_85], %183 {strides = array<i32>} : memref<128x16x128xf32, #tpu.memory_space<vmem>>, vector<1x16x128xf32>,
      %184 = vector.extract_strided_slice %178 {offsets = [16, 0], sizes = [16, 128], strides = [1, 1]} : vector<32x128xf32> to vector<16x128xf32>
      %185 = arith.index_cast %147 : i32 to index
      %c0_86 = arith.constant 0 : index
      %c0_87 = arith.constant 0 : index
      %186 = vector.load %arg11[%185, %c0_86, %c0_87] : memref<128x16x128xf32, #tpu.memory_space<vmem>>, vector<1x16x128xf32>
      %187 = vector.shape_cast %186 : vector<1x16x128xf32> to vector<16x128xf32>
      %188 = vector.shape_cast %184 : vector<16x128xf32> to vector<1x16x128xf32>
      tpu.vector_store %arg11[%185, %c0_86, %c0_87], %188 {strides = array<i32>} : memref<128x16x128xf32, #tpu.memory_space<vmem>>, vector<1x16x128xf32>,
      scf.yield %178, %176 : vector<32x128xf32>, vector<32x128xf32>
    }
    %c32_i32_1 = arith.constant 32 : i32
    %cst_2 = arith.constant 0.000000e+00 : f32
    %4 = vector.broadcast %cst_2 : f32 to vector<32x128xf32>
    %cst_3 = arith.constant 0.000000e+00 : f32
    %5 = vector.broadcast %cst_3 : f32 to vector<32x128xf32>
    %cst_4 = arith.constant 0.000000e+00 : f32
    %6 = vector.broadcast %cst_4 : f32 to vector<8x128xf32>
    %c0_i32_5 = arith.constant 0 : i32
    %c32_i32_6 = arith.constant 32 : i32
    %7 = arith.addi %c0_i32_5, %c32_i32_6 : i32
    %c1_i32_7 = arith.constant 1 : i32
    %8:3 = scf.for %arg12 = %c0_i32_5 to %7 step %c1_i32_7 iter_args(%arg13 = %4, %arg14 = %5, %arg15 = %6) -> (vector<32x128xf32>, vector<32x128xf32>, vector<8x128xf32>)  : i32 {
      %c4_i32 = arith.constant 4 : i32
      %13 = arith.muli %arg12, %c4_i32 : i32
      %c0_i32_12 = arith.constant 0 : i32
      %14 = arith.addi %13, %c0_i32_12 : i32
      %c127_i32 = arith.constant 127 : i32
      %15 = arith.subi %c127_i32, %14 : i32
      %16 = arith.index_cast %14 : i32 to index
      %c0_13 = arith.constant 0 : index
      %c0_14 = arith.constant 0 : index
      %17 = vector.load %arg10[%16, %c0_13, %c0_14] : memref<128x16x128xf32, #tpu.memory_space<vmem>>, vector<1x16x128xf32>
      %18 = vector.shape_cast %17 : vector<1x16x128xf32> to vector<16x128xf32>
      %19 = arith.index_cast %14 : i32 to index
      %c0_15 = arith.constant 0 : index
      %c0_16 = arith.constant 0 : index
      %20 = vector.load %arg11[%19, %c0_15, %c0_16] : memref<128x16x128xf32, #tpu.memory_space<vmem>>, vector<1x16x128xf32>
      %21 = vector.shape_cast %20 : vector<1x16x128xf32> to vector<16x128xf32>
      %22 = arith.index_cast %15 : i32 to index
      %c0_17 = arith.constant 0 : index
      %c0_18 = arith.constant 0 : index
      %23 = vector.load %arg10[%22, %c0_17, %c0_18] : memref<128x16x128xf32, #tpu.memory_space<vmem>>, vector<1x16x128xf32>
      %24 = vector.shape_cast %23 : vector<1x16x128xf32> to vector<16x128xf32>
      %25 = arith.index_cast %15 : i32 to index
      %c0_19 = arith.constant 0 : index
      %c0_20 = arith.constant 0 : index
      %26 = vector.load %arg11[%25, %c0_19, %c0_20] : memref<128x16x128xf32, #tpu.memory_space<vmem>>, vector<1x16x128xf32>
      %27 = vector.shape_cast %26 : vector<1x16x128xf32> to vector<16x128xf32>
      %28 = tpu.concatenate %18, %21, %24, %27 in 0 : vector<16x128xf32>, vector<16x128xf32>, vector<16x128xf32>, vector<16x128xf32> -> vector<64x128xf32>
      %c0_21 = arith.constant 0 : index
      %c0_22 = arith.constant 0 : index
      %29 = vector.load %arg4[%c0_21, %c0_22] : memref<128x64xf32, #tpu.memory_space<vmem>>, vector<128x64xf32>
      %cst_23 = arith.constant dense<0.000000e+00> : vector<128x128xf32>
      %30 = tpu.matmul %29, %28, %cst_23 {dimension_numbers = #tpu.dot_dimension_numbers<[1], [0], [0], [1], [0, 0, 1, 1], [], []>} : vector<128x64xf32>, vector<64x128xf32>, vector<128x128xf32> -> vector<128x128xf32>
      %c0_24 = arith.constant 0 : index
      %c0_25 = arith.constant 0 : index
      %31 = vector.load %arg6[%c0_24, %c0_25] : memref<128x1xf32, #tpu.memory_space<vmem>>, vector<128x1xf32>
      %32 = vector.broadcast %31 : vector<128x1xf32> to vector<128x128xf32>
      %33 = arith.addf %30, %32 : vector<128x128xf32>
      %c0_26 = arith.constant 0 : index
      %c0_27 = arith.constant 0 : index
      %34 = vector.load %arg5[%c0_26, %c0_27] : memref<128x32xf32, #tpu.memory_space<vmem>>, vector<128x32xf32>
      %cst_28 = arith.constant dense<0.000000e+00> : vector<128x128xf32>
      %35 = tpu.matmul %34, %arg13, %cst_28 {dimension_numbers = #tpu.dot_dimension_numbers<[1], [0], [0], [1], [0, 0, 1, 1], [], []>} : vector<128x32xf32>, vector<32x128xf32>, vector<128x128xf32> -> vector<128x128xf32>
      %36 = arith.addf %33, %35 : vector<128x128xf32>
      %37 = vector.extract_strided_slice %36 {offsets = [0, 0], sizes = [96, 128], strides = [1, 1]} : vector<128x128xf32> to vector<96x128xf32>
      %38 = arith.negf %37 : vector<96x128xf32>
      %39 = math.exp %38 : vector<96x128xf32>
      %cst_29 = arith.constant 1.000000e+00 : f32
      %40 = vector.broadcast %cst_29 : f32 to vector<96x128xf32>
      %41 = arith.addf %40, %39 : vector<96x128xf32>
      %42 = arith.divf %40, %41 : vector<96x128xf32>
      %43 = vector.extract_strided_slice %36 {offsets = [96, 0], sizes = [32, 128], strides = [1, 1]} : vector<128x128xf32> to vector<32x128xf32>
      %44 = math.tanh %43 : vector<32x128xf32>
      %45 = vector.extract_strided_slice %42 {offsets = [0, 0], sizes = [32, 128], strides = [1, 1]} : vector<96x128xf32> to vector<32x128xf32>
      %46 = vector.extract_strided_slice %42 {offsets = [32, 0], sizes = [32, 128], strides = [1, 1]} : vector<96x128xf32> to vector<32x128xf32>
      %47 = vector.extract_strided_slice %42 {offsets = [64, 0], sizes = [32, 128], strides = [1, 1]} : vector<96x128xf32> to vector<32x128xf32>
      %48 = arith.mulf %46, %arg14 : vector<32x128xf32>
      %49 = arith.mulf %45, %44 : vector<32x128xf32>
      %50 = arith.addf %48, %49 : vector<32x128xf32>
      %51 = math.tanh %50 : vector<32x128xf32>
      %52 = arith.mulf %47, %51 : vector<32x128xf32>
      %53 = arith.index_cast %14 : i32 to index
      %c0_30 = arith.constant 0 : index
      %c0_31 = arith.constant 0 : index
      %54 = vector.load %arg7[%53, %c0_30, %c0_31] : memref<128x8x32xf32, #tpu.memory_space<vmem>>, vector<1x8x32xf32>
      %55 = vector.shape_cast %54 : vector<1x8x32xf32> to vector<8x32xf32>
      %cst_32 = arith.constant dense<0.000000e+00> : vector<8x128xf32>
      %56 = tpu.matmul %55, %52, %cst_32 {dimension_numbers = #tpu.dot_dimension_numbers<[1], [0], [0], [1], [0, 0, 1, 1], [], []>} : vector<8x32xf32>, vector<32x128xf32>, vector<8x128xf32> -> vector<8x128xf32>
      %57 = arith.addf %arg15, %56 : vector<8x128xf32>
      %c4_i32_33 = arith.constant 4 : i32
      %58 = arith.muli %arg12, %c4_i32_33 : i32
      %c1_i32_34 = arith.constant 1 : i32
      %59 = arith.addi %58, %c1_i32_34 : i32
      %c127_i32_35 = arith.constant 127 : i32
      %60 = arith.subi %c127_i32_35, %59 : i32
      %61 = arith.index_cast %59 : i32 to index
      %c0_36 = arith.constant 0 : index
      %c0_37 = arith.constant 0 : index
      %62 = vector.load %arg10[%61, %c0_36, %c0_37] : memref<128x16x128xf32, #tpu.memory_space<vmem>>, vector<1x16x128xf32>
      %63 = vector.shape_cast %62 : vector<1x16x128xf32> to vector<16x128xf32>
      %64 = arith.index_cast %59 : i32 to index
      %c0_38 = arith.constant 0 : index
      %c0_39 = arith.constant 0 : index
      %65 = vector.load %arg11[%64, %c0_38, %c0_39] : memref<128x16x128xf32, #tpu.memory_space<vmem>>, vector<1x16x128xf32>
      %66 = vector.shape_cast %65 : vector<1x16x128xf32> to vector<16x128xf32>
      %67 = arith.index_cast %60 : i32 to index
      %c0_40 = arith.constant 0 : index
      %c0_41 = arith.constant 0 : index
      %68 = vector.load %arg10[%67, %c0_40, %c0_41] : memref<128x16x128xf32, #tpu.memory_space<vmem>>, vector<1x16x128xf32>
      %69 = vector.shape_cast %68 : vector<1x16x128xf32> to vector<16x128xf32>
      %70 = arith.index_cast %60 : i32 to index
      %c0_42 = arith.constant 0 : index
      %c0_43 = arith.constant 0 : index
      %71 = vector.load %arg11[%70, %c0_42, %c0_43] : memref<128x16x128xf32, #tpu.memory_space<vmem>>, vector<1x16x128xf32>
      %72 = vector.shape_cast %71 : vector<1x16x128xf32> to vector<16x128xf32>
      %73 = tpu.concatenate %63, %66, %69, %72 in 0 : vector<16x128xf32>, vector<16x128xf32>, vector<16x128xf32>, vector<16x128xf32> -> vector<64x128xf32>
      %c0_44 = arith.constant 0 : index
      %c0_45 = arith.constant 0 : index
      %74 = vector.load %arg4[%c0_44, %c0_45] : memref<128x64xf32, #tpu.memory_space<vmem>>, vector<128x64xf32>
      %cst_46 = arith.constant dense<0.000000e+00> : vector<128x128xf32>
      %75 = tpu.matmul %74, %73, %cst_46 {dimension_numbers = #tpu.dot_dimension_numbers<[1], [0], [0], [1], [0, 0, 1, 1], [], []>} : vector<128x64xf32>, vector<64x128xf32>, vector<128x128xf32> -> vector<128x128xf32>
      %c0_47 = arith.constant 0 : index
      %c0_48 = arith.constant 0 : index
      %76 = vector.load %arg6[%c0_47, %c0_48] : memref<128x1xf32, #tpu.memory_space<vmem>>, vector<128x1xf32>
      %77 = vector.broadcast %76 : vector<128x1xf32> to vector<128x128xf32>
      %78 = arith.addf %75, %77 : vector<128x128xf32>
      %c0_49 = arith.constant 0 : index
      %c0_50 = arith.constant 0 : index
      %79 = vector.load %arg5[%c0_49, %c0_50] : memref<128x32xf32, #tpu.memory_space<vmem>>, vector<128x32xf32>
      %cst_51 = arith.constant dense<0.000000e+00> : vector<128x128xf32>
      %80 = tpu.matmul %79, %52, %cst_51 {dimension_numbers = #tpu.dot_dimension_numbers<[1], [0], [0], [1], [0, 0, 1, 1], [], []>} : vector<128x32xf32>, vector<32x128xf32>, vector<128x128xf32> -> vector<128x128xf32>
      %81 = arith.addf %78, %80 : vector<128x128xf32>
      %82 = vector.extract_strided_slice %81 {offsets = [0, 0], sizes = [96, 128], strides = [1, 1]} : vector<128x128xf32> to vector<96x128xf32>
      %83 = arith.negf %82 : vector<96x128xf32>
      %84 = math.exp %83 : vector<96x128xf32>
      %cst_52 = arith.constant 1.000000e+00 : f32
      %85 = vector.broadcast %cst_52 : f32 to vector<96x128xf32>
      %86 = arith.addf %85, %84 : vector<96x128xf32>
      %87 = arith.divf %85, %86 : vector<96x128xf32>
      %88 = vector.extract_strided_slice %81 {offsets = [96, 0], sizes = [32, 128], strides = [1, 1]} : vector<128x128xf32> to vector<32x128xf32>
      %89 = math.tanh %88 : vector<32x128xf32>
      %90 = vector.extract_strided_slice %87 {offsets = [0, 0], sizes = [32, 128], strides = [1, 1]} : vector<96x128xf32> to vector<32x128xf32>
      %91 = vector.extract_strided_slice %87 {offsets = [32, 0], sizes = [32, 128], strides = [1, 1]} : vector<96x128xf32> to vector<32x128xf32>
      %92 = vector.extract_strided_slice %87 {offsets = [64, 0], sizes = [32, 128], strides = [1, 1]} : vector<96x128xf32> to vector<32x128xf32>
      %93 = arith.mulf %91, %50 : vector<32x128xf32>
      %94 = arith.mulf %90, %89 : vector<32x128xf32>
      %95 = arith.addf %93, %94 : vector<32x128xf32>
      %96 = math.tanh %95 : vector<32x128xf32>
      %97 = arith.mulf %92, %96 : vector<32x128xf32>
      %98 = arith.index_cast %59 : i32 to index
      %c0_53 = arith.constant 0 : index
      %c0_54 = arith.constant 0 : index
      %99 = vector.load %arg7[%98, %c0_53, %c0_54] : memref<128x8x32xf32, #tpu.memory_space<vmem>>, vector<1x8x32xf32>
      %100 = vector.shape_cast %99 : vector<1x8x32xf32> to vector<8x32xf32>
      %cst_55 = arith.constant dense<0.000000e+00> : vector<8x128xf32>
      %101 = tpu.matmul %100, %97, %cst_55 {dimension_numbers = #tpu.dot_dimension_numbers<[1], [0], [0], [1], [0, 0, 1, 1], [], []>} : vector<8x32xf32>, vector<32x128xf32>, vector<8x128xf32> -> vector<8x128xf32>
      %102 = arith.addf %57, %101 : vector<8x128xf32>
      %c4_i32_56 = arith.constant 4 : i32
      %103 = arith.muli %arg12, %c4_i32_56 : i32
      %c2_i32 = arith.constant 2 : i32
      %104 = arith.addi %103, %c2_i32 : i32
      %c127_i32_57 = arith.constant 127 : i32
      %105 = arith.subi %c127_i32_57, %104 : i32
      %106 = arith.index_cast %104 : i32 to index
      %c0_58 = arith.constant 0 : index
      %c0_59 = arith.constant 0 : index
      %107 = vector.load %arg10[%106, %c0_58, %c0_59] : memref<128x16x128xf32, #tpu.memory_space<vmem>>, vector<1x16x128xf32>
      %108 = vector.shape_cast %107 : vector<1x16x128xf32> to vector<16x128xf32>
      %109 = arith.index_cast %104 : i32 to index
      %c0_60 = arith.constant 0 : index
      %c0_61 = arith.constant 0 : index
      %110 = vector.load %arg11[%109, %c0_60, %c0_61] : memref<128x16x128xf32, #tpu.memory_space<vmem>>, vector<1x16x128xf32>
      %111 = vector.shape_cast %110 : vector<1x16x128xf32> to vector<16x128xf32>
      %112 = arith.index_cast %105 : i32 to index
      %c0_62 = arith.constant 0 : index
      %c0_63 = arith.constant 0 : index
      %113 = vector.load %arg10[%112, %c0_62, %c0_63] : memref<128x16x128xf32, #tpu.memory_space<vmem>>, vector<1x16x128xf32>
      %114 = vector.shape_cast %113 : vector<1x16x128xf32> to vector<16x128xf32>
      %115 = arith.index_cast %105 : i32 to index
      %c0_64 = arith.constant 0 : index
      %c0_65 = arith.constant 0 : index
      %116 = vector.load %arg11[%115, %c0_64, %c0_65] : memref<128x16x128xf32, #tpu.memory_space<vmem>>, vector<1x16x128xf32>
      %117 = vector.shape_cast %116 : vector<1x16x128xf32> to vector<16x128xf32>
      %118 = tpu.concatenate %108, %111, %114, %117 in 0 : vector<16x128xf32>, vector<16x128xf32>, vector<16x128xf32>, vector<16x128xf32> -> vector<64x128xf32>
      %c0_66 = arith.constant 0 : index
      %c0_67 = arith.constant 0 : index
      %119 = vector.load %arg4[%c0_66, %c0_67] : memref<128x64xf32, #tpu.memory_space<vmem>>, vector<128x64xf32>
      %cst_68 = arith.constant dense<0.000000e+00> : vector<128x128xf32>
      %120 = tpu.matmul %119, %118, %cst_68 {dimension_numbers = #tpu.dot_dimension_numbers<[1], [0], [0], [1], [0, 0, 1, 1], [], []>} : vector<128x64xf32>, vector<64x128xf32>, vector<128x128xf32> -> vector<128x128xf32>
      %c0_69 = arith.constant 0 : index
      %c0_70 = arith.constant 0 : index
      %121 = vector.load %arg6[%c0_69, %c0_70] : memref<128x1xf32, #tpu.memory_space<vmem>>, vector<128x1xf32>
      %122 = vector.broadcast %121 : vector<128x1xf32> to vector<128x128xf32>
      %123 = arith.addf %120, %122 : vector<128x128xf32>
      %c0_71 = arith.constant 0 : index
      %c0_72 = arith.constant 0 : index
      %124 = vector.load %arg5[%c0_71, %c0_72] : memref<128x32xf32, #tpu.memory_space<vmem>>, vector<128x32xf32>
      %cst_73 = arith.constant dense<0.000000e+00> : vector<128x128xf32>
      %125 = tpu.matmul %124, %97, %cst_73 {dimension_numbers = #tpu.dot_dimension_numbers<[1], [0], [0], [1], [0, 0, 1, 1], [], []>} : vector<128x32xf32>, vector<32x128xf32>, vector<128x128xf32> -> vector<128x128xf32>
      %126 = arith.addf %123, %125 : vector<128x128xf32>
      %127 = vector.extract_strided_slice %126 {offsets = [0, 0], sizes = [96, 128], strides = [1, 1]} : vector<128x128xf32> to vector<96x128xf32>
      %128 = arith.negf %127 : vector<96x128xf32>
      %129 = math.exp %128 : vector<96x128xf32>
      %cst_74 = arith.constant 1.000000e+00 : f32
      %130 = vector.broadcast %cst_74 : f32 to vector<96x128xf32>
      %131 = arith.addf %130, %129 : vector<96x128xf32>
      %132 = arith.divf %130, %131 : vector<96x128xf32>
      %133 = vector.extract_strided_slice %126 {offsets = [96, 0], sizes = [32, 128], strides = [1, 1]} : vector<128x128xf32> to vector<32x128xf32>
      %134 = math.tanh %133 : vector<32x128xf32>
      %135 = vector.extract_strided_slice %132 {offsets = [0, 0], sizes = [32, 128], strides = [1, 1]} : vector<96x128xf32> to vector<32x128xf32>
      %136 = vector.extract_strided_slice %132 {offsets = [32, 0], sizes = [32, 128], strides = [1, 1]} : vector<96x128xf32> to vector<32x128xf32>
      %137 = vector.extract_strided_slice %132 {offsets = [64, 0], sizes = [32, 128], strides = [1, 1]} : vector<96x128xf32> to vector<32x128xf32>
      %138 = arith.mulf %136, %95 : vector<32x128xf32>
      %139 = arith.mulf %135, %134 : vector<32x128xf32>
      %140 = arith.addf %138, %139 : vector<32x128xf32>
      %141 = math.tanh %140 : vector<32x128xf32>
      %142 = arith.mulf %137, %141 : vector<32x128xf32>
      %143 = arith.index_cast %104 : i32 to index
      %c0_75 = arith.constant 0 : index
      %c0_76 = arith.constant 0 : index
      %144 = vector.load %arg7[%143, %c0_75, %c0_76] : memref<128x8x32xf32, #tpu.memory_space<vmem>>, vector<1x8x32xf32>
      %145 = vector.shape_cast %144 : vector<1x8x32xf32> to vector<8x32xf32>
      %cst_77 = arith.constant dense<0.000000e+00> : vector<8x128xf32>
      %146 = tpu.matmul %145, %142, %cst_77 {dimension_numbers = #tpu.dot_dimension_numbers<[1], [0], [0], [1], [0, 0, 1, 1], [], []>} : vector<8x32xf32>, vector<32x128xf32>, vector<8x128xf32> -> vector<8x128xf32>
      %147 = arith.addf %102, %146 : vector<8x128xf32>
      %c4_i32_78 = arith.constant 4 : i32
      %148 = arith.muli %arg12, %c4_i32_78 : i32
      %c3_i32 = arith.constant 3 : i32
      %149 = arith.addi %148, %c3_i32 : i32
      %c127_i32_79 = arith.constant 127 : i32
      %150 = arith.subi %c127_i32_79, %149 : i32
      %151 = arith.index_cast %149 : i32 to index
      %c0_80 = arith.constant 0 : index
      %c0_81 = arith.constant 0 : index
      %152 = vector.load %arg10[%151, %c0_80, %c0_81] : memref<128x16x128xf32, #tpu.memory_space<vmem>>, vector<1x16x128xf32>
      %153 = vector.shape_cast %152 : vector<1x16x128xf32> to vector<16x128xf32>
      %154 = arith.index_cast %149 : i32 to index
      %c0_82 = arith.constant 0 : index
      %c0_83 = arith.constant 0 : index
      %155 = vector.load %arg11[%154, %c0_82, %c0_83] : memref<128x16x128xf32, #tpu.memory_space<vmem>>, vector<1x16x128xf32>
      %156 = vector.shape_cast %155 : vector<1x16x128xf32> to vector<16x128xf32>
      %157 = arith.index_cast %150 : i32 to index
      %c0_84 = arith.constant 0 : index
      %c0_85 = arith.constant 0 : index
      %158 = vector.load %arg10[%157, %c0_84, %c0_85] : memref<128x16x128xf32, #tpu.memory_space<vmem>>, vector<1x16x128xf32>
      %159 = vector.shape_cast %158 : vector<1x16x128xf32> to vector<16x128xf32>
      %160 = arith.index_cast %150 : i32 to index
      %c0_86 = arith.constant 0 : index
      %c0_87 = arith.constant 0 : index
      %161 = vector.load %arg11[%160, %c0_86, %c0_87] : memref<128x16x128xf32, #tpu.memory_space<vmem>>, vector<1x16x128xf32>
      %162 = vector.shape_cast %161 : vector<1x16x128xf32> to vector<16x128xf32>
      %163 = tpu.concatenate %153, %156, %159, %162 in 0 : vector<16x128xf32>, vector<16x128xf32>, vector<16x128xf32>, vector<16x128xf32> -> vector<64x128xf32>
      %c0_88 = arith.constant 0 : index
      %c0_89 = arith.constant 0 : index
      %164 = vector.load %arg4[%c0_88, %c0_89] : memref<128x64xf32, #tpu.memory_space<vmem>>, vector<128x64xf32>
      %cst_90 = arith.constant dense<0.000000e+00> : vector<128x128xf32>
      %165 = tpu.matmul %164, %163, %cst_90 {dimension_numbers = #tpu.dot_dimension_numbers<[1], [0], [0], [1], [0, 0, 1, 1], [], []>} : vector<128x64xf32>, vector<64x128xf32>, vector<128x128xf32> -> vector<128x128xf32>
      %c0_91 = arith.constant 0 : index
      %c0_92 = arith.constant 0 : index
      %166 = vector.load %arg6[%c0_91, %c0_92] : memref<128x1xf32, #tpu.memory_space<vmem>>, vector<128x1xf32>
      %167 = vector.broadcast %166 : vector<128x1xf32> to vector<128x128xf32>
      %168 = arith.addf %165, %167 : vector<128x128xf32>
      %c0_93 = arith.constant 0 : index
      %c0_94 = arith.constant 0 : index
      %169 = vector.load %arg5[%c0_93, %c0_94] : memref<128x32xf32, #tpu.memory_space<vmem>>, vector<128x32xf32>
      %cst_95 = arith.constant dense<0.000000e+00> : vector<128x128xf32>
      %170 = tpu.matmul %169, %142, %cst_95 {dimension_numbers = #tpu.dot_dimension_numbers<[1], [0], [0], [1], [0, 0, 1, 1], [], []>} : vector<128x32xf32>, vector<32x128xf32>, vector<128x128xf32> -> vector<128x128xf32>
      %171 = arith.addf %168, %170 : vector<128x128xf32>
      %172 = vector.extract_strided_slice %171 {offsets = [0, 0], sizes = [96, 128], strides = [1, 1]} : vector<128x128xf32> to vector<96x128xf32>
      %173 = arith.negf %172 : vector<96x128xf32>
      %174 = math.exp %173 : vector<96x128xf32>
      %cst_96 = arith.constant 1.000000e+00 : f32
      %175 = vector.broadcast %cst_96 : f32 to vector<96x128xf32>
      %176 = arith.addf %175, %174 : vector<96x128xf32>
      %177 = arith.divf %175, %176 : vector<96x128xf32>
      %178 = vector.extract_strided_slice %171 {offsets = [96, 0], sizes = [32, 128], strides = [1, 1]} : vector<128x128xf32> to vector<32x128xf32>
      %179 = math.tanh %178 : vector<32x128xf32>
      %180 = vector.extract_strided_slice %177 {offsets = [0, 0], sizes = [32, 128], strides = [1, 1]} : vector<96x128xf32> to vector<32x128xf32>
      %181 = vector.extract_strided_slice %177 {offsets = [32, 0], sizes = [32, 128], strides = [1, 1]} : vector<96x128xf32> to vector<32x128xf32>
      %182 = vector.extract_strided_slice %177 {offsets = [64, 0], sizes = [32, 128], strides = [1, 1]} : vector<96x128xf32> to vector<32x128xf32>
      %183 = arith.mulf %181, %140 : vector<32x128xf32>
      %184 = arith.mulf %180, %179 : vector<32x128xf32>
      %185 = arith.addf %183, %184 : vector<32x128xf32>
      %186 = math.tanh %185 : vector<32x128xf32>
      %187 = arith.mulf %182, %186 : vector<32x128xf32>
      %188 = arith.index_cast %149 : i32 to index
      %c0_97 = arith.constant 0 : index
      %c0_98 = arith.constant 0 : index
      %189 = vector.load %arg7[%188, %c0_97, %c0_98] : memref<128x8x32xf32, #tpu.memory_space<vmem>>, vector<1x8x32xf32>
      %190 = vector.shape_cast %189 : vector<1x8x32xf32> to vector<8x32xf32>
      %cst_99 = arith.constant dense<0.000000e+00> : vector<8x128xf32>
      %191 = tpu.matmul %190, %187, %cst_99 {dimension_numbers = #tpu.dot_dimension_numbers<[1], [0], [0], [1], [0, 0, 1, 1], [], []>} : vector<8x32xf32>, vector<32x128xf32>, vector<8x128xf32> -> vector<8x128xf32>
      %192 = arith.addf %147, %191 : vector<8x128xf32>
      scf.yield %187, %185, %192 : vector<32x128xf32>, vector<32x128xf32>, vector<8x128xf32>
    }
    %c32_i32_8 = arith.constant 32 : i32
    %c0 = arith.constant 0 : index
    %c0_9 = arith.constant 0 : index
    %9 = vector.load %arg8[%c0, %c0_9] : memref<8x1xf32, #tpu.memory_space<vmem>>, vector<8x1xf32>
    %10 = vector.broadcast %9 : vector<8x1xf32> to vector<8x128xf32>
    %11 = arith.addf %8#2, %10 : vector<8x128xf32>
    %c0_10 = arith.constant 0 : index
    %c0_11 = arith.constant 0 : index
    %12 = vector.load %arg9[%c0_10, %c0_11] : memref<8x128xf32, #tpu.memory_space<vmem>>, vector<8x128xf32>
    tpu.vector_store %arg9[%c0_10, %c0_11], %11 {strides = array<i32>} : memref<8x128xf32, #tpu.memory_space<vmem>>, vector<8x128xf32>,
    return
  }
}

</mosaic_0001>

<llo_original>
// kernel: seq_classifier_forward.1
$region0: #{seq_classifier_forward.1}
  #allocation0 [shape = 'u32[]', space=smem, size = 0x4, offset = 0x4, fixed_abs, tag = 'smem constant byte address 0x4 - core index']
  #allocation1 [shape = 'u32[72,128]{1,0:T(1,128)}', space=vmem, size = 0x9000, scoped, tag = 'internal scratch']
  #allocation2 [shape = 'f32[128,16,128]{2,1,0:T(8,128)}', space=vmem, size = 0x100000, scoped, tag = 'scratch operand']
  #allocation3 [shape = 'f32[128,16,128]{2,1,0:T(8,128)}', space=vmem, size = 0x100000, scoped, tag = 'scratch operand']
  %s0 = inlined_call_operand.vmem [shape: f32[128,16,128], index: 0, kind: input, shape index: {}]
  %s1 = inlined_call_operand.vmem [shape: f32[128,32], index: 1, kind: input, shape index: {}]
  %s2 = inlined_call_operand.vmem [shape: f32[128,32], index: 2, kind: input, shape index: {}]
  %s3 = inlined_call_operand.vmem [shape: f32[128,1], index: 3, kind: input, shape index: {}]
  %s4 = inlined_call_operand.vmem [shape: f32[128,64], index: 4, kind: input, shape index: {}]
  %s5 = inlined_call_operand.vmem [shape: f32[128,32], index: 5, kind: input, shape index: {}]
  %s6 = inlined_call_operand.vmem [shape: f32[128,1], index: 6, kind: input, shape index: {}]
  %s7 = inlined_call_operand.vmem [shape: f32[128,8,32], index: 7, kind: input, shape index: {}]
  %s8 = inlined_call_operand.vmem [shape: f32[8,1], index: 8, kind: input, shape index: {}]
  %s9 = inlined_call_operand.hbm [shape: f32[8,128], index: 9, kind: output, shape index: {}]
  %s10 = sld [smem:[#allocation0]]
  $region60: #{seq_classifier_forward.1} parent=0
    _
  %s12 = ssub.s32 1, %s10
  %s13 = scalar_select 0, %s12, %s10
  $region1: #{seq_classifier_forward.1} parent=0
    #allocation4 [shape = 'u8[4096]{0}', space=vmem, size = 0x1000, scoped, tag = 'output window, operand 0, single buffered']
    #allocation5 [shape = 's32[1]{0}', space=sflag, size = 0x4, scoped, tag = 'scoped memory for seq_classifier_forward.1']
    %14 = vsyncpa [#allocation5], 0
    // Predicated region
    $region2: #{seq_classifier_forward.1} parent=1 // pred_check
      _
    $region3: #{seq_classifier_forward.1} parent=1 // pred_check_branch
      %16 = sbr.rel (0) target = $region5
    $region4: #{seq_classifier_forward.1} parent=1 // pred_region
      _
    $region5: #{seq_classifier_forward.1} parent=1 // pred_fallthru
      _
    // Predicated region
    $region6: #{seq_classifier_forward.1} parent=1 // pred_check
      _
    $region7: #{seq_classifier_forward.1} parent=1 // pred_check_branch
      %18 = sbr.rel (0) target = $region9
    $region8: #{seq_classifier_forward.1} parent=1 // pred_region
      _
    $region9: #{seq_classifier_forward.1} parent=1 // pred_fallthru
      _
    // Predicated region
    $region10: #{seq_classifier_forward.1} parent=1 // pred_check
      _
    $region11: #{seq_classifier_forward.1} parent=1 // pred_check_branch
      %20 = sbr.rel (0) target = $region13
    $region12: #{seq_classifier_forward.1} parent=1 // pred_region
      _
    $region13: #{seq_classifier_forward.1} parent=1 // pred_fallthru
      _
    // Predicated region
    $region14: #{seq_classifier_forward.1} parent=1 // pred_check
      _
    $region15: #{seq_classifier_forward.1} parent=1 // pred_check_branch
      %22 = sbr.rel (0) target = $region17
    $region16: #{seq_classifier_forward.1} parent=1 // pred_region
      _
    $region17: #{seq_classifier_forward.1} parent=1 // pred_fallthru
      _
    // Predicated region
    $region18: #{seq_classifier_forward.1} parent=1 // pred_check
      _
    $region19: #{seq_classifier_forward.1} parent=1 // pred_check_branch
      %24 = sbr.rel (0) target = $region21
    $region20: #{seq_classifier_forward.1} parent=1 // pred_region
      _
    $region21: #{seq_classifier_forward.1} parent=1 // pred_fallthru
      _
    // Predicated region
    $region22: #{seq_classifier_forward.1} parent=1 // pred_check
      _
    $region23: #{seq_classifier_forward.1} parent=1 // pred_check_branch
      %26 = sbr.rel (0) target = $region25
    $region24: #{seq_classifier_forward.1} parent=1 // pred_region
      _
    $region25: #{seq_classifier_forward.1} parent=1 // pred_fallthru
      _
    // Predicated region
    $region26: #{seq_classifier_forward.1} parent=1 // pred_check
      _
    $region27: #{seq_classifier_forward.1} parent=1 // pred_check_branch
      %28 = sbr.rel (0) target = $region29
    $region28: #{seq_classifier_forward.1} parent=1 // pred_region
      _
    $region29: #{seq_classifier_forward.1} parent=1 // pred_fallthru
      _
    // Predicated region
    $region30: #{seq_classifier_forward.1} parent=1 // pred_check
      _
    $region31: #{seq_classifier_forward.1} parent=1 // pred_check_branch
      %30 = sbr.rel (0) target = $region33
    $region32: #{seq_classifier_forward.1} parent=1 // pred_region
      _
    $region33: #{seq_classifier_forward.1} parent=1 // pred_fallthru
      _
    // Predicated region
    $region34: #{seq_classifier_forward.1} parent=1 // pred_check
      _
    $region35: #{seq_classifier_forward.1} parent=1 // pred_check_branch
      %32 = sbr.rel (0) target = $region37
    $region36: #{seq_classifier_forward.1} parent=1 // pred_region
      _
    $region37: #{seq_classifier_forward.1} parent=1 // pred_fallthru
      _
    loop: start=0, step=1, limit=32
    $region38: #{seq_classifier_forward.1} parent=1 // loop_pre_header
      _
    $region39: #{seq_classifier_forward.1} parent=1 // loop_header
      %s34 = sphi 0, %s38
      %p35 = scmp.ge.s32.totalorder %s34, 32
      %v39 = vphi 0.0, %v2590
      %v40 = vphi 0.0, %v2591
      %v41 = vphi 0.0, %v2592
      %v42 = vphi 0.0, %v2593
      %v43 = vphi 0.0, %v2582
      %v44 = vphi 0.0, %v2583
      %v45 = vphi 0.0, %v2584
      %v46 = vphi 0.0, %v2585
    $region40: #{seq_classifier_forward.1} parent=1 // loop_header_branch
      %37 = sbr.rel (%p35) target = $region44
    $region41: #{seq_classifier_forward.1} parent=1 // loop_body
      %s47 = smul.u32 %s34, 4
      %s48 = ssub.s32 127, %s47
      %s49 = smul.u32 %s47, 16
      %s50 = scalar_lea.vmem %s0, %s49
      %v51 = vld [vmem:[%s50] sm:$0xff]
      %v52 = vld [vmem:[%s50 + $0x8] sm:$0xff]
      %s53 = smul.u32 %s48, 16
      %s54 = scalar_lea.vmem %s0, %s53
      %v55 = vld [vmem:[%s54] sm:$0xff]
      %v56 = vld [vmem:[%s54 + $0x8] sm:$0xff]
      %v57 = vld [vmem:[%s1] sm:$0xff]
      %v58 = vld [vmem:[%s1 + $0x8] sm:$0xff]
      %v59 = vld [vmem:[%s1 + $0x10] sm:$0xff]
      %v60 = vld [vmem:[%s1 + $0x18] sm:$0xff]
      %v61 = vld [vmem:[%s1 + $0x20] sm:$0xff]
      %v62 = vld [vmem:[%s1 + $0x28] sm:$0xff]
      %v63 = vld [vmem:[%s1 + $0x30] sm:$0xff]
      %v64 = vld [vmem:[%s1 + $0x38] sm:$0xff]
      %v65 = vld [vmem:[%s1 + $0x40] sm:$0xff]
      %v66 = vld [vmem:[%s1 + $0x48] sm:$0xff]
      %v67 = vld [vmem:[%s1 + $0x50] sm:$0xff]
      %v68 = vld [vmem:[%s1 + $0x58] sm:$0xff]
      %v69 = vld [vmem:[%s1 + $0x60] sm:$0xff]
      %v70 = vld [vmem:[%s1 + $0x68] sm:$0xff]
      %v71 = vld [vmem:[%s1 + $0x70] sm:$0xff]
      %v72 = vld [vmem:[%s1 + $0x78] sm:$0xff]
      %v73 = vld [vmem:[%s3] sm:$0xff]
      %v74 = vld [vmem:[%s3 + $0x8] sm:$0xff]
      %v75 = vld [vmem:[%s3 + $0x10] sm:$0xff]
      %v76 = vld [vmem:[%s3 + $0x18] sm:$0xff]
      %v77 = vld [vmem:[%s3 + $0x20] sm:$0xff]
      %v78 = vld [vmem:[%s3 + $0x28] sm:$0xff]
      %v79 = vld [vmem:[%s3 + $0x30] sm:$0xff]
      %v80 = vld [vmem:[%s3 + $0x38] sm:$0xff]
      %v81 = vld [vmem:[%s3 + $0x40] sm:$0xff]
      %v82 = vld [vmem:[%s3 + $0x48] sm:$0xff]
      %v83 = vld [vmem:[%s3 + $0x50] sm:$0xff]
      %v84 = vld [vmem:[%s3 + $0x58] sm:$0xff]
      %v85 = vld [vmem:[%s3 + $0x60] sm:$0xff]
      %v86 = vld [vmem:[%s3 + $0x68] sm:$0xff]
      %v87 = vld [vmem:[%s3 + $0x70] sm:$0xff]
      %v88 = vld [vmem:[%s3 + $0x78] sm:$0xff]
      %90 = vset.pattern.permute.xlu0 0
      %91 = vperm.xlu0 %90, %v73
      %v92 = vpop.permute.xlu0 %91
      %95 = vset.pattern.permute.xlu0 0
      %96 = vperm.xlu0 %95, %v74
      %v97 = vpop.permute.xlu0 %96
      %100 = vset.pattern.permute.xlu0 0
      %101 = vperm.xlu0 %100, %v75
      %v102 = vpop.permute.xlu0 %101
      %105 = vset.pattern.permute.xlu0 0
      %106 = vperm.xlu0 %105, %v76
      %v107 = vpop.permute.xlu0 %106
      %110 = vset.pattern.permute.xlu0 0
      %111 = vperm.xlu0 %110, %v77
      %v112 = vpop.permute.xlu0 %111
      %115 = vset.pattern.permute.xlu0 0
      %116 = vperm.xlu0 %115, %v78
      %v117 = vpop.permute.xlu0 %116
      %120 = vset.pattern.permute.xlu0 0
      %121 = vperm.xlu0 %120, %v79
      %v122 = vpop.permute.xlu0 %121
      %125 = vset.pattern.permute.xlu0 0
      %126 = vperm.xlu0 %125, %v80
      %v127 = vpop.permute.xlu0 %126
      %130 = vset.pattern.permute.xlu0 0
      %131 = vperm.xlu0 %130, %v81
      %v132 = vpop.permute.xlu0 %131
      %135 = vset.pattern.permute.xlu0 0
      %136 = vperm.xlu0 %135, %v82
      %v137 = vpop.permute.xlu0 %136
      %140 = vset.pattern.permute.xlu0 0
      %141 = vperm.xlu0 %140, %v83
      %v142 = vpop.permute.xlu0 %141
      %145 = vset.pattern.permute.xlu0 0
      %146 = vperm.xlu0 %145, %v84
      %v147 = vpop.permute.xlu0 %146
      %150 = vset.pattern.permute.xlu0 0
      %151 = vperm.xlu0 %150, %v85
      %v152 = vpop.permute.xlu0 %151
      %155 = vset.pattern.permute.xlu0 0
      %156 = vperm.xlu0 %155, %v86
      %v157 = vpop.permute.xlu0 %156
      %160 = vset.pattern.permute.xlu0 0
      %161 = vperm.xlu0 %160, %v87
      %v162 = vpop.permute.xlu0 %161
      %165 = vset.pattern.permute.xlu0 0
      %166 = vperm.xlu0 %165, %v88
      %v167 = vpop.permute.xlu0 %166
      %vm169 = vcmask 261120
      %v171 = vsel %vm169, %v57, 0
      %v174 = vsel %vm169, %v58, 0
      %v177 = vsel %vm169, %v59, 0
      %v180 = vsel %vm169, %v60, 0
      %v183 = vsel %vm169, %v61, 0
      %v186 = vsel %vm169, %v62, 0
      %v189 = vsel %vm169, %v63, 0
      %v192 = vsel %vm169, %v64, 0
      %v195 = vsel %vm169, %v65, 0
      %v198 = vsel %vm169, %v66, 0
      %v201 = vsel %vm169, %v67, 0
      %v204 = vsel %vm169, %v68, 0
      %v207 = vsel %vm169, %v69, 0
      %v210 = vsel %vm169, %v70, 0
      %v213 = vsel %vm169, %v71, 0
      %v216 = vsel %vm169, %v72, 0
      %218 = vmatpush.msra.mxu0 0.0
      %219 = vmatpush.msra.mxu0 0.0
      %220 = vmatpush.msra.mxu0 0.0
      %221 = vmatpush.msra.mxu0 0.0
      %222 = vmatpush.msra.mxu0 0.0
      %223 = vmatpush.msra.mxu0 0.0
      %224 = vmatpush.msra.mxu0 0.0
      %225 = vmatpush.msra.mxu0 0.0
      %226 = vmatpush.msra.mxu0 0.0
      %227 = vmatpush.msra.mxu0 0.0
      %228 = vmatpush.msra.mxu0 0.0
      %229 = vmatpush.msra.mxu0 0.0
      %230 = vmatpush.msra.mxu0 %v56
      %231 = vmatpush.msra.mxu0 %v55
      %232 = vmatpush.msra.mxu0 %v52
      %233 = vmatpush.msra.mxu0 %v51
      %234 = vmatmul.f32.gmra.mxu0 %v171
      %v235 = vpop.f32.mrf.mxu0
      %v236 = vadd.f32 %v92, %v235
      %237 = vmatmul.f32.gmra.mxu0 %v174
      %v238 = vpop.f32.mrf.mxu0
      %v239 = vadd.f32 %v97, %v238
      %240 = vmatmul.f32.gmra.mxu0 %v177
      %v241 = vpop.f32.mrf.mxu0
      %v242 = vadd.f32 %v102, %v241
      %243 = vmatmul.f32.gmra.mxu0 %v180
      %v244 = vpop.f32.mrf.mxu0
      %v245 = vadd.f32 %v107, %v244
      %246 = vmatmul.f32.gmra.mxu0 %v183
      %v247 = vpop.f32.mrf.mxu0
      %v248 = vadd.f32 %v112, %v247
      %249 = vmatmul.f32.gmra.mxu0 %v186
      %v250 = vpop.f32.mrf.mxu0
      %v251 = vadd.f32 %v117, %v250
      %252 = vmatmul.f32.gmra.mxu0 %v189
      %v253 = vpop.f32.mrf.mxu0
      %v254 = vadd.f32 %v122, %v253
      %255 = vmatmul.f32.gmra.mxu0 %v192
      %v256 = vpop.f32.mrf.mxu0
      %v257 = vadd.f32 %v127, %v256
      %258 = vmatmul.f32.gmra.mxu0 %v195
      %v259 = vpop.f32.mrf.mxu0
      %v260 = vadd.f32 %v132, %v259
      %261 = vmatmul.f32.gmra.mxu0 %v198
      %v262 = vpop.f32.mrf.mxu0
      %v263 = vadd.f32 %v137, %v262
      %264 = vmatmul.f32.gmra.mxu0 %v201
      %v265 = vpop.f32.mrf.mxu0
      %v266 = vadd.f32 %v142, %v265
      %267 = vmatmul.f32.gmra.mxu0 %v204
      %v268 = vpop.f32.mrf.mxu0
      %v269 = vadd.f32 %v147, %v268
      %270 = vmatmul.f32.gmra.mxu0 %v207
      %v271 = vpop.f32.mrf.mxu0
      %v272 = vadd.f32 %v152, %v271
      %273 = vmatmul.f32.gmra.mxu0 %v210
      %v274 = vpop.f32.mrf.mxu0
      %v275 = vadd.f32 %v157, %v274
      %276 = vmatmul.f32.gmra.mxu0 %v213
      %v277 = vpop.f32.mrf.mxu0
      %v278 = vadd.f32 %v162, %v277
      %279 = vmatmul.f32.gmra.mxu0 %v216
      %v280 = vpop.f32.mrf.mxu0
      %v281 = vadd.f32 %v167, %v280
      %282 = vdwg.mxu0
      %v283 = vld [vmem:[%s2] sm:$0xff]
      %v284 = vld [vmem:[%s2 + $0x8] sm:$0xff]
      %v285 = vld [vmem:[%s2 + $0x10] sm:$0xff]
      %v286 = vld [vmem:[%s2 + $0x18] sm:$0xff]
      %v287 = vld [vmem:[%s2 + $0x20] sm:$0xff]
      %v288 = vld [vmem:[%s2 + $0x28] sm:$0xff]
      %v289 = vld [vmem:[%s2 + $0x30] sm:$0xff]
      %v290 = vld [vmem:[%s2 + $0x38] sm:$0xff]
      %v291 = vld [vmem:[%s2 + $0x40] sm:$0xff]
      %v292 = vld [vmem:[%s2 + $0x48] sm:$0xff]
      %v293 = vld [vmem:[%s2 + $0x50] sm:$0xff]
      %v294 = vld [vmem:[%s2 + $0x58] sm:$0xff]
      %v295 = vld [vmem:[%s2 + $0x60] sm:$0xff]
      %v296 = vld [vmem:[%s2 + $0x68] sm:$0xff]
      %v297 = vld [vmem:[%s2 + $0x70] sm:$0xff]
      %v298 = vld [vmem:[%s2 + $0x78] sm:$0xff]
      %v300 = vsel %vm169, %v283, 0
      %v303 = vsel %vm169, %v284, 0
      %v306 = vsel %vm169, %v285, 0
      %v309 = vsel %vm169, %v286, 0
      %v312 = vsel %vm169, %v287, 0
      %v315 = vsel %vm169, %v288, 0
      %v318 = vsel %vm169, %v289, 0
      %v321 = vsel %vm169, %v290, 0
      %v324 = vsel %vm169, %v291, 0
      %v327 = vsel %vm169, %v292, 0
      %v330 = vsel %vm169, %v293, 0
      %v333 = vsel %vm169, %v294, 0
      %v336 = vsel %vm169, %v295, 0
      %v339 = vsel %vm169, %v296, 0
      %v342 = vsel %vm169, %v297, 0
      %v345 = vsel %vm169, %v298, 0
      %347 = vmatpush.msra.mxu0 0.0
      %348 = vmatpush.msra.mxu0 0.0
      %349 = vmatpush.msra.mxu0 0.0
      %350 = vmatpush.msra.mxu0 0.0
      %351 = vmatpush.msra.mxu0 0.0
      %352 = vmatpush.msra.mxu0 0.0
      %353 = vmatpush.msra.mxu0 0.0
      %354 = vmatpush.msra.mxu0 0.0
      %355 = vmatpush.msra.mxu0 0.0
      %356 = vmatpush.msra.mxu0 0.0
      %357 = vmatpush.msra.mxu0 0.0
      %358 = vmatpush.msra.mxu0 0.0
      %359 = vmatpush.msra.mxu0 %v42
      %360 = vmatpush.msra.mxu0 %v41
      %361 = vmatpush.msra.mxu0 %v40
      %362 = vmatpush.msra.mxu0 %v39
      %363 = vmatmul.f32.gmra.mxu0 %v300
      %v364 = vpop.f32.mrf.mxu0
      %v365 = vadd.f32 0.0, %v364
      %366 = vmatmul.f32.gmra.mxu0 %v303
      %v367 = vpop.f32.mrf.mxu0
      %v368 = vadd.f32 0.0, %v367
      %369 = vmatmul.f32.gmra.mxu0 %v306
      %v370 = vpop.f32.mrf.mxu0
      %v371 = vadd.f32 0.0, %v370
      %372 = vmatmul.f32.gmra.mxu0 %v309
      %v373 = vpop.f32.mrf.mxu0
      %v374 = vadd.f32 0.0, %v373
      %375 = vmatmul.f32.gmra.mxu0 %v312
      %v376 = vpop.f32.mrf.mxu0
      %v377 = vadd.f32 0.0, %v376
      %378 = vmatmul.f32.gmra.mxu0 %v315
      %v379 = vpop.f32.mrf.mxu0
      %v380 = vadd.f32 0.0, %v379
      %381 = vmatmul.f32.gmra.mxu0 %v318
      %v382 = vpop.f32.mrf.mxu0
      %v383 = vadd.f32 0.0, %v382
      %384 = vmatmul.f32.gmra.mxu0 %v321
      %v385 = vpop.f32.mrf.mxu0
      %v386 = vadd.f32 0.0, %v385
      %387 = vmatmul.f32.gmra.mxu0 %v324
      %v388 = vpop.f32.mrf.mxu0
      %v389 = vadd.f32 0.0, %v388
      %390 = vmatmul.f32.gmra.mxu0 %v327
      %v391 = vpop.f32.mrf.mxu0
      %v392 = vadd.f32 0.0, %v391
      %393 = vmatmul.f32.gmra.mxu0 %v330
      %v394 = vpop.f32.mrf.mxu0
      %v395 = vadd.f32 0.0, %v394
      %396 = vmatmul.f32.gmra.mxu0 %v333
      %v397 = vpop.f32.mrf.mxu0
      %v398 = vadd.f32 0.0, %v397
      %399 = vmatmul.f32.gmra.mxu0 %v336
      %v400 = vpop.f32.mrf.mxu0
      %v401 = vadd.f32 0.0, %v400
      %402 = vmatmul.f32.gmra.mxu0 %v339
      %v403 = vpop.f32.mrf.mxu0
      %v404 = vadd.f32 0.0, %v403
      %405 = vmatmul.f32.gmra.mxu0 %v342
      %v406 = vpop.f32.mrf.mxu0
      %v407 = vadd.f32 0.0, %v406
      %408 = vmatmul.f32.gmra.mxu0 %v345
      %v409 = vpop.f32.mrf.mxu0
      %v410 = vadd.f32 0.0, %v409
      %411 = vdwg.mxu0
      %v412 = vadd.f32 %v236, %v365
      %v413 = vadd.f32 %v239, %v368
      %v414 = vadd.f32 %v242, %v371
      %v415 = vadd.f32 %v245, %v374
      %v416 = vadd.f32 %v248, %v377
      %v417 = vadd.f32 %v251, %v380
      %v418 = vadd.f32 %v254, %v383
      %v419 = vadd.f32 %v257, %v386
      %v420 = vadd.f32 %v260, %v389
      %v421 = vadd.f32 %v263, %v392
      %v422 = vadd.f32 %v266, %v395
      %v423 = vadd.f32 %v269, %v398
      %v424 = vadd.f32 %v272, %v401
      %v425 = vadd.f32 %v275, %v404
      %v426 = vadd.f32 %v278, %v407
      %v427 = vadd.f32 %v281, %v410
      %v428 = vxor.u32 %v412, 2147483648
      %v429 = vxor.u32 %v413, 2147483648
      %v430 = vxor.u32 %v414, 2147483648
      %v431 = vxor.u32 %v415, 2147483648
      %v432 = vxor.u32 %v416, 2147483648
      %v433 = vxor.u32 %v417, 2147483648
      %v434 = vxor.u32 %v418, 2147483648
      %v435 = vxor.u32 %v419, 2147483648
      %v436 = vxor.u32 %v420, 2147483648
      %v437 = vxor.u32 %v421, 2147483648
      %v438 = vxor.u32 %v422, 2147483648
      %v439 = vxor.u32 %v423, 2147483648
      %v440 = vmul.f32 %v428, 1.442695
      %v441 = vpow.pop %v440
      %v442 = vmul.f32 %v429, 1.442695
      %v443 = vpow.pop %v442
      %v444 = vmul.f32 %v430, 1.442695
      %v445 = vpow.pop %v444
      %v446 = vmul.f32 %v431, 1.442695
      %v447 = vpow.pop %v446
      %v448 = vmul.f32 %v432, 1.442695
      %v449 = vpow.pop %v448
      %v450 = vmul.f32 %v433, 1.442695
      %v451 = vpow.pop %v450
      %v452 = vmul.f32 %v434, 1.442695
      %v453 = vpow.pop %v452
      %v454 = vmul.f32 %v435, 1.442695
      %v455 = vpow.pop %v454
      %v456 = vmul.f32 %v436, 1.442695
      %v457 = vpow.pop %v456
      %v458 = vmul.f32 %v437, 1.442695
      %v459 = vpow.pop %v458
      %v460 = vmul.f32 %v438, 1.442695
      %v461 = vpow.pop %v460
      %v462 = vmul.f32 %v439, 1.442695
      %v463 = vpow.pop %v462
      %v464 = vadd.f32 %v441, 1.0
      %v465 = vadd.f32 %v443, 1.0
      %v466 = vadd.f32 %v445, 1.0
      %v467 = vadd.f32 %v447, 1.0
      %v468 = vadd.f32 %v449, 1.0
      %v469 = vadd.f32 %v451, 1.0
      %v470 = vadd.f32 %v453, 1.0
      %v471 = vadd.f32 %v455, 1.0
      %v472 = vadd.f32 %v457, 1.0
      %v473 = vadd.f32 %v459, 1.0
      %v474 = vadd.f32 %v461, 1.0
      %v475 = vadd.f32 %v463, 1.0
      %v476 = vrcp.pop %v464
      %v477 = vmul.f32 %v464, %v476
      %v478 = vsub.f32 1.0, %v477
      %v479 = vmul.f32 %v476, %v478
      %v480 = vadd.f32 %v476, %v479
      %vm481 = vweird.f32 %v464
      %vm482 = vweird.f32 %v476
      %vm483 = vmor %vm481, %vm482
      %v484 = vsel %vm483, %v476, %v480
      %v485 = vand.u32 2147483647, %v464
      %vm486 = vcmp.eq.f32.partialorder %v485, 8.507059e+37
      %v487 = vand.u32 %v464, 2147483648
      %v488 = vor.u32 1.1754944e-38, %v487
      %v489 = vsel %vm486, %v488, %v484
      %v490 = vmul.f32 1.0, %v489
      %v491 = vrcp.pop %v465
      %v492 = vmul.f32 %v465, %v491
      %v493 = vsub.f32 1.0, %v492
      %v494 = vmul.f32 %v491, %v493
      %v495 = vadd.f32 %v491, %v494
      %vm496 = vweird.f32 %v465
      %vm497 = vweird.f32 %v491
      %vm498 = vmor %vm496, %vm497
      %v499 = vsel %vm498, %v491, %v495
      %v500 = vand.u32 2147483647, %v465
      %vm501 = vcmp.eq.f32.partialorder %v500, 8.507059e+37
      %v502 = vand.u32 %v465, 2147483648
      %v503 = vor.u32 1.1754944e-38, %v502
      %v504 = vsel %vm501, %v503, %v499
      %v505 = vmul.f32 1.0, %v504
      %v506 = vrcp.pop %v466
      %v507 = vmul.f32 %v466, %v506
      %v508 = vsub.f32 1.0, %v507
      %v509 = vmul.f32 %v506, %v508
      %v510 = vadd.f32 %v506, %v509
      %vm511 = vweird.f32 %v466
      %vm512 = vweird.f32 %v506
      %vm513 = vmor %vm511, %vm512
      %v514 = vsel %vm513, %v506, %v510
      %v515 = vand.u32 2147483647, %v466
      %vm516 = vcmp.eq.f32.partialorder %v515, 8.507059e+37
      %v517 = vand.u32 %v466, 2147483648
      %v518 = vor.u32 1.1754944e-38, %v517
      %v519 = vsel %vm516, %v518, %v514
      %v520 = vmul.f32 1.0, %v519
      %v521 = vrcp.pop %v467
      %v522 = vmul.f32 %v467, %v521
      %v523 = vsub.f32 1.0, %v522
      %v524 = vmul.f32 %v521, %v523
      %v525 = vadd.f32 %v521, %v524
      %vm526 = vweird.f32 %v467
      %vm527 = vweird.f32 %v521
      %vm528 = vmor %vm526, %vm527
      %v529 = vsel %vm528, %v521, %v525
      %v530 = vand.u32 2147483647, %v467
      %vm531 = vcmp.eq.f32.partialorder %v530, 8.507059e+37
      %v532 = vand.u32 %v467, 2147483648
      %v533 = vor.u32 1.1754944e-38, %v532
      %v534 = vsel %vm531, %v533, %v529
      %v535 = vmul.f32 1.0, %v534
      %v536 = vrcp.pop %v468
      %v537 = vmul.f32 %v468, %v536
      %v538 = vsub.f32 1.0, %v537
      %v539 = vmul.f32 %v536, %v538
      %v540 = vadd.f32 %v536, %v539
      %vm541 = vweird.f32 %v468
      %vm542 = vweird.f32 %v536
      %vm543 = vmor %vm541, %vm542
      %v544 = vsel %vm543, %v536, %v540
      %v545 = vand.u32 2147483647, %v468
      %vm546 = vcmp.eq.f32.partialorder %v545, 8.507059e+37
      %v547 = vand.u32 %v468, 2147483648
      %v548 = vor.u32 1.1754944e-38, %v547
      %v549 = vsel %vm546, %v548, %v544
      %v550 = vmul.f32 1.0, %v549
      %v551 = vrcp.pop %v469
      %v552 = vmul.f32 %v469, %v551
      %v553 = vsub.f32 1.0, %v552
      %v554 = vmul.f32 %v551, %v553
      %v555 = vadd.f32 %v551, %v554
      %vm556 = vweird.f32 %v469
      %vm557 = vweird.f32 %v551
      %vm558 = vmor %vm556, %vm557
      %v559 = vsel %vm558, %v551, %v555
      %v560 = vand.u32 2147483647, %v469
      %vm561 = vcmp.eq.f32.partialorder %v560, 8.507059e+37
      %v562 = vand.u32 %v469, 2147483648
      %v563 = vor.u32 1.1754944e-38, %v562
      %v564 = vsel %vm561, %v563, %v559
      %v565 = vmul.f32 1.0, %v564
      %v566 = vrcp.pop %v470
      %v567 = vmul.f32 %v470, %v566
      %v568 = vsub.f32 1.0, %v567
      %v569 = vmul.f32 %v566, %v568
      %v570 = vadd.f32 %v566, %v569
      %vm571 = vweird.f32 %v470
      %vm572 = vweird.f32 %v566
      %vm573 = vmor %vm571, %vm572
      %v574 = vsel %vm573, %v566, %v570
      %v575 = vand.u32 2147483647, %v470
      %vm576 = vcmp.eq.f32.partialorder %v575, 8.507059e+37
      %v577 = vand.u32 %v470, 2147483648
      %v578 = vor.u32 1.1754944e-38, %v577
      %v579 = vsel %vm576, %v578, %v574
      %v580 = vmul.f32 1.0, %v579
      %v581 = vrcp.pop %v471
      %v582 = vmul.f32 %v471, %v581
      %v583 = vsub.f32 1.0, %v582
      %v584 = vmul.f32 %v581, %v583
      %v585 = vadd.f32 %v581, %v584
      %vm586 = vweird.f32 %v471
      %vm587 = vweird.f32 %v581
      %vm588 = vmor %vm586, %vm587
      %v589 = vsel %vm588, %v581, %v585
      %v590 = vand.u32 2147483647, %v471
      %vm591 = vcmp.eq.f32.partialorder %v590, 8.507059e+37
      %v592 = vand.u32 %v471, 2147483648
      %v593 = vor.u32 1.1754944e-38, %v592
      %v594 = vsel %vm591, %v593, %v589
      %v595 = vmul.f32 1.0, %v594
      %v596 = vrcp.pop %v472
      %v597 = vmul.f32 %v472, %v596
      %v598 = vsub.f32 1.0, %v597
      %v599 = vmul.f32 %v596, %v598
      %v600 = vadd.f32 %v596, %v599
      %vm601 = vweird.f32 %v472
      %vm602 = vweird.f32 %v596
      %vm603 = vmor %vm601, %vm602
      %v604 = vsel %vm603, %v596, %v600
      %v605 = vand.u32 2147483647, %v472
      %vm606 = vcmp.eq.f32.partialorder %v605, 8.507059e+37
      %v607 = vand.u32 %v472, 2147483648
      %v608 = vor.u32 1.1754944e-38, %v607
      %v609 = vsel %vm606, %v608, %v604
      %v610 = vmul.f32 1.0, %v609
      %v611 = vrcp.pop %v473
      %v612 = vmul.f32 %v473, %v611
      %v613 = vsub.f32 1.0, %v612
      %v614 = vmul.f32 %v611, %v613
      %v615 = vadd.f32 %v611, %v614
      %vm616 = vweird.f32 %v473
      %vm617 = vweird.f32 %v611
      %vm618 = vmor %vm616, %vm617
      %v619 = vsel %vm618, %v611, %v615
      %v620 = vand.u32 2147483647, %v473
      %vm621 = vcmp.eq.f32.partialorder %v620, 8.507059e+37
      %v622 = vand.u32 %v473, 2147483648
      %v623 = vor.u32 1.1754944e-38, %v622
      %v624 = vsel %vm621, %v623, %v619
      %v625 = vmul.f32 1.0, %v624
      %v626 = vrcp.pop %v474
      %v627 = vmul.f32 %v474, %v626
      %v628 = vsub.f32 1.0, %v627
      %v629 = vmul.f32 %v626, %v628
      %v630 = vadd.f32 %v626, %v629
      %vm631 = vweird.f32 %v474
      %vm632 = vweird.f32 %v626
      %vm633 = vmor %vm631, %vm632
      %v634 = vsel %vm633, %v626, %v630
      %v635 = vand.u32 2147483647, %v474
      %vm636 = vcmp.eq.f32.partialorder %v635, 8.507059e+37
      %v637 = vand.u32 %v474, 2147483648
      %v638 = vor.u32 1.1754944e-38, %v637
      %v639 = vsel %vm636, %v638, %v634
      %v640 = vmul.f32 1.0, %v639
      %v641 = vrcp.pop %v475
      %v642 = vmul.f32 %v475, %v641
      %v643 = vsub.f32 1.0, %v642
      %v644 = vmul.f32 %v641, %v643
      %v645 = vadd.f32 %v641, %v644
      %vm646 = vweird.f32 %v475
      %vm647 = vweird.f32 %v641
      %vm648 = vmor %vm646, %vm647
      %v649 = vsel %vm648, %v641, %v645
      %v650 = vand.u32 2147483647, %v475
      %vm651 = vcmp.eq.f32.partialorder %v650, 8.507059e+37
      %v652 = vand.u32 %v475, 2147483648
      %v653 = vor.u32 1.1754944e-38, %v652
      %v654 = vsel %vm651, %v653, %v649
      %v655 = vmul.f32 1.0, %v654
      %v656 = vtanh.pop %v424
      %v657 = vtanh.pop %v425
      %v658 = vtanh.pop %v426
      %v659 = vtanh.pop %v427
      %v660 = vmul.f32 %v550, %v43
      %v661 = vmul.f32 %v565, %v44
      %v662 = vmul.f32 %v580, %v45
      %v663 = vmul.f32 %v595, %v46
      %v664 = vmul.f32 %v490, %v656
      %v665 = vmul.f32 %v505, %v657
      %v666 = vmul.f32 %v520, %v658
      %v667 = vmul.f32 %v535, %v659
      %v668 = vadd.f32 %v660, %v664
      %v669 = vadd.f32 %v661, %v665
      %v670 = vadd.f32 %v662, %v666
      %v671 = vadd.f32 %v663, %v667
      %v672 = vtanh.pop %v668
      %v673 = vtanh.pop %v669
      %v674 = vtanh.pop %v670
      %v675 = vtanh.pop %v671
      %v676 = vmul.f32 %v610, %v672
      %v677 = vmul.f32 %v625, %v673
      %v678 = vmul.f32 %v640, %v674
      %v679 = vmul.f32 %v655, %v675
      %s680 = scalar_lea.vmem [#allocation2], %s49
      %681 = vst [vmem:[%s680] sm:$0xff] %v676
      %682 = vst [vmem:[%s680 + $0x8] sm:$0xff] %v677
      %s683 = scalar_lea.vmem [#allocation3], %s53
      %684 = vst [vmem:[%s683] sm:$0xff] %v678
      %685 = vst [vmem:[%s683 + $0x8] sm:$0xff] %v679
      %s686 = sadd.s32 %s47, 1
      %s687 = ssub.s32 126, %s47
      %s688 = smul.u32 %s686, 16
      %s689 = scalar_lea.vmem %s0, %s688
      %v690 = vld [vmem:[%s689] sm:$0xff]
      %v691 = vld [vmem:[%s689 + $0x8] sm:$0xff]
      %s692 = smul.u32 %s687, 16
      %s693 = scalar_lea.vmem %s0, %s692
      %v694 = vld [vmem:[%s693] sm:$0xff]
      %v695 = vld [vmem:[%s693 + $0x8] sm:$0xff]
      %v696 = vld [vmem:[%s1] sm:$0xff]
      %v697 = vld [vmem:[%s1 + $0x8] sm:$0xff]
      %v698 = vld [vmem:[%s1 + $0x10] sm:$0xff]
      %v699 = vld [vmem:[%s1 + $0x18] sm:$0xff]
      %v700 = vld [vmem:[%s1 + $0x20] sm:$0xff]
      %v701 = vld [vmem:[%s1 + $0x28] sm:$0xff]
      %v702 = vld [vmem:[%s1 + $0x30] sm:$0xff]
      %v703 = vld [vmem:[%s1 + $0x38] sm:$0xff]
      %v704 = vld [vmem:[%s1 + $0x40] sm:$0xff]
      %v705 = vld [vmem:[%s1 + $0x48] sm:$0xff]
      %v706 = vld [vmem:[%s1 + $0x50] sm:$0xff]
      %v707 = vld [vmem:[%s1 + $0x58] sm:$0xff]
      %v708 = vld [vmem:[%s1 + $0x60] sm:$0xff]
      %v709 = vld [vmem:[%s1 + $0x68] sm:$0xff]
      %v710 = vld [vmem:[%s1 + $0x70] sm:$0xff]
      %v711 = vld [vmem:[%s1 + $0x78] sm:$0xff]
      %v712 = vld [vmem:[%s3] sm:$0xff]
      %v713 = vld [vmem:[%s3 + $0x8] sm:$0xff]
      %v714 = vld [vmem:[%s3 + $0x10] sm:$0xff]
      %v715 = vld [vmem:[%s3 + $0x18] sm:$0xff]
      %v716 = vld [vmem:[%s3 + $0x20] sm:$0xff]
      %v717 = vld [vmem:[%s3 + $0x28] sm:$0xff]
      %v718 = vld [vmem:[%s3 + $0x30] sm:$0xff]
      %v719 = vld [vmem:[%s3 + $0x38] sm:$0xff]
      %v720 = vld [vmem:[%s3 + $0x40] sm:$0xff]
      %v721 = vld [vmem:[%s3 + $0x48] sm:$0xff]
      %v722 = vld [vmem:[%s3 + $0x50] sm:$0xff]
      %v723 = vld [vmem:[%s3 + $0x58] sm:$0xff]
      %v724 = vld [vmem:[%s3 + $0x60] sm:$0xff]
      %v725 = vld [vmem:[%s3 + $0x68] sm:$0xff]
      %v726 = vld [vmem:[%s3 + $0x70] sm:$0xff]
      %v727 = vld [vmem:[%s3 + $0x78] sm:$0xff]
      %729 = vset.pattern.permute.xlu0 0
      %730 = vperm.xlu0 %729, %v712
      %v731 = vpop.permute.xlu0 %730
      %734 = vset.pattern.permute.xlu0 0
      %735 = vperm.xlu0 %734, %v713
      %v736 = vpop.permute.xlu0 %735
      %739 = vset.pattern.permute.xlu0 0
      %740 = vperm.xlu0 %739, %v714
      %v741 = vpop.permute.xlu0 %740
      %744 = vset.pattern.permute.xlu0 0
      %745 = vperm.xlu0 %744, %v715
      %v746 = vpop.permute.xlu0 %745
      %749 = vset.pattern.permute.xlu0 0
      %750 = vperm.xlu0 %749, %v716
      %v751 = vpop.permute.xlu0 %750
      %754 = vset.pattern.permute.xlu0 0
      %755 = vperm.xlu0 %754, %v717
      %v756 = vpop.permute.xlu0 %755
      %759 = vset.pattern.permute.xlu0 0
      %760 = vperm.xlu0 %759, %v718
      %v761 = vpop.permute.xlu0 %760
      %764 = vset.pattern.permute.xlu0 0
      %765 = vperm.xlu0 %764, %v719
      %v766 = vpop.permute.xlu0 %765
      %769 = vset.pattern.permute.xlu0 0
      %770 = vperm.xlu0 %769, %v720
      %v771 = vpop.permute.xlu0 %770
      %774 = vset.pattern.permute.xlu0 0
      %775 = vperm.xlu0 %774, %v721
      %v776 = vpop.permute.xlu0 %775
      %779 = vset.pattern.permute.xlu0 0
      %780 = vperm.xlu0 %779, %v722
      %v781 = vpop.permute.xlu0 %780
      %784 = vset.pattern.permute.xlu0 0
      %785 = vperm.xlu0 %784, %v723
      %v786 = vpop.permute.xlu0 %785
      %789 = vset.pattern.permute.xlu0 0
      %790 = vperm.xlu0 %789, %v724
      %v791 = vpop.permute.xlu0 %790
      %794 = vset.pattern.permute.xlu0 0
      %795 = vperm.xlu0 %794, %v725
      %v796 = vpop.permute.xlu0 %795
      %799 = vset.pattern.permute.xlu0 0
      %800 = vperm.xlu0 %799, %v726
      %v801 = vpop.permute.xlu0 %800
      %804 = vset.pattern.permute.xlu0 0
      %805 = vperm.xlu0 %804, %v727
      %v806 = vpop.permute.xlu0 %805
      %v809 = vsel %vm169, %v696, 0
      %v812 = vsel %vm169, %v697, 0
      %v815 = vsel %vm169, %v698, 0
      %v818 = vsel %vm169, %v699, 0
      %v821 = vsel %vm169, %v700, 0
      %v824 = vsel %vm169, %v701, 0
      %v827 = vsel %vm169, %v702, 0
      %v830 = vsel %vm169, %v703, 0
      %v833 = vsel %vm169, %v704, 0
      %v836 = vsel %vm169, %v705, 0
      %v839 = vsel %vm169, %v706, 0
      %v842 = vsel %vm169, %v707, 0
      %v845 = vsel %vm169, %v708, 0
      %v848 = vsel %vm169, %v709, 0
      %v851 = vsel %vm169, %v710, 0
      %v854 = vsel %vm169, %v711, 0
      %856 = vmatpush.msra.mxu0 0.0
      %857 = vmatpush.msra.mxu0 0.0
      %858 = vmatpush.msra.mxu0 0.0
      %859 = vmatpush.msra.mxu0 0.0
      %860 = vmatpush.msra.mxu0 0.0
      %861 = vmatpush.msra.mxu0 0.0
      %862 = vmatpush.msra.mxu0 0.0
      %863 = vmatpush.msra.mxu0 0.0
      %864 = vmatpush.msra.mxu0 0.0
      %865 = vmatpush.msra.mxu0 0.0
      %866 = vmatpush.msra.mxu0 0.0
      %867 = vmatpush.msra.mxu0 0.0
      %868 = vmatpush.msra.mxu0 %v695
      %869 = vmatpush.msra.mxu0 %v694
      %870 = vmatpush.msra.mxu0 %v691
      %871 = vmatpush.msra.mxu0 %v690
      %872 = vmatmul.f32.gmra.mxu0 %v809
      %v873 = vpop.f32.mrf.mxu0
      %v874 = vadd.f32 %v731, %v873
      %875 = vmatmul.f32.gmra.mxu0 %v812
      %v876 = vpop.f32.mrf.mxu0
      %v877 = vadd.f32 %v736, %v876
      %878 = vmatmul.f32.gmra.mxu0 %v815
      %v879 = vpop.f32.mrf.mxu0
      %v880 = vadd.f32 %v741, %v879
      %881 = vmatmul.f32.gmra.mxu0 %v818
      %v882 = vpop.f32.mrf.mxu0
      %v883 = vadd.f32 %v746, %v882
      %884 = vmatmul.f32.gmra.mxu0 %v821
      %v885 = vpop.f32.mrf.mxu0
      %v886 = vadd.f32 %v751, %v885
      %887 = vmatmul.f32.gmra.mxu0 %v824
      %v888 = vpop.f32.mrf.mxu0
      %v889 = vadd.f32 %v756, %v888
      %890 = vmatmul.f32.gmra.mxu0 %v827
      %v891 = vpop.f32.mrf.mxu0
      %v892 = vadd.f32 %v761, %v891
      %893 = vmatmul.f32.gmra.mxu0 %v830
      %v894 = vpop.f32.mrf.mxu0
      %v895 = vadd.f32 %v766, %v894
      %896 = vmatmul.f32.gmra.mxu0 %v833
      %v897 = vpop.f32.mrf.mxu0
      %v898 = vadd.f32 %v771, %v897
      %899 = vmatmul.f32.gmra.mxu0 %v836
      %v900 = vpop.f32.mrf.mxu0
      %v901 = vadd.f32 %v776, %v900
      %902 = vmatmul.f32.gmra.mxu0 %v839
      %v903 = vpop.f32.mrf.mxu0
      %v904 = vadd.f32 %v781, %v903
      %905 = vmatmul.f32.gmra.mxu0 %v842
      %v906 = vpop.f32.mrf.mxu0
      %v907 = vadd.f32 %v786, %v906
      %908 = vmatmul.f32.gmra.mxu0 %v845
      %v909 = vpop.f32.mrf.mxu0
      %v910 = vadd.f32 %v791, %v909
      %911 = vmatmul.f32.gmra.mxu0 %v848
      %v912 = vpop.f32.mrf.mxu0
      %v913 = vadd.f32 %v796, %v912
      %914 = vmatmul.f32.gmra.mxu0 %v851
      %v915 = vpop.f32.mrf.mxu0
      %v916 = vadd.f32 %v801, %v915
      %917 = vmatmul.f32.gmra.mxu0 %v854
      %v918 = vpop.f32.mrf.mxu0
      %v919 = vadd.f32 %v806, %v918
      %920 = vdwg.mxu0
      %v921 = vld [vmem:[%s2] sm:$0xff]
      %v922 = vld [vmem:[%s2 + $0x8] sm:$0xff]
      %v923 = vld [vmem:[%s2 + $0x10] sm:$0xff]
      %v924 = vld [vmem:[%s2 + $0x18] sm:$0xff]
      %v925 = vld [vmem:[%s2 + $0x20] sm:$0xff]
      %v926 = vld [vmem:[%s2 + $0x28] sm:$0xff]
      %v927 = vld [vmem:[%s2 + $0x30] sm:$0xff]
      %v928 = vld [vmem:[%s2 + $0x38] sm:$0xff]
      %v929 = vld [vmem:[%s2 + $0x40] sm:$0xff]
      %v930 = vld [vmem:[%s2 + $0x48] sm:$0xff]
      %v931 = vld [vmem:[%s2 + $0x50] sm:$0xff]
      %v932 = vld [vmem:[%s2 + $0x58] sm:$0xff]
      %v933 = vld [vmem:[%s2 + $0x60] sm:$0xff]
      %v934 = vld [vmem:[%s2 + $0x68] sm:$0xff]
      %v935 = vld [vmem:[%s2 + $0x70] sm:$0xff]
      %v936 = vld [vmem:[%s2 + $0x78] sm:$0xff]
      %v938 = vsel %vm169, %v921, 0
      %v941 = vsel %vm169, %v922, 0
      %v944 = vsel %vm169, %v923, 0
      %v947 = vsel %vm169, %v924, 0
      %v950 = vsel %vm169, %v925, 0
      %v953 = vsel %vm169, %v926, 0
      %v956 = vsel %vm169, %v927, 0
      %v959 = vsel %vm169, %v928, 0
      %v962 = vsel %vm169, %v929, 0
      %v965 = vsel %vm169, %v930, 0
      %v968 = vsel %vm169, %v931, 0
      %v971 = vsel %vm169, %v932, 0
      %v974 = vsel %vm169, %v933, 0
      %v977 = vsel %vm169, %v934, 0
      %v980 = vsel %vm169, %v935, 0
      %v983 = vsel %vm169, %v936, 0
      %985 = vmatpush.msra.mxu0 0.0
      %986 = vmatpush.msra.mxu0 0.0
      %987 = vmatpush.msra.mxu0 0.0
      %988 = vmatpush.msra.mxu0 0.0
      %989 = vmatpush.msra.mxu0 0.0
      %990 = vmatpush.msra.mxu0 0.0
      %991 = vmatpush.msra.mxu0 0.0
      %992 = vmatpush.msra.mxu0 0.0
      %993 = vmatpush.msra.mxu0 0.0
      %994 = vmatpush.msra.mxu0 0.0
      %995 = vmatpush.msra.mxu0 0.0
      %996 = vmatpush.msra.mxu0 0.0
      %997 = vmatpush.msra.mxu0 %v679
      %998 = vmatpush.msra.mxu0 %v678
      %999 = vmatpush.msra.mxu0 %v677
      %1000 = vmatpush.msra.mxu0 %v676
      %1001 = vmatmul.f32.gmra.mxu0 %v938
      %v1002 = vpop.f32.mrf.mxu0
      %v1003 = vadd.f32 0.0, %v1002
      %1004 = vmatmul.f32.gmra.mxu0 %v941
      %v1005 = vpop.f32.mrf.mxu0
      %v1006 = vadd.f32 0.0, %v1005
      %1007 = vmatmul.f32.gmra.mxu0 %v944
      %v1008 = vpop.f32.mrf.mxu0
      %v1009 = vadd.f32 0.0, %v1008
      %1010 = vmatmul.f32.gmra.mxu0 %v947
      %v1011 = vpop.f32.mrf.mxu0
      %v1012 = vadd.f32 0.0, %v1011
      %1013 = vmatmul.f32.gmra.mxu0 %v950
      %v1014 = vpop.f32.mrf.mxu0
      %v1015 = vadd.f32 0.0, %v1014
      %1016 = vmatmul.f32.gmra.mxu0 %v953
      %v1017 = vpop.f32.mrf.mxu0
      %v1018 = vadd.f32 0.0, %v1017
      %1019 = vmatmul.f32.gmra.mxu0 %v956
      %v1020 = vpop.f32.mrf.mxu0
      %v1021 = vadd.f32 0.0, %v1020
      %1022 = vmatmul.f32.gmra.mxu0 %v959
      %v1023 = vpop.f32.mrf.mxu0
      %v1024 = vadd.f32 0.0, %v1023
      %1025 = vmatmul.f32.gmra.mxu0 %v962
      %v1026 = vpop.f32.mrf.mxu0
      %v1027 = vadd.f32 0.0, %v1026
      %1028 = vmatmul.f32.gmra.mxu0 %v965
      %v1029 = vpop.f32.mrf.mxu0
      %v1030 = vadd.f32 0.0, %v1029
      %1031 = vmatmul.f32.gmra.mxu0 %v968
      %v1032 = vpop.f32.mrf.mxu0
      %v1033 = vadd.f32 0.0, %v1032
      %1034 = vmatmul.f32.gmra.mxu0 %v971
      %v1035 = vpop.f32.mrf.mxu0
      %v1036 = vadd.f32 0.0, %v1035
      %1037 = vmatmul.f32.gmra.mxu0 %v974
      %v1038 = vpop.f32.mrf.mxu0
      %v1039 = vadd.f32 0.0, %v1038
      %1040 = vmatmul.f32.gmra.mxu0 %v977
      %v1041 = vpop.f32.mrf.mxu0
      %v1042 = vadd.f32 0.0, %v1041
      %1043 = vmatmul.f32.gmra.mxu0 %v980
      %v1044 = vpop.f32.mrf.mxu0
      %v1045 = vadd.f32 0.0, %v1044
      %1046 = vmatmul.f32.gmra.mxu0 %v983
      %v1047 = vpop.f32.mrf.mxu0
      %v1048 = vadd.f32 0.0, %v1047
      %1049 = vdwg.mxu0
      %v1050 = vadd.f32 %v874, %v1003
      %v1051 = vadd.f32 %v877, %v1006
      %v1052 = vadd.f32 %v880, %v1009
      %v1053 = vadd.f32 %v883, %v1012
      %v1054 = vadd.f32 %v886, %v1015
      %v1055 = vadd.f32 %v889, %v1018
      %v1056 = vadd.f32 %v892, %v1021
      %v1057 = vadd.f32 %v895, %v1024
      %v1058 = vadd.f32 %v898, %v1027
      %v1059 = vadd.f32 %v901, %v1030
      %v1060 = vadd.f32 %v904, %v1033
      %v1061 = vadd.f32 %v907, %v1036
      %v1062 = vadd.f32 %v910, %v1039
      %v1063 = vadd.f32 %v913, %v1042
      %v1064 = vadd.f32 %v916, %v1045
      %v1065 = vadd.f32 %v919, %v1048
      %v1066 = vxor.u32 %v1050, 2147483648
      %v1067 = vxor.u32 %v1051, 2147483648
      %v1068 = vxor.u32 %v1052, 2147483648
      %v1069 = vxor.u32 %v1053, 2147483648
      %v1070 = vxor.u32 %v1054, 2147483648
      %v1071 = vxor.u32 %v1055, 2147483648
      %v1072 = vxor.u32 %v1056, 2147483648
      %v1073 = vxor.u32 %v1057, 2147483648
      %v1074 = vxor.u32 %v1058, 2147483648
      %v1075 = vxor.u32 %v1059, 2147483648
      %v1076 = vxor.u32 %v1060, 2147483648
      %v1077 = vxor.u32 %v1061, 2147483648
      %v1078 = vmul.f32 %v1066, 1.442695
      %v1079 = vpow.pop %v1078
      %v1080 = vmul.f32 %v1067, 1.442695
      %v1081 = vpow.pop %v1080
      %v1082 = vmul.f32 %v1068, 1.442695
      %v1083 = vpow.pop %v1082
      %v1084 = vmul.f32 %v1069, 1.442695
      %v1085 = vpow.pop %v1084
      %v1086 = vmul.f32 %v1070, 1.442695
      %v1087 = vpow.pop %v1086
      %v1088 = vmul.f32 %v1071, 1.442695
      %v1089 = vpow.pop %v1088
      %v1090 = vmul.f32 %v1072, 1.442695
      %v1091 = vpow.pop %v1090
      %v1092 = vmul.f32 %v1073, 1.442695
      %v1093 = vpow.pop %v1092
      %v1094 = vmul.f32 %v1074, 1.442695
      %v1095 = vpow.pop %v1094
      %v1096 = vmul.f32 %v1075, 1.442695
      %v1097 = vpow.pop %v1096
      %v1098 = vmul.f32 %v1076, 1.442695
      %v1099 = vpow.pop %v1098
      %v1100 = vmul.f32 %v1077, 1.442695
      %v1101 = vpow.pop %v1100
      %v1102 = vadd.f32 %v1079, 1.0
      %v1103 = vadd.f32 %v1081, 1.0
      %v1104 = vadd.f32 %v1083, 1.0
      %v1105 = vadd.f32 %v1085, 1.0
      %v1106 = vadd.f32 %v1087, 1.0
      %v1107 = vadd.f32 %v1089, 1.0
      %v1108 = vadd.f32 %v1091, 1.0
      %v1109 = vadd.f32 %v1093, 1.0
      %v1110 = vadd.f32 %v1095, 1.0
      %v1111 = vadd.f32 %v1097, 1.0
      %v1112 = vadd.f32 %v1099, 1.0
      %v1113 = vadd.f32 %v1101, 1.0
      %v1114 = vrcp.pop %v1102
      %v1115 = vmul.f32 %v1102, %v1114
      %v1116 = vsub.f32 1.0, %v1115
      %v1117 = vmul.f32 %v1114, %v1116
      %v1118 = vadd.f32 %v1114, %v1117
      %vm1119 = vweird.f32 %v1102
      %vm1120 = vweird.f32 %v1114
      %vm1121 = vmor %vm1119, %vm1120
      %v1122 = vsel %vm1121, %v1114, %v1118
      %v1123 = vand.u32 2147483647, %v1102
      %vm1124 = vcmp.eq.f32.partialorder %v1123, 8.507059e+37
      %v1125 = vand.u32 %v1102, 2147483648
      %v1126 = vor.u32 1.1754944e-38, %v1125
      %v1127 = vsel %vm1124, %v1126, %v1122
      %v1128 = vmul.f32 1.0, %v1127
      %v1129 = vrcp.pop %v1103
      %v1130 = vmul.f32 %v1103, %v1129
      %v1131 = vsub.f32 1.0, %v1130
      %v1132 = vmul.f32 %v1129, %v1131
      %v1133 = vadd.f32 %v1129, %v1132
      %vm1134 = vweird.f32 %v1103
      %vm1135 = vweird.f32 %v1129
      %vm1136 = vmor %vm1134, %vm1135
      %v1137 = vsel %vm1136, %v1129, %v1133
      %v1138 = vand.u32 2147483647, %v1103
      %vm1139 = vcmp.eq.f32.partialorder %v1138, 8.507059e+37
      %v1140 = vand.u32 %v1103, 2147483648
      %v1141 = vor.u32 1.1754944e-38, %v1140
      %v1142 = vsel %vm1139, %v1141, %v1137
      %v1143 = vmul.f32 1.0, %v1142
      %v1144 = vrcp.pop %v1104
      %v1145 = vmul.f32 %v1104, %v1144
      %v1146 = vsub.f32 1.0, %v1145
      %v1147 = vmul.f32 %v1144, %v1146
      %v1148 = vadd.f32 %v1144, %v1147
      %vm1149 = vweird.f32 %v1104
      %vm1150 = vweird.f32 %v1144
      %vm1151 = vmor %vm1149, %vm1150
      %v1152 = vsel %vm1151, %v1144, %v1148
      %v1153 = vand.u32 2147483647, %v1104
      %vm1154 = vcmp.eq.f32.partialorder %v1153, 8.507059e+37
      %v1155 = vand.u32 %v1104, 2147483648
      %v1156 = vor.u32 1.1754944e-38, %v1155
      %v1157 = vsel %vm1154, %v1156, %v1152
      %v1158 = vmul.f32 1.0, %v1157
      %v1159 = vrcp.pop %v1105
      %v1160 = vmul.f32 %v1105, %v1159
      %v1161 = vsub.f32 1.0, %v1160
      %v1162 = vmul.f32 %v1159, %v1161
      %v1163 = vadd.f32 %v1159, %v1162
      %vm1164 = vweird.f32 %v1105
      %vm1165 = vweird.f32 %v1159
      %vm1166 = vmor %vm1164, %vm1165
      %v1167 = vsel %vm1166, %v1159, %v1163
      %v1168 = vand.u32 2147483647, %v1105
      %vm1169 = vcmp.eq.f32.partialorder %v1168, 8.507059e+37
      %v1170 = vand.u32 %v1105, 2147483648
      %v1171 = vor.u32 1.1754944e-38, %v1170
      %v1172 = vsel %vm1169, %v1171, %v1167
      %v1173 = vmul.f32 1.0, %v1172
      %v1174 = vrcp.pop %v1106
      %v1175 = vmul.f32 %v1106, %v1174
      %v1176 = vsub.f32 1.0, %v1175
      %v1177 = vmul.f32 %v1174, %v1176
      %v1178 = vadd.f32 %v1174, %v1177
      %vm1179 = vweird.f32 %v1106
      %vm1180 = vweird.f32 %v1174
      %vm1181 = vmor %vm1179, %vm1180
      %v1182 = vsel %vm1181, %v1174, %v1178
      %v1183 = vand.u32 2147483647, %v1106
      %vm1184 = vcmp.eq.f32.partialorder %v1183, 8.507059e+37
      %v1185 = vand.u32 %v1106, 2147483648
      %v1186 = vor.u32 1.1754944e-38, %v1185
      %v1187 = vsel %vm1184, %v1186, %v1182
      %v1188 = vmul.f32 1.0, %v1187
      %v1189 = vrcp.pop %v1107
      %v1190 = vmul.f32 %v1107, %v1189
      %v1191 = vsub.f32 1.0, %v1190
      %v1192 = vmul.f32 %v1189, %v1191
      %v1193 = vadd.f32 %v1189, %v1192
      %vm1194 = vweird.f32 %v1107
      %vm1195 = vweird.f32 %v1189
      %vm1196 = vmor %vm1194, %vm1195
      %v1197 = vsel %vm1196, %v1189, %v1193
      %v1198 = vand.u32 2147483647, %v1107
      %vm1199 = vcmp.eq.f32.partialorder %v1198, 8.507059e+37
      %v1200 = vand.u32 %v1107, 2147483648
      %v1201 = vor.u32 1.1754944e-38, %v1200
      %v1202 = vsel %vm1199, %v1201, %v1197
      %v1203 = vmul.f32 1.0, %v1202
      %v1204 = vrcp.pop %v1108
      %v1205 = vmul.f32 %v1108, %v1204
      %v1206 = vsub.f32 1.0, %v1205
      %v1207 = vmul.f32 %v1204, %v1206
      %v1208 = vadd.f32 %v1204, %v1207
      %vm1209 = vweird.f32 %v1108
      %vm1210 = vweird.f32 %v1204
      %vm1211 = vmor %vm1209, %vm1210
      %v1212 = vsel %vm1211, %v1204, %v1208
      %v1213 = vand.u32 2147483647, %v1108
      %vm1214 = vcmp.eq.f32.partialorder %v1213, 8.507059e+37
      %v1215 = vand.u32 %v1108, 2147483648
      %v1216 = vor.u32 1.1754944e-38, %v1215
      %v1217 = vsel %vm1214, %v1216, %v1212
      %v1218 = vmul.f32 1.0, %v1217
      %v1219 = vrcp.pop %v1109
      %v1220 = vmul.f32 %v1109, %v1219
      %v1221 = vsub.f32 1.0, %v1220
      %v1222 = vmul.f32 %v1219, %v1221
      %v1223 = vadd.f32 %v1219, %v1222
      %vm1224 = vweird.f32 %v1109
      %vm1225 = vweird.f32 %v1219
      %vm1226 = vmor %vm1224, %vm1225
      %v1227 = vsel %vm1226, %v1219, %v1223
      %v1228 = vand.u32 2147483647, %v1109
      %vm1229 = vcmp.eq.f32.partialorder %v1228, 8.507059e+37
      %v1230 = vand.u32 %v1109, 2147483648
      %v1231 = vor.u32 1.1754944e-38, %v1230
      %v1232 = vsel %vm1229, %v1231, %v1227
      %v1233 = vmul.f32 1.0, %v1232
      %v1234 = vrcp.pop %v1110
      %v1235 = vmul.f32 %v1110, %v1234
      %v1236 = vsub.f32 1.0, %v1235
      %v1237 = vmul.f32 %v1234, %v1236
      %v1238 = vadd.f32 %v1234, %v1237
      %vm1239 = vweird.f32 %v1110
      %vm1240 = vweird.f32 %v1234
      %vm1241 = vmor %vm1239, %vm1240
      %v1242 = vsel %vm1241, %v1234, %v1238
      %v1243 = vand.u32 2147483647, %v1110
      %vm1244 = vcmp.eq.f32.partialorder %v1243, 8.507059e+37
      %v1245 = vand.u32 %v1110, 2147483648
      %v1246 = vor.u32 1.1754944e-38, %v1245
      %v1247 = vsel %vm1244, %v1246, %v1242
      %v1248 = vmul.f32 1.0, %v1247
      %v1249 = vrcp.pop %v1111
      %v1250 = vmul.f32 %v1111, %v1249
      %v1251 = vsub.f32 1.0, %v1250
      %v1252 = vmul.f32 %v1249, %v1251
      %v1253 = vadd.f32 %v1249, %v1252
      %vm1254 = vweird.f32 %v1111
      %vm1255 = vweird.f32 %v1249
      %vm1256 = vmor %vm1254, %vm1255
      %v1257 = vsel %vm1256, %v1249, %v1253
      %v1258 = vand.u32 2147483647, %v1111
      %vm1259 = vcmp.eq.f32.partialorder %v1258, 8.507059e+37
      %v1260 = vand.u32 %v1111, 2147483648
      %v1261 = vor.u32 1.1754944e-38, %v1260
      %v1262 = vsel %vm1259, %v1261, %v1257
      %v1263 = vmul.f32 1.0, %v1262
      %v1264 = vrcp.pop %v1112
      %v1265 = vmul.f32 %v1112, %v1264
      %v1266 = vsub.f32 1.0, %v1265
      %v1267 = vmul.f32 %v1264, %v1266
      %v1268 = vadd.f32 %v1264, %v1267
      %vm1269 = vweird.f32 %v1112
      %vm1270 = vweird.f32 %v1264
      %vm1271 = vmor %vm1269, %vm1270
      %v1272 = vsel %vm1271, %v1264, %v1268
      %v1273 = vand.u32 2147483647, %v1112
      %vm1274 = vcmp.eq.f32.partialorder %v1273, 8.507059e+37
      %v1275 = vand.u32 %v1112, 2147483648
      %v1276 = vor.u32 1.1754944e-38, %v1275
      %v1277 = vsel %vm1274, %v1276, %v1272
      %v1278 = vmul.f32 1.0, %v1277
      %v1279 = vrcp.pop %v1113
      %v1280 = vmul.f32 %v1113, %v1279
      %v1281 = vsub.f32 1.0, %v1280
      %v1282 = vmul.f32 %v1279, %v1281
      %v1283 = vadd.f32 %v1279, %v1282
      %vm1284 = vweird.f32 %v1113
      %vm1285 = vweird.f32 %v1279
      %vm1286 = vmor %vm1284, %vm1285
      %v1287 = vsel %vm1286, %v1279, %v1283
      %v1288 = vand.u32 2147483647, %v1113
      %vm1289 = vcmp.eq.f32.partialorder %v1288, 8.507059e+37
      %v1290 = vand.u32 %v1113, 2147483648
      %v1291 = vor.u32 1.1754944e-38, %v1290
      %v1292 = vsel %vm1289, %v1291, %v1287
      %v1293 = vmul.f32 1.0, %v1292
      %v1294 = vtanh.pop %v1062
      %v1295 = vtanh.pop %v1063
      %v1296 = vtanh.pop %v1064
      %v1297 = vtanh.pop %v1065
      %v1298 = vmul.f32 %v1188, %v668
      %v1299 = vmul.f32 %v1203, %v669
      %v1300 = vmul.f32 %v1218, %v670
      %v1301 = vmul.f32 %v1233, %v671
      %v1302 = vmul.f32 %v1128, %v1294
      %v1303 = vmul.f32 %v1143, %v1295
      %v1304 = vmul.f32 %v1158, %v1296
      %v1305 = vmul.f32 %v1173, %v1297
      %v1306 = vadd.f32 %v1298, %v1302
      %v1307 = vadd.f32 %v1299, %v1303
      %v1308 = vadd.f32 %v1300, %v1304
      %v1309 = vadd.f32 %v1301, %v1305
      %v1310 = vtanh.pop %v1306
      %v1311 = vtanh.pop %v1307
      %v1312 = vtanh.pop %v1308
      %v1313 = vtanh.pop %v1309
      %v1314 = vmul.f32 %v1248, %v1310
      %v1315 = vmul.f32 %v1263, %v1311
      %v1316 = vmul.f32 %v1278, %v1312
      %v1317 = vmul.f32 %v1293, %v1313
      %s1318 = scalar_lea.vmem [#allocation2], %s688
      %1319 = vst [vmem:[%s1318] sm:$0xff] %v1314
      %1320 = vst [vmem:[%s1318 + $0x8] sm:$0xff] %v1315
      %s1321 = scalar_lea.vmem [#allocation3], %s692
      %1322 = vst [vmem:[%s1321] sm:$0xff] %v1316
      %1323 = vst [vmem:[%s1321 + $0x8] sm:$0xff] %v1317
      %s1324 = sadd.s32 %s47, 2
      %s1325 = ssub.s32 125, %s47
      %s1326 = smul.u32 %s1324, 16
      %s1327 = scalar_lea.vmem %s0, %s1326
      %v1328 = vld [vmem:[%s1327] sm:$0xff]
      %v1329 = vld [vmem:[%s1327 + $0x8] sm:$0xff]
      %s1330 = smul.u32 %s1325, 16
      %s1331 = scalar_lea.vmem %s0, %s1330
      %v1332 = vld [vmem:[%s1331] sm:$0xff]
      %v1333 = vld [vmem:[%s1331 + $0x8] sm:$0xff]
      %v1334 = vld [vmem:[%s1] sm:$0xff]
      %v1335 = vld [vmem:[%s1 + $0x8] sm:$0xff]
      %v1336 = vld [vmem:[%s1 + $0x10] sm:$0xff]
      %v1337 = vld [vmem:[%s1 + $0x18] sm:$0xff]
      %v1338 = vld [vmem:[%s1 + $0x20] sm:$0xff]
      %v1339 = vld [vmem:[%s1 + $0x28] sm:$0xff]
      %v1340 = vld [vmem:[%s1 + $0x30] sm:$0xff]
      %v1341 = vld [vmem:[%s1 + $0x38] sm:$0xff]
      %v1342 = vld [vmem:[%s1 + $0x40] sm:$0xff]
      %v1343 = vld [vmem:[%s1 + $0x48] sm:$0xff]
      %v1344 = vld [vmem:[%s1 + $0x50] sm:$0xff]
      %v1345 = vld [vmem:[%s1 + $0x58] sm:$0xff]
      %v1346 = vld [vmem:[%s1 + $0x60] sm:$0xff]
      %v1347 = vld [vmem:[%s1 + $0x68] sm:$0xff]
      %v1348 = vld [vmem:[%s1 + $0x70] sm:$0xff]
      %v1349 = vld [vmem:[%s1 + $0x78] sm:$0xff]
      %v1350 = vld [vmem:[%s3] sm:$0xff]
      %v1351 = vld [vmem:[%s3 + $0x8] sm:$0xff]
      %v1352 = vld [vmem:[%s3 + $0x10] sm:$0xff]
      %v1353 = vld [vmem:[%s3 + $0x18] sm:$0xff]
      %v1354 = vld [vmem:[%s3 + $0x20] sm:$0xff]
      %v1355 = vld [vmem:[%s3 + $0x28] sm:$0xff]
      %v1356 = vld [vmem:[%s3 + $0x30] sm:$0xff]
      %v1357 = vld [vmem:[%s3 + $0x38] sm:$0xff]
      %v1358 = vld [vmem:[%s3 + $0x40] sm:$0xff]
      %v1359 = vld [vmem:[%s3 + $0x48] sm:$0xff]
      %v1360 = vld [vmem:[%s3 + $0x50] sm:$0xff]
      %v1361 = vld [vmem:[%s3 + $0x58] sm:$0xff]
      %v1362 = vld [vmem:[%s3 + $0x60] sm:$0xff]
      %v1363 = vld [vmem:[%s3 + $0x68] sm:$0xff]
      %v1364 = vld [vmem:[%s3 + $0x70] sm:$0xff]
      %v1365 = vld [vmem:[%s3 + $0x78] sm:$0xff]
      %1367 = vset.pattern.permute.xlu0 0
      %1368 = vperm.xlu0 %1367, %v1350
      %v1369 = vpop.permute.xlu0 %1368
      %1372 = vset.pattern.permute.xlu0 0
      %1373 = vperm.xlu0 %1372, %v1351
      %v1374 = vpop.permute.xlu0 %1373
      %1377 = vset.pattern.permute.xlu0 0
      %1378 = vperm.xlu0 %1377, %v1352
      %v1379 = vpop.permute.xlu0 %1378
      %1382 = vset.pattern.permute.xlu0 0
      %1383 = vperm.xlu0 %1382, %v1353
      %v1384 = vpop.permute.xlu0 %1383
      %1387 = vset.pattern.permute.xlu0 0
      %1388 = vperm.xlu0 %1387, %v1354
      %v1389 = vpop.permute.xlu0 %1388
      %1392 = vset.pattern.permute.xlu0 0
      %1393 = vperm.xlu0 %1392, %v1355
      %v1394 = vpop.permute.xlu0 %1393
      %1397 = vset.pattern.permute.xlu0 0
      %1398 = vperm.xlu0 %1397, %v1356
      %v1399 = vpop.permute.xlu0 %1398
      %1402 = vset.pattern.permute.xlu0 0
      %1403 = vperm.xlu0 %1402, %v1357
      %v1404 = vpop.permute.xlu0 %1403
      %1407 = vset.pattern.permute.xlu0 0
      %1408 = vperm.xlu0 %1407, %v1358
      %v1409 = vpop.permute.xlu0 %1408
      %1412 = vset.pattern.permute.xlu0 0
      %1413 = vperm.xlu0 %1412, %v1359
      %v1414 = vpop.permute.xlu0 %1413
      %1417 = vset.pattern.permute.xlu0 0
      %1418 = vperm.xlu0 %1417, %v1360
      %v1419 = vpop.permute.xlu0 %1418
      %1422 = vset.pattern.permute.xlu0 0
      %1423 = vperm.xlu0 %1422, %v1361
      %v1424 = vpop.permute.xlu0 %1423
      %1427 = vset.pattern.permute.xlu0 0
      %1428 = vperm.xlu0 %1427, %v1362
      %v1429 = vpop.permute.xlu0 %1428
      %1432 = vset.pattern.permute.xlu0 0
      %1433 = vperm.xlu0 %1432, %v1363
      %v1434 = vpop.permute.xlu0 %1433
      %1437 = vset.pattern.permute.xlu0 0
      %1438 = vperm.xlu0 %1437, %v1364
      %v1439 = vpop.permute.xlu0 %1438
      %1442 = vset.pattern.permute.xlu0 0
      %1443 = vperm.xlu0 %1442, %v1365
      %v1444 = vpop.permute.xlu0 %1443
      %v1447 = vsel %vm169, %v1334, 0
      %v1450 = vsel %vm169, %v1335, 0
      %v1453 = vsel %vm169, %v1336, 0
      %v1456 = vsel %vm169, %v1337, 0
      %v1459 = vsel %vm169, %v1338, 0
      %v1462 = vsel %vm169, %v1339, 0
      %v1465 = vsel %vm169, %v1340, 0
      %v1468 = vsel %vm169, %v1341, 0
      %v1471 = vsel %vm169, %v1342, 0
      %v1474 = vsel %vm169, %v1343, 0
      %v1477 = vsel %vm169, %v1344, 0
      %v1480 = vsel %vm169, %v1345, 0
      %v1483 = vsel %vm169, %v1346, 0
      %v1486 = vsel %vm169, %v1347, 0
      %v1489 = vsel %vm169, %v1348, 0
      %v1492 = vsel %vm169, %v1349, 0
      %1494 = vmatpush.msra.mxu0 0.0
      %1495 = vmatpush.msra.mxu0 0.0
      %1496 = vmatpush.msra.mxu0 0.0
      %1497 = vmatpush.msra.mxu0 0.0
      %1498 = vmatpush.msra.mxu0 0.0
      %1499 = vmatpush.msra.mxu0 0.0
      %1500 = vmatpush.msra.mxu0 0.0
      %1501 = vmatpush.msra.mxu0 0.0
      %1502 = vmatpush.msra.mxu0 0.0
      %1503 = vmatpush.msra.mxu0 0.0
      %1504 = vmatpush.msra.mxu0 0.0
      %1505 = vmatpush.msra.mxu0 0.0
      %1506 = vmatpush.msra.mxu0 %v1333
      %1507 = vmatpush.msra.mxu0 %v1332
      %1508 = vmatpush.msra.mxu0 %v1329
      %1509 = vmatpush.msra.mxu0 %v1328
      %1510 = vmatmul.f32.gmra.mxu0 %v1447
      %v1511 = vpop.f32.mrf.mxu0
      %v1512 = vadd.f32 %v1369, %v1511
      %1513 = vmatmul.f32.gmra.mxu0 %v1450
      %v1514 = vpop.f32.mrf.mxu0
      %v1515 = vadd.f32 %v1374, %v1514
      %1516 = vmatmul.f32.gmra.mxu0 %v1453
      %v1517 = vpop.f32.mrf.mxu0
      %v1518 = vadd.f32 %v1379, %v1517
      %1519 = vmatmul.f32.gmra.mxu0 %v1456
      %v1520 = vpop.f32.mrf.mxu0
      %v1521 = vadd.f32 %v1384, %v1520
      %1522 = vmatmul.f32.gmra.mxu0 %v1459
      %v1523 = vpop.f32.mrf.mxu0
      %v1524 = vadd.f32 %v1389, %v1523
      %1525 = vmatmul.f32.gmra.mxu0 %v1462
      %v1526 = vpop.f32.mrf.mxu0
      %v1527 = vadd.f32 %v1394, %v1526
      %1528 = vmatmul.f32.gmra.mxu0 %v1465
      %v1529 = vpop.f32.mrf.mxu0
      %v1530 = vadd.f32 %v1399, %v1529
      %1531 = vmatmul.f32.gmra.mxu0 %v1468
      %v1532 = vpop.f32.mrf.mxu0
      %v1533 = vadd.f32 %v1404, %v1532
      %1534 = vmatmul.f32.gmra.mxu0 %v1471
      %v1535 = vpop.f32.mrf.mxu0
      %v1536 = vadd.f32 %v1409, %v1535
      %1537 = vmatmul.f32.gmra.mxu0 %v1474
      %v1538 = vpop.f32.mrf.mxu0
      %v1539 = vadd.f32 %v1414, %v1538
      %1540 = vmatmul.f32.gmra.mxu0 %v1477
      %v1541 = vpop.f32.mrf.mxu0
      %v1542 = vadd.f32 %v1419, %v1541
      %1543 = vmatmul.f32.gmra.mxu0 %v1480
      %v1544 = vpop.f32.mrf.mxu0
      %v1545 = vadd.f32 %v1424, %v1544
      %1546 = vmatmul.f32.gmra.mxu0 %v1483
      %v1547 = vpop.f32.mrf.mxu0
      %v1548 = vadd.f32 %v1429, %v1547
      %1549 = vmatmul.f32.gmra.mxu0 %v1486
      %v1550 = vpop.f32.mrf.mxu0
      %v1551 = vadd.f32 %v1434, %v1550
      %1552 = vmatmul.f32.gmra.mxu0 %v1489
      %v1553 = vpop.f32.mrf.mxu0
      %v1554 = vadd.f32 %v1439, %v1553
      %1555 = vmatmul.f32.gmra.mxu0 %v1492
      %v1556 = vpop.f32.mrf.mxu0
      %v1557 = vadd.f32 %v1444, %v1556
      %1558 = vdwg.mxu0
      %v1559 = vld [vmem:[%s2] sm:$0xff]
      %v1560 = vld [vmem:[%s2 + $0x8] sm:$0xff]
      %v1561 = vld [vmem:[%s2 + $0x10] sm:$0xff]
      %v1562 = vld [vmem:[%s2 + $0x18] sm:$0xff]
      %v1563 = vld [vmem:[%s2 + $0x20] sm:$0xff]
      %v1564 = vld [vmem:[%s2 + $0x28] sm:$0xff]
      %v1565 = vld [vmem:[%s2 + $0x30] sm:$0xff]
      %v1566 = vld [vmem:[%s2 + $0x38] sm:$0xff]
      %v1567 = vld [vmem:[%s2 + $0x40] sm:$0xff]
      %v1568 = vld [vmem:[%s2 + $0x48] sm:$0xff]
      %v1569 = vld [vmem:[%s2 + $0x50] sm:$0xff]
      %v1570 = vld [vmem:[%s2 + $0x58] sm:$0xff]
      %v1571 = vld [vmem:[%s2 + $0x60] sm:$0xff]
      %v1572 = vld [vmem:[%s2 + $0x68] sm:$0xff]
      %v1573 = vld [vmem:[%s2 + $0x70] sm:$0xff]
      %v1574 = vld [vmem:[%s2 + $0x78] sm:$0xff]
      %v1576 = vsel %vm169, %v1559, 0
      %v1579 = vsel %vm169, %v1560, 0
      %v1582 = vsel %vm169, %v1561, 0
      %v1585 = vsel %vm169, %v1562, 0
      %v1588 = vsel %vm169, %v1563, 0
      %v1591 = vsel %vm169, %v1564, 0
      %v1594 = vsel %vm169, %v1565, 0
      %v1597 = vsel %vm169, %v1566, 0
      %v1600 = vsel %vm169, %v1567, 0
      %v1603 = vsel %vm169, %v1568, 0
      %v1606 = vsel %vm169, %v1569, 0
      %v1609 = vsel %vm169, %v1570, 0
      %v1612 = vsel %vm169, %v1571, 0
      %v1615 = vsel %vm169, %v1572, 0
      %v1618 = vsel %vm169, %v1573, 0
      %v1621 = vsel %vm169, %v1574, 0
      %1623 = vmatpush.msra.mxu0 0.0
      %1624 = vmatpush.msra.mxu0 0.0
      %1625 = vmatpush.msra.mxu0 0.0
      %1626 = vmatpush.msra.mxu0 0.0
      %1627 = vmatpush.msra.mxu0 0.0
      %1628 = vmatpush.msra.mxu0 0.0
      %1629 = vmatpush.msra.mxu0 0.0
      %1630 = vmatpush.msra.mxu0 0.0
      %1631 = vmatpush.msra.mxu0 0.0
      %1632 = vmatpush.msra.mxu0 0.0
      %1633 = vmatpush.msra.mxu0 0.0
      %1634 = vmatpush.msra.mxu0 0.0
      %1635 = vmatpush.msra.mxu0 %v1317
      %1636 = vmatpush.msra.mxu0 %v1316
      %1637 = vmatpush.msra.mxu0 %v1315
      %1638 = vmatpush.msra.mxu0 %v1314
      %1639 = vmatmul.f32.gmra.mxu0 %v1576
      %v1640 = vpop.f32.mrf.mxu0
      %v1641 = vadd.f32 0.0, %v1640
      %1642 = vmatmul.f32.gmra.mxu0 %v1579
      %v1643 = vpop.f32.mrf.mxu0
      %v1644 = vadd.f32 0.0, %v1643
      %1645 = vmatmul.f32.gmra.mxu0 %v1582
      %v1646 = vpop.f32.mrf.mxu0
      %v1647 = vadd.f32 0.0, %v1646
      %1648 = vmatmul.f32.gmra.mxu0 %v1585
      %v1649 = vpop.f32.mrf.mxu0
      %v1650 = vadd.f32 0.0, %v1649
      %1651 = vmatmul.f32.gmra.mxu0 %v1588
      %v1652 = vpop.f32.mrf.mxu0
      %v1653 = vadd.f32 0.0, %v1652
      %1654 = vmatmul.f32.gmra.mxu0 %v1591
      %v1655 = vpop.f32.mrf.mxu0
      %v1656 = vadd.f32 0.0, %v1655
      %1657 = vmatmul.f32.gmra.mxu0 %v1594
      %v1658 = vpop.f32.mrf.mxu0
      %v1659 = vadd.f32 0.0, %v1658
      %1660 = vmatmul.f32.gmra.mxu0 %v1597
      %v1661 = vpop.f32.mrf.mxu0
      %v1662 = vadd.f32 0.0, %v1661
      %1663 = vmatmul.f32.gmra.mxu0 %v1600
      %v1664 = vpop.f32.mrf.mxu0
      %v1665 = vadd.f32 0.0, %v1664
      %1666 = vmatmul.f32.gmra.mxu0 %v1603
      %v1667 = vpop.f32.mrf.mxu0
      %v1668 = vadd.f32 0.0, %v1667
      %1669 = vmatmul.f32.gmra.mxu0 %v1606
      %v1670 = vpop.f32.mrf.mxu0
      %v1671 = vadd.f32 0.0, %v1670
      %1672 = vmatmul.f32.gmra.mxu0 %v1609
      %v1673 = vpop.f32.mrf.mxu0
      %v1674 = vadd.f32 0.0, %v1673
      %1675 = vmatmul.f32.gmra.mxu0 %v1612
      %v1676 = vpop.f32.mrf.mxu0
      %v1677 = vadd.f32 0.0, %v1676
      %1678 = vmatmul.f32.gmra.mxu0 %v1615
      %v1679 = vpop.f32.mrf.mxu0
      %v1680 = vadd.f32 0.0, %v1679
      %1681 = vmatmul.f32.gmra.mxu0 %v1618
      %v1682 = vpop.f32.mrf.mxu0
      %v1683 = vadd.f32 0.0, %v1682
      %1684 = vmatmul.f32.gmra.mxu0 %v1621
      %v1685 = vpop.f32.mrf.mxu0
      %v1686 = vadd.f32 0.0, %v1685
      %1687 = vdwg.mxu0
      %v1688 = vadd.f32 %v1512, %v1641
      %v1689 = vadd.f32 %v1515, %v1644
      %v1690 = vadd.f32 %v1518, %v1647
      %v1691 = vadd.f32 %v1521, %v1650
      %v1692 = vadd.f32 %v1524, %v1653
      %v1693 = vadd.f32 %v1527, %v1656
      %v1694 = vadd.f32 %v1530, %v1659
      %v1695 = vadd.f32 %v1533, %v1662
      %v1696 = vadd.f32 %v1536, %v1665
      %v1697 = vadd.f32 %v1539, %v1668
      %v1698 = vadd.f32 %v1542, %v1671
      %v1699 = vadd.f32 %v1545, %v1674
      %v1700 = vadd.f32 %v1548, %v1677
      %v1701 = vadd.f32 %v1551, %v1680
      %v1702 = vadd.f32 %v1554, %v1683
      %v1703 = vadd.f32 %v1557, %v1686
      %v1704 = vxor.u32 %v1688, 2147483648
      %v1705 = vxor.u32 %v1689, 2147483648
      %v1706 = vxor.u32 %v1690, 2147483648
      %v1707 = vxor.u32 %v1691, 2147483648
      %v1708 = vxor.u32 %v1692, 2147483648
      %v1709 = vxor.u32 %v1693, 2147483648
      %v1710 = vxor.u32 %v1694, 2147483648
      %v1711 = vxor.u32 %v1695, 2147483648
      %v1712 = vxor.u32 %v1696, 2147483648
      %v1713 = vxor.u32 %v1697, 2147483648
      %v1714 = vxor.u32 %v1698, 2147483648
      %v1715 = vxor.u32 %v1699, 2147483648
      %v1716 = vmul.f32 %v1704, 1.442695
      %v1717 = vpow.pop %v1716
      %v1718 = vmul.f32 %v1705, 1.442695
      %v1719 = vpow.pop %v1718
      %v1720 = vmul.f32 %v1706, 1.442695
      %v1721 = vpow.pop %v1720
      %v1722 = vmul.f32 %v1707, 1.442695
      %v1723 = vpow.pop %v1722
      %v1724 = vmul.f32 %v1708, 1.442695
      %v1725 = vpow.pop %v1724
      %v1726 = vmul.f32 %v1709, 1.442695
      %v1727 = vpow.pop %v1726
      %v1728 = vmul.f32 %v1710, 1.442695
      %v1729 = vpow.pop %v1728
      %v1730 = vmul.f32 %v1711, 1.442695
      %v1731 = vpow.pop %v1730
      %v1732 = vmul.f32 %v1712, 1.442695
      %v1733 = vpow.pop %v1732
      %v1734 = vmul.f32 %v1713, 1.442695
      %v1735 = vpow.pop %v1734
      %v1736 = vmul.f32 %v1714, 1.442695
      %v1737 = vpow.pop %v1736
      %v1738 = vmul.f32 %v1715, 1.442695
      %v1739 = vpow.pop %v1738
      %v1740 = vadd.f32 %v1717, 1.0
      %v1741 = vadd.f32 %v1719, 1.0
      %v1742 = vadd.f32 %v1721, 1.0
      %v1743 = vadd.f32 %v1723, 1.0
      %v1744 = vadd.f32 %v1725, 1.0
      %v1745 = vadd.f32 %v1727, 1.0
      %v1746 = vadd.f32 %v1729, 1.0
      %v1747 = vadd.f32 %v1731, 1.0
      %v1748 = vadd.f32 %v1733, 1.0
      %v1749 = vadd.f32 %v1735, 1.0
      %v1750 = vadd.f32 %v1737, 1.0
      %v1751 = vadd.f32 %v1739, 1.0
      %v1752 = vrcp.pop %v1740
      %v1753 = vmul.f32 %v1740, %v1752
      %v1754 = vsub.f32 1.0, %v1753
      %v1755 = vmul.f32 %v1752, %v1754
      %v1756 = vadd.f32 %v1752, %v1755
      %vm1757 = vweird.f32 %v1740
      %vm1758 = vweird.f32 %v1752
      %vm1759 = vmor %vm1757, %vm1758
      %v1760 = vsel %vm1759, %v1752, %v1756
      %v1761 = vand.u32 2147483647, %v1740
      %vm1762 = vcmp.eq.f32.partialorder %v1761, 8.507059e+37
      %v1763 = vand.u32 %v1740, 2147483648
      %v1764 = vor.u32 1.1754944e-38, %v1763
      %v1765 = vsel %vm1762, %v1764, %v1760
      %v1766 = vmul.f32 1.0, %v1765
      %v1767 = vrcp.pop %v1741
      %v1768 = vmul.f32 %v1741, %v1767
      %v1769 = vsub.f32 1.0, %v1768
      %v1770 = vmul.f32 %v1767, %v1769
      %v1771 = vadd.f32 %v1767, %v1770
      %vm1772 = vweird.f32 %v1741
      %vm1773 = vweird.f32 %v1767
      %vm1774 = vmor %vm1772, %vm1773
      %v1775 = vsel %vm1774, %v1767, %v1771
      %v1776 = vand.u32 2147483647, %v1741
      %vm1777 = vcmp.eq.f32.partialorder %v1776, 8.507059e+37
      %v1778 = vand.u32 %v1741, 2147483648
      %v1779 = vor.u32 1.1754944e-38, %v1778
      %v1780 = vsel %vm1777, %v1779, %v1775
      %v1781 = vmul.f32 1.0, %v1780
      %v1782 = vrcp.pop %v1742
      %v1783 = vmul.f32 %v1742, %v1782
      %v1784 = vsub.f32 1.0, %v1783
      %v1785 = vmul.f32 %v1782, %v1784
      %v1786 = vadd.f32 %v1782, %v1785
      %vm1787 = vweird.f32 %v1742
      %vm1788 = vweird.f32 %v1782
      %vm1789 = vmor %vm1787, %vm1788
      %v1790 = vsel %vm1789, %v1782, %v1786
      %v1791 = vand.u32 2147483647, %v1742
      %vm1792 = vcmp.eq.f32.partialorder %v1791, 8.507059e+37
      %v1793 = vand.u32 %v1742, 2147483648
      %v1794 = vor.u32 1.1754944e-38, %v1793
      %v1795 = vsel %vm1792, %v1794, %v1790
      %v1796 = vmul.f32 1.0, %v1795
      %v1797 = vrcp.pop %v1743
      %v1798 = vmul.f32 %v1743, %v1797
      %v1799 = vsub.f32 1.0, %v1798
      %v1800 = vmul.f32 %v1797, %v1799
      %v1801 = vadd.f32 %v1797, %v1800
      %vm1802 = vweird.f32 %v1743
      %vm1803 = vweird.f32 %v1797
      %vm1804 = vmor %vm1802, %vm1803
      %v1805 = vsel %vm1804, %v1797, %v1801
      %v1806 = vand.u32 2147483647, %v1743
      %vm1807 = vcmp.eq.f32.partialorder %v1806, 8.507059e+37
      %v1808 = vand.u32 %v1743, 2147483648
      %v1809 = vor.u32 1.1754944e-38, %v1808
      %v1810 = vsel %vm1807, %v1809, %v1805
      %v1811 = vmul.f32 1.0, %v1810
      %v1812 = vrcp.pop %v1744
      %v1813 = vmul.f32 %v1744, %v1812
      %v1814 = vsub.f32 1.0, %v1813
      %v1815 = vmul.f32 %v1812, %v1814
      %v1816 = vadd.f32 %v1812, %v1815
      %vm1817 = vweird.f32 %v1744
      %vm1818 = vweird.f32 %v1812
      %vm1819 = vmor %vm1817, %vm1818
      %v1820 = vsel %vm1819, %v1812, %v1816
      %v1821 = vand.u32 2147483647, %v1744
      %vm1822 = vcmp.eq.f32.partialorder %v1821, 8.507059e+37
      %v1823 = vand.u32 %v1744, 2147483648
      %v1824 = vor.u32 1.1754944e-38, %v1823
      %v1825 = vsel %vm1822, %v1824, %v1820
      %v1826 = vmul.f32 1.0, %v1825
      %v1827 = vrcp.pop %v1745
      %v1828 = vmul.f32 %v1745, %v1827
      %v1829 = vsub.f32 1.0, %v1828
      %v1830 = vmul.f32 %v1827, %v1829
      %v1831 = vadd.f32 %v1827, %v1830
      %vm1832 = vweird.f32 %v1745
      %vm1833 = vweird.f32 %v1827
      %vm1834 = vmor %vm1832, %vm1833
      %v1835 = vsel %vm1834, %v1827, %v1831
      %v1836 = vand.u32 2147483647, %v1745
      %vm1837 = vcmp.eq.f32.partialorder %v1836, 8.507059e+37
      %v1838 = vand.u32 %v1745, 2147483648
      %v1839 = vor.u32 1.1754944e-38, %v1838
      %v1840 = vsel %vm1837, %v1839, %v1835
      %v1841 = vmul.f32 1.0, %v1840
      %v1842 = vrcp.pop %v1746
      %v1843 = vmul.f32 %v1746, %v1842
      %v1844 = vsub.f32 1.0, %v1843
      %v1845 = vmul.f32 %v1842, %v1844
      %v1846 = vadd.f32 %v1842, %v1845
      %vm1847 = vweird.f32 %v1746
      %vm1848 = vweird.f32 %v1842
      %vm1849 = vmor %vm1847, %vm1848
      %v1850 = vsel %vm1849, %v1842, %v1846
      %v1851 = vand.u32 2147483647, %v1746
      %vm1852 = vcmp.eq.f32.partialorder %v1851, 8.507059e+37
      %v1853 = vand.u32 %v1746, 2147483648
      %v1854 = vor.u32 1.1754944e-38, %v1853
      %v1855 = vsel %vm1852, %v1854, %v1850
      %v1856 = vmul.f32 1.0, %v1855
      %v1857 = vrcp.pop %v1747
      %v1858 = vmul.f32 %v1747, %v1857
      %v1859 = vsub.f32 1.0, %v1858
      %v1860 = vmul.f32 %v1857, %v1859
      %v1861 = vadd.f32 %v1857, %v1860
      %vm1862 = vweird.f32 %v1747
      %vm1863 = vweird.f32 %v1857
      %vm1864 = vmor %vm1862, %vm1863
      %v1865 = vsel %vm1864, %v1857, %v1861
      %v1866 = vand.u32 2147483647, %v1747
      %vm1867 = vcmp.eq.f32.partialorder %v1866, 8.507059e+37
      %v1868 = vand.u32 %v1747, 2147483648
      %v1869 = vor.u32 1.1754944e-38, %v1868
      %v1870 = vsel %vm1867, %v1869, %v1865
      %v1871 = vmul.f32 1.0, %v1870
      %v1872 = vrcp.pop %v1748
      %v1873 = vmul.f32 %v1748, %v1872
      %v1874 = vsub.f32 1.0, %v1873
      %v1875 = vmul.f32 %v1872, %v1874
      %v1876 = vadd.f32 %v1872, %v1875
      %vm1877 = vweird.f32 %v1748
      %vm1878 = vweird.f32 %v1872
      %vm1879 = vmor %vm1877, %vm1878
      %v1880 = vsel %vm1879, %v1872, %v1876
      %v1881 = vand.u32 2147483647, %v1748
      %vm1882 = vcmp.eq.f32.partialorder %v1881, 8.507059e+37
      %v1883 = vand.u32 %v1748, 2147483648
      %v1884 = vor.u32 1.1754944e-38, %v1883
      %v1885 = vsel %vm1882, %v1884, %v1880
      %v1886 = vmul.f32 1.0, %v1885
      %v1887 = vrcp.pop %v1749
      %v1888 = vmul.f32 %v1749, %v1887
      %v1889 = vsub.f32 1.0, %v1888
      %v1890 = vmul.f32 %v1887, %v1889
      %v1891 = vadd.f32 %v1887, %v1890
      %vm1892 = vweird.f32 %v1749
      %vm1893 = vweird.f32 %v1887
      %vm1894 = vmor %vm1892, %vm1893
      %v1895 = vsel %vm1894, %v1887, %v1891
      %v1896 = vand.u32 2147483647, %v1749
      %vm1897 = vcmp.eq.f32.partialorder %v1896, 8.507059e+37
      %v1898 = vand.u32 %v1749, 2147483648
      %v1899 = vor.u32 1.1754944e-38, %v1898
      %v1900 = vsel %vm1897, %v1899, %v1895
      %v1901 = vmul.f32 1.0, %v1900
      %v1902 = vrcp.pop %v1750
      %v1903 = vmul.f32 %v1750, %v1902
      %v1904 = vsub.f32 1.0, %v1903
      %v1905 = vmul.f32 %v1902, %v1904
      %v1906 = vadd.f32 %v1902, %v1905
      %vm1907 = vweird.f32 %v1750
      %vm1908 = vweird.f32 %v1902
      %vm1909 = vmor %vm1907, %vm1908
      %v1910 = vsel %vm1909, %v1902, %v1906
      %v1911 = vand.u32 2147483647, %v1750
      %vm1912 = vcmp.eq.f32.partialorder %v1911, 8.507059e+37
      %v1913 = vand.u32 %v1750, 2147483648
      %v1914 = vor.u32 1.1754944e-38, %v1913
      %v1915 = vsel %vm1912, %v1914, %v1910
      %v1916 = vmul.f32 1.0, %v1915
      %v1917 = vrcp.pop %v1751
      %v1918 = vmul.f32 %v1751, %v1917
      %v1919 = vsub.f32 1.0, %v1918
      %v1920 = vmul.f32 %v1917, %v1919
      %v1921 = vadd.f32 %v1917, %v1920
      %vm1922 = vweird.f32 %v1751
      %vm1923 = vweird.f32 %v1917
      %vm1924 = vmor %vm1922, %vm1923
      %v1925 = vsel %vm1924, %v1917, %v1921
      %v1926 = vand.u32 2147483647, %v1751
      %vm1927 = vcmp.eq.f32.partialorder %v1926, 8.507059e+37
      %v1928 = vand.u32 %v1751, 2147483648
      %v1929 = vor.u32 1.1754944e-38, %v1928
      %v1930 = vsel %vm1927, %v1929, %v1925
      %v1931 = vmul.f32 1.0, %v1930
      %v1932 = vtanh.pop %v1700
      %v1933 = vtanh.pop %v1701
      %v1934 = vtanh.pop %v1702
      %v1935 = vtanh.pop %v1703
      %v1936 = vmul.f32 %v1826, %v1306
      %v1937 = vmul.f32 %v1841, %v1307
      %v1938 = vmul.f32 %v1856, %v1308
      %v1939 = vmul.f32 %v1871, %v1309
      %v1940 = vmul.f32 %v1766, %v1932
      %v1941 = vmul.f32 %v1781, %v1933
      %v1942 = vmul.f32 %v1796, %v1934
      %v1943 = vmul.f32 %v1811, %v1935
      %v1944 = vadd.f32 %v1936, %v1940
      %v1945 = vadd.f32 %v1937, %v1941
      %v1946 = vadd.f32 %v1938, %v1942
      %v1947 = vadd.f32 %v1939, %v1943
      %v1948 = vtanh.pop %v1944
      %v1949 = vtanh.pop %v1945
      %v1950 = vtanh.pop %v1946
      %v1951 = vtanh.pop %v1947
      %v1952 = vmul.f32 %v1886, %v1948
      %v1953 = vmul.f32 %v1901, %v1949
      %v1954 = vmul.f32 %v1916, %v1950
      %v1955 = vmul.f32 %v1931, %v1951
      %s1956 = scalar_lea.vmem [#allocation2], %s1326
      %1957 = vst [vmem:[%s1956] sm:$0xff] %v1952
      %1958 = vst [vmem:[%s1956 + $0x8] sm:$0xff] %v1953
      %s1959 = scalar_lea.vmem [#allocation3], %s1330
      %1960 = vst [vmem:[%s1959] sm:$0xff] %v1954
      %1961 = vst [vmem:[%s1959 + $0x8] sm:$0xff] %v1955
      %s1962 = sadd.s32 %s47, 3
      %s1963 = ssub.s32 124, %s47
      %s1964 = smul.u32 %s1962, 16
      %s1965 = scalar_lea.vmem %s0, %s1964
      %v1966 = vld [vmem:[%s1965] sm:$0xff]
      %v1967 = vld [vmem:[%s1965 + $0x8] sm:$0xff]
      %s1968 = smul.u32 %s1963, 16
      %s1969 = scalar_lea.vmem %s0, %s1968
      %v1970 = vld [vmem:[%s1969] sm:$0xff]
      %v1971 = vld [vmem:[%s1969 + $0x8] sm:$0xff]
      %v1972 = vld [vmem:[%s1] sm:$0xff]
      %v1973 = vld [vmem:[%s1 + $0x8] sm:$0xff]
      %v1974 = vld [vmem:[%s1 + $0x10] sm:$0xff]
      %v1975 = vld [vmem:[%s1 + $0x18] sm:$0xff]
      %v1976 = vld [vmem:[%s1 + $0x20] sm:$0xff]
      %v1977 = vld [vmem:[%s1 + $0x28] sm:$0xff]
      %v1978 = vld [vmem:[%s1 + $0x30] sm:$0xff]
      %v1979 = vld [vmem:[%s1 + $0x38] sm:$0xff]
      %v1980 = vld [vmem:[%s1 + $0x40] sm:$0xff]
      %v1981 = vld [vmem:[%s1 + $0x48] sm:$0xff]
      %v1982 = vld [vmem:[%s1 + $0x50] sm:$0xff]
      %v1983 = vld [vmem:[%s1 + $0x58] sm:$0xff]
      %v1984 = vld [vmem:[%s1 + $0x60] sm:$0xff]
      %v1985 = vld [vmem:[%s1 + $0x68] sm:$0xff]
      %v1986 = vld [vmem:[%s1 + $0x70] sm:$0xff]
      %v1987 = vld [vmem:[%s1 + $0x78] sm:$0xff]
      %v1988 = vld [vmem:[%s3] sm:$0xff]
      %v1989 = vld [vmem:[%s3 + $0x8] sm:$0xff]
      %v1990 = vld [vmem:[%s3 + $0x10] sm:$0xff]
      %v1991 = vld [vmem:[%s3 + $0x18] sm:$0xff]
      %v1992 = vld [vmem:[%s3 + $0x20] sm:$0xff]
      %v1993 = vld [vmem:[%s3 + $0x28] sm:$0xff]
      %v1994 = vld [vmem:[%s3 + $0x30] sm:$0xff]
      %v1995 = vld [vmem:[%s3 + $0x38] sm:$0xff]
      %v1996 = vld [vmem:[%s3 + $0x40] sm:$0xff]
      %v1997 = vld [vmem:[%s3 + $0x48] sm:$0xff]
      %v1998 = vld [vmem:[%s3 + $0x50] sm:$0xff]
      %v1999 = vld [vmem:[%s3 + $0x58] sm:$0xff]
      %v2000 = vld [vmem:[%s3 + $0x60] sm:$0xff]
      %v2001 = vld [vmem:[%s3 + $0x68] sm:$0xff]
      %v2002 = vld [vmem:[%s3 + $0x70] sm:$0xff]
      %v2003 = vld [vmem:[%s3 + $0x78] sm:$0xff]
      %2005 = vset.pattern.permute.xlu0 0
      %2006 = vperm.xlu0 %2005, %v1988
      %v2007 = vpop.permute.xlu0 %2006
      %2010 = vset.pattern.permute.xlu0 0
      %2011 = vperm.xlu0 %2010, %v1989
      %v2012 = vpop.permute.xlu0 %2011
      %2015 = vset.pattern.permute.xlu0 0
      %2016 = vperm.xlu0 %2015, %v1990
      %v2017 = vpop.permute.xlu0 %2016
      %2020 = vset.pattern.permute.xlu0 0
      %2021 = vperm.xlu0 %2020, %v1991
      %v2022 = vpop.permute.xlu0 %2021
      %2025 = vset.pattern.permute.xlu0 0
      %2026 = vperm.xlu0 %2025, %v1992
      %v2027 = vpop.permute.xlu0 %2026
      %2030 = vset.pattern.permute.xlu0 0
      %2031 = vperm.xlu0 %2030, %v1993
      %v2032 = vpop.permute.xlu0 %2031
      %2035 = vset.pattern.permute.xlu0 0
      %2036 = vperm.xlu0 %2035, %v1994
      %v2037 = vpop.permute.xlu0 %2036
      %2040 = vset.pattern.permute.xlu0 0
      %2041 = vperm.xlu0 %2040, %v1995
      %v2042 = vpop.permute.xlu0 %2041
      %2045 = vset.pattern.permute.xlu0 0
      %2046 = vperm.xlu0 %2045, %v1996
      %v2047 = vpop.permute.xlu0 %2046
      %2050 = vset.pattern.permute.xlu0 0
      %2051 = vperm.xlu0 %2050, %v1997
      %v2052 = vpop.permute.xlu0 %2051
      %2055 = vset.pattern.permute.xlu0 0
      %2056 = vperm.xlu0 %2055, %v1998
      %v2057 = vpop.permute.xlu0 %2056
      %2060 = vset.pattern.permute.xlu0 0
      %2061 = vperm.xlu0 %2060, %v1999
      %v2062 = vpop.permute.xlu0 %2061
      %2065 = vset.pattern.permute.xlu0 0
      %2066 = vperm.xlu0 %2065, %v2000
      %v2067 = vpop.permute.xlu0 %2066
      %2070 = vset.pattern.permute.xlu0 0
      %2071 = vperm.xlu0 %2070, %v2001
      %v2072 = vpop.permute.xlu0 %2071
      %2075 = vset.pattern.permute.xlu0 0
      %2076 = vperm.xlu0 %2075, %v2002
      %v2077 = vpop.permute.xlu0 %2076
      %2080 = vset.pattern.permute.xlu0 0
      %2081 = vperm.xlu0 %2080, %v2003
      %v2082 = vpop.permute.xlu0 %2081
      %v2085 = vsel %vm169, %v1972, 0
      %v2088 = vsel %vm169, %v1973, 0
      %v2091 = vsel %vm169, %v1974, 0
      %v2094 = vsel %vm169, %v1975, 0
      %v2097 = vsel %vm169, %v1976, 0
      %v2100 = vsel %vm169, %v1977, 0
      %v2103 = vsel %vm169, %v1978, 0
      %v2106 = vsel %vm169, %v1979, 0
      %v2109 = vsel %vm169, %v1980, 0
      %v2112 = vsel %vm169, %v1981, 0
      %v2115 = vsel %vm169, %v1982, 0
      %v2118 = vsel %vm169, %v1983, 0
      %v2121 = vsel %vm169, %v1984, 0
      %v2124 = vsel %vm169, %v1985, 0
      %v2127 = vsel %vm169, %v1986, 0
      %v2130 = vsel %vm169, %v1987, 0
      %2132 = vmatpush.msra.mxu0 0.0
      %2133 = vmatpush.msra.mxu0 0.0
      %2134 = vmatpush.msra.mxu0 0.0
      %2135 = vmatpush.msra.mxu0 0.0
      %2136 = vmatpush.msra.mxu0 0.0
      %2137 = vmatpush.msra.mxu0 0.0
      %2138 = vmatpush.msra.mxu0 0.0
      %2139 = vmatpush.msra.mxu0 0.0
      %2140 = vmatpush.msra.mxu0 0.0
      %2141 = vmatpush.msra.mxu0 0.0
      %2142 = vmatpush.msra.mxu0 0.0
      %2143 = vmatpush.msra.mxu0 0.0
      %2144 = vmatpush.msra.mxu0 %v1971
      %2145 = vmatpush.msra.mxu0 %v1970
      %2146 = vmatpush.msra.mxu0 %v1967
      %2147 = vmatpush.msra.mxu0 %v1966
      %2148 = vmatmul.f32.gmra.mxu0 %v2085
      %v2149 = vpop.f32.mrf.mxu0
      %v2150 = vadd.f32 %v2007, %v2149
      %2151 = vmatmul.f32.gmra.mxu0 %v2088
      %v2152 = vpop.f32.mrf.mxu0
      %v2153 = vadd.f32 %v2012, %v2152
      %2154 = vmatmul.f32.gmra.mxu0 %v2091
      %v2155 = vpop.f32.mrf.mxu0
      %v2156 = vadd.f32 %v2017, %v2155
      %2157 = vmatmul.f32.gmra.mxu0 %v2094
      %v2158 = vpop.f32.mrf.mxu0
      %v2159 = vadd.f32 %v2022, %v2158
      %2160 = vmatmul.f32.gmra.mxu0 %v2097
      %v2161 = vpop.f32.mrf.mxu0
      %v2162 = vadd.f32 %v2027, %v2161
      %2163 = vmatmul.f32.gmra.mxu0 %v2100
      %v2164 = vpop.f32.mrf.mxu0
      %v2165 = vadd.f32 %v2032, %v2164
      %2166 = vmatmul.f32.gmra.mxu0 %v2103
      %v2167 = vpop.f32.mrf.mxu0
      %v2168 = vadd.f32 %v2037, %v2167
      %2169 = vmatmul.f32.gmra.mxu0 %v2106
      %v2170 = vpop.f32.mrf.mxu0
      %v2171 = vadd.f32 %v2042, %v2170
      %2172 = vmatmul.f32.gmra.mxu0 %v2109
      %v2173 = vpop.f32.mrf.mxu0
      %v2174 = vadd.f32 %v2047, %v2173
      %2175 = vmatmul.f32.gmra.mxu0 %v2112
      %v2176 = vpop.f32.mrf.mxu0
      %v2177 = vadd.f32 %v2052, %v2176
      %2178 = vmatmul.f32.gmra.mxu0 %v2115
      %v2179 = vpop.f32.mrf.mxu0
      %v2180 = vadd.f32 %v2057, %v2179
      %2181 = vmatmul.f32.gmra.mxu0 %v2118
      %v2182 = vpop.f32.mrf.mxu0
      %v2183 = vadd.f32 %v2062, %v2182
      %2184 = vmatmul.f32.gmra.mxu0 %v2121
      %v2185 = vpop.f32.mrf.mxu0
      %v2186 = vadd.f32 %v2067, %v2185
      %2187 = vmatmul.f32.gmra.mxu0 %v2124
      %v2188 = vpop.f32.mrf.mxu0
      %v2189 = vadd.f32 %v2072, %v2188
      %2190 = vmatmul.f32.gmra.mxu0 %v2127
      %v2191 = vpop.f32.mrf.mxu0
      %v2192 = vadd.f32 %v2077, %v2191
      %2193 = vmatmul.f32.gmra.mxu0 %v2130
      %v2194 = vpop.f32.mrf.mxu0
      %v2195 = vadd.f32 %v2082, %v2194
      %2196 = vdwg.mxu0
      %v2197 = vld [vmem:[%s2] sm:$0xff]
      %v2198 = vld [vmem:[%s2 + $0x8] sm:$0xff]
      %v2199 = vld [vmem:[%s2 + $0x10] sm:$0xff]
      %v2200 = vld [vmem:[%s2 + $0x18] sm:$0xff]
      %v2201 = vld [vmem:[%s2 + $0x20] sm:$0xff]
      %v2202 = vld [vmem:[%s2 + $0x28] sm:$0xff]
      %v2203 = vld [vmem:[%s2 + $0x30] sm:$0xff]
      %v2204 = vld [vmem:[%s2 + $0x38] sm:$0xff]
      %v2205 = vld [vmem:[%s2 + $0x40] sm:$0xff]
      %v2206 = vld [vmem:[%s2 + $0x48] sm:$0xff]
      %v2207 = vld [vmem:[%s2 + $0x50] sm:$0xff]
      %v2208 = vld [vmem:[%s2 + $0x58] sm:$0xff]
      %v2209 = vld [vmem:[%s2 + $0x60] sm:$0xff]
      %v2210 = vld [vmem:[%s2 + $0x68] sm:$0xff]
      %v2211 = vld [vmem:[%s2 + $0x70] sm:$0xff]
      %v2212 = vld [vmem:[%s2 + $0x78] sm:$0xff]
      %v2214 = vsel %vm169, %v2197, 0
      %v2217 = vsel %vm169, %v2198, 0
      %v2220 = vsel %vm169, %v2199, 0
      %v2223 = vsel %vm169, %v2200, 0
      %v2226 = vsel %vm169, %v2201, 0
      %v2229 = vsel %vm169, %v2202, 0
      %v2232 = vsel %vm169, %v2203, 0
      %v2235 = vsel %vm169, %v2204, 0
      %v2238 = vsel %vm169, %v2205, 0
      %v2241 = vsel %vm169, %v2206, 0
      %v2244 = vsel %vm169, %v2207, 0
      %v2247 = vsel %vm169, %v2208, 0
      %v2250 = vsel %vm169, %v2209, 0
      %v2253 = vsel %vm169, %v2210, 0
      %v2256 = vsel %vm169, %v2211, 0
      %v2259 = vsel %vm169, %v2212, 0
      %2261 = vmatpush.msra.mxu0 0.0
      %2262 = vmatpush.msra.mxu0 0.0
      %2263 = vmatpush.msra.mxu0 0.0
      %2264 = vmatpush.msra.mxu0 0.0
      %2265 = vmatpush.msra.mxu0 0.0
      %2266 = vmatpush.msra.mxu0 0.0
      %2267 = vmatpush.msra.mxu0 0.0
      %2268 = vmatpush.msra.mxu0 0.0
      %2269 = vmatpush.msra.mxu0 0.0
      %2270 = vmatpush.msra.mxu0 0.0
      %2271 = vmatpush.msra.mxu0 0.0
      %2272 = vmatpush.msra.mxu0 0.0
      %2273 = vmatpush.msra.mxu0 %v1955
      %2274 = vmatpush.msra.mxu0 %v1954
      %2275 = vmatpush.msra.mxu0 %v1953
      %2276 = vmatpush.msra.mxu0 %v1952
      %2277 = vmatmul.f32.gmra.mxu0 %v2214
      %v2278 = vpop.f32.mrf.mxu0
      %v2279 = vadd.f32 0.0, %v2278
      %2280 = vmatmul.f32.gmra.mxu0 %v2217
      %v2281 = vpop.f32.mrf.mxu0
      %v2282 = vadd.f32 0.0, %v2281
      %2283 = vmatmul.f32.gmra.mxu0 %v2220
      %v2284 = vpop.f32.mrf.mxu0
      %v2285 = vadd.f32 0.0, %v2284
      %2286 = vmatmul.f32.gmra.mxu0 %v2223
      %v2287 = vpop.f32.mrf.mxu0
      %v2288 = vadd.f32 0.0, %v2287
      %2289 = vmatmul.f32.gmra.mxu0 %v2226
      %v2290 = vpop.f32.mrf.mxu0
      %v2291 = vadd.f32 0.0, %v2290
      %2292 = vmatmul.f32.gmra.mxu0 %v2229
      %v2293 = vpop.f32.mrf.mxu0
      %v2294 = vadd.f32 0.0, %v2293
      %2295 = vmatmul.f32.gmra.mxu0 %v2232
      %v2296 = vpop.f32.mrf.mxu0
      %v2297 = vadd.f32 0.0, %v2296
      %2298 = vmatmul.f32.gmra.mxu0 %v2235
      %v2299 = vpop.f32.mrf.mxu0
      %v2300 = vadd.f32 0.0, %v2299
      %2301 = vmatmul.f32.gmra.mxu0 %v2238
      %v2302 = vpop.f32.mrf.mxu0
      %v2303 = vadd.f32 0.0, %v2302
      %2304 = vmatmul.f32.gmra.mxu0 %v2241
      %v2305 = vpop.f32.mrf.mxu0
      %v2306 = vadd.f32 0.0, %v2305
      %2307 = vmatmul.f32.gmra.mxu0 %v2244
      %v2308 = vpop.f32.mrf.mxu0
      %v2309 = vadd.f32 0.0, %v2308
      %2310 = vmatmul.f32.gmra.mxu0 %v2247
      %v2311 = vpop.f32.mrf.mxu0
      %v2312 = vadd.f32 0.0, %v2311
      %2313 = vmatmul.f32.gmra.mxu0 %v2250
      %v2314 = vpop.f32.mrf.mxu0
      %v2315 = vadd.f32 0.0, %v2314
      %2316 = vmatmul.f32.gmra.mxu0 %v2253
      %v2317 = vpop.f32.mrf.mxu0
      %v2318 = vadd.f32 0.0, %v2317
      %2319 = vmatmul.f32.gmra.mxu0 %v2256
      %v2320 = vpop.f32.mrf.mxu0
      %v2321 = vadd.f32 0.0, %v2320
      %2322 = vmatmul.f32.gmra.mxu0 %v2259
      %v2323 = vpop.f32.mrf.mxu0
      %v2324 = vadd.f32 0.0, %v2323
      %2325 = vdwg.mxu0
      %v2326 = vadd.f32 %v2150, %v2279
      %v2327 = vadd.f32 %v2153, %v2282
      %v2328 = vadd.f32 %v2156, %v2285
      %v2329 = vadd.f32 %v2159, %v2288
      %v2330 = vadd.f32 %v2162, %v2291
      %v2331 = vadd.f32 %v2165, %v2294
      %v2332 = vadd.f32 %v2168, %v2297
      %v2333 = vadd.f32 %v2171, %v2300
      %v2334 = vadd.f32 %v2174, %v2303
      %v2335 = vadd.f32 %v2177, %v2306
      %v2336 = vadd.f32 %v2180, %v2309
      %v2337 = vadd.f32 %v2183, %v2312
      %v2338 = vadd.f32 %v2186, %v2315
      %v2339 = vadd.f32 %v2189, %v2318
      %v2340 = vadd.f32 %v2192, %v2321
      %v2341 = vadd.f32 %v2195, %v2324
      %v2342 = vxor.u32 %v2326, 2147483648
      %v2343 = vxor.u32 %v2327, 2147483648
      %v2344 = vxor.u32 %v2328, 2147483648
      %v2345 = vxor.u32 %v2329, 2147483648
      %v2346 = vxor.u32 %v2330, 2147483648
      %v2347 = vxor.u32 %v2331, 2147483648
      %v2348 = vxor.u32 %v2332, 2147483648
      %v2349 = vxor.u32 %v2333, 2147483648
      %v2350 = vxor.u32 %v2334, 2147483648
      %v2351 = vxor.u32 %v2335, 2147483648
      %v2352 = vxor.u32 %v2336, 2147483648
      %v2353 = vxor.u32 %v2337, 2147483648
      %v2354 = vmul.f32 %v2342, 1.442695
      %v2355 = vpow.pop %v2354
      %v2356 = vmul.f32 %v2343, 1.442695
      %v2357 = vpow.pop %v2356
      %v2358 = vmul.f32 %v2344, 1.442695
      %v2359 = vpow.pop %v2358
      %v2360 = vmul.f32 %v2345, 1.442695
      %v2361 = vpow.pop %v2360
      %v2362 = vmul.f32 %v2346, 1.442695
      %v2363 = vpow.pop %v2362
      %v2364 = vmul.f32 %v2347, 1.442695
      %v2365 = vpow.pop %v2364
      %v2366 = vmul.f32 %v2348, 1.442695
      %v2367 = vpow.pop %v2366
      %v2368 = vmul.f32 %v2349, 1.442695
      %v2369 = vpow.pop %v2368
      %v2370 = vmul.f32 %v2350, 1.442695
      %v2371 = vpow.pop %v2370
      %v2372 = vmul.f32 %v2351, 1.442695
      %v2373 = vpow.pop %v2372
      %v2374 = vmul.f32 %v2352, 1.442695
      %v2375 = vpow.pop %v2374
      %v2376 = vmul.f32 %v2353, 1.442695
      %v2377 = vpow.pop %v2376
      %v2378 = vadd.f32 %v2355, 1.0
      %v2379 = vadd.f32 %v2357, 1.0
      %v2380 = vadd.f32 %v2359, 1.0
      %v2381 = vadd.f32 %v2361, 1.0
      %v2382 = vadd.f32 %v2363, 1.0
      %v2383 = vadd.f32 %v2365, 1.0
      %v2384 = vadd.f32 %v2367, 1.0
      %v2385 = vadd.f32 %v2369, 1.0
      %v2386 = vadd.f32 %v2371, 1.0
      %v2387 = vadd.f32 %v2373, 1.0
      %v2388 = vadd.f32 %v2375, 1.0
      %v2389 = vadd.f32 %v2377, 1.0
      %v2390 = vrcp.pop %v2378
      %v2391 = vmul.f32 %v2378, %v2390
      %v2392 = vsub.f32 1.0, %v2391
      %v2393 = vmul.f32 %v2390, %v2392
      %v2394 = vadd.f32 %v2390, %v2393
      %vm2395 = vweird.f32 %v2378
      %vm2396 = vweird.f32 %v2390
      %vm2397 = vmor %vm2395, %vm2396
      %v2398 = vsel %vm2397, %v2390, %v2394
      %v2399 = vand.u32 2147483647, %v2378
      %vm2400 = vcmp.eq.f32.partialorder %v2399, 8.507059e+37
      %v2401 = vand.u32 %v2378, 2147483648
      %v2402 = vor.u32 1.1754944e-38, %v2401
      %v2403 = vsel %vm2400, %v2402, %v2398
      %v2404 = vmul.f32 1.0, %v2403
      %v2405 = vrcp.pop %v2379
      %v2406 = vmul.f32 %v2379, %v2405
      %v2407 = vsub.f32 1.0, %v2406
      %v2408 = vmul.f32 %v2405, %v2407
      %v2409 = vadd.f32 %v2405, %v2408
      %vm2410 = vweird.f32 %v2379
      %vm2411 = vweird.f32 %v2405
      %vm2412 = vmor %vm2410, %vm2411
      %v2413 = vsel %vm2412, %v2405, %v2409
      %v2414 = vand.u32 2147483647, %v2379
      %vm2415 = vcmp.eq.f32.partialorder %v2414, 8.507059e+37
      %v2416 = vand.u32 %v2379, 2147483648
      %v2417 = vor.u32 1.1754944e-38, %v2416
      %v2418 = vsel %vm2415, %v2417, %v2413
      %v2419 = vmul.f32 1.0, %v2418
      %v2420 = vrcp.pop %v2380
      %v2421 = vmul.f32 %v2380, %v2420
      %v2422 = vsub.f32 1.0, %v2421
      %v2423 = vmul.f32 %v2420, %v2422
      %v2424 = vadd.f32 %v2420, %v2423
      %vm2425 = vweird.f32 %v2380
      %vm2426 = vweird.f32 %v2420
      %vm2427 = vmor %vm2425, %vm2426
      %v2428 = vsel %vm2427, %v2420, %v2424
      %v2429 = vand.u32 2147483647, %v2380
      %vm2430 = vcmp.eq.f32.partialorder %v2429, 8.507059e+37
      %v2431 = vand.u32 %v2380, 2147483648
      %v2432 = vor.u32 1.1754944e-38, %v2431
      %v2433 = vsel %vm2430, %v2432, %v2428
      %v2434 = vmul.f32 1.0, %v2433
      %v2435 = vrcp.pop %v2381
      %v2436 = vmul.f32 %v2381, %v2435
      %v2437 = vsub.f32 1.0, %v2436
      %v2438 = vmul.f32 %v2435, %v2437
      %v2439 = vadd.f32 %v2435, %v2438
      %vm2440 = vweird.f32 %v2381
      %vm2441 = vweird.f32 %v2435
      %vm2442 = vmor %vm2440, %vm2441
      %v2443 = vsel %vm2442, %v2435, %v2439
      %v2444 = vand.u32 2147483647, %v2381
      %vm2445 = vcmp.eq.f32.partialorder %v2444, 8.507059e+37
      %v2446 = vand.u32 %v2381, 2147483648
      %v2447 = vor.u32 1.1754944e-38, %v2446
      %v2448 = vsel %vm2445, %v2447, %v2443
      %v2449 = vmul.f32 1.0, %v2448
      %v2450 = vrcp.pop %v2382
      %v2451 = vmul.f32 %v2382, %v2450
      %v2452 = vsub.f32 1.0, %v2451
      %v2453 = vmul.f32 %v2450, %v2452
      %v2454 = vadd.f32 %v2450, %v2453
      %vm2455 = vweird.f32 %v2382
      %vm2456 = vweird.f32 %v2450
      %vm2457 = vmor %vm2455, %vm2456
      %v2458 = vsel %vm2457, %v2450, %v2454
      %v2459 = vand.u32 2147483647, %v2382
      %vm2460 = vcmp.eq.f32.partialorder %v2459, 8.507059e+37
      %v2461 = vand.u32 %v2382, 2147483648
      %v2462 = vor.u32 1.1754944e-38, %v2461
      %v2463 = vsel %vm2460, %v2462, %v2458
      %v2464 = vmul.f32 1.0, %v2463
      %v2465 = vrcp.pop %v2383
      %v2466 = vmul.f32 %v2383, %v2465
      %v2467 = vsub.f32 1.0, %v2466
      %v2468 = vmul.f32 %v2465, %v2467
      %v2469 = vadd.f32 %v2465, %v2468
      %vm2470 = vweird.f32 %v2383
      %vm2471 = vweird.f32 %v2465
      %vm2472 = vmor %vm2470, %vm2471
      %v2473 = vsel %vm2472, %v2465, %v2469
      %v2474 = vand.u32 2147483647, %v2383
      %vm2475 = vcmp.eq.f32.partialorder %v2474, 8.507059e+37
      %v2476 = vand.u32 %v2383, 2147483648
      %v2477 = vor.u32 1.1754944e-38, %v2476
      %v2478 = vsel %vm2475, %v2477, %v2473
      %v2479 = vmul.f32 1.0, %v2478
      %v2480 = vrcp.pop %v2384
      %v2481 = vmul.f32 %v2384, %v2480
      %v2482 = vsub.f32 1.0, %v2481
      %v2483 = vmul.f32 %v2480, %v2482
      %v2484 = vadd.f32 %v2480, %v2483
      %vm2485 = vweird.f32 %v2384
      %vm2486 = vweird.f32 %v2480
      %vm2487 = vmor %vm2485, %vm2486
      %v2488 = vsel %vm2487, %v2480, %v2484
      %v2489 = vand.u32 2147483647, %v2384
      %vm2490 = vcmp.eq.f32.partialorder %v2489, 8.507059e+37
      %v2491 = vand.u32 %v2384, 2147483648
      %v2492 = vor.u32 1.1754944e-38, %v2491
      %v2493 = vsel %vm2490, %v2492, %v2488
      %v2494 = vmul.f32 1.0, %v2493
      %v2495 = vrcp.pop %v2385
      %v2496 = vmul.f32 %v2385, %v2495
      %v2497 = vsub.f32 1.0, %v2496
      %v2498 = vmul.f32 %v2495, %v2497
      %v2499 = vadd.f32 %v2495, %v2498
      %vm2500 = vweird.f32 %v2385
      %vm2501 = vweird.f32 %v2495
      %vm2502 = vmor %vm2500, %vm2501
      %v2503 = vsel %vm2502, %v2495, %v2499
      %v2504 = vand.u32 2147483647, %v2385
      %vm2505 = vcmp.eq.f32.partialorder %v2504, 8.507059e+37
      %v2506 = vand.u32 %v2385, 2147483648
      %v2507 = vor.u32 1.1754944e-38, %v2506
      %v2508 = vsel %vm2505, %v2507, %v2503
      %v2509 = vmul.f32 1.0, %v2508
      %v2510 = vrcp.pop %v2386
      %v2511 = vmul.f32 %v2386, %v2510
      %v2512 = vsub.f32 1.0, %v2511
      %v2513 = vmul.f32 %v2510, %v2512
      %v2514 = vadd.f32 %v2510, %v2513
      %vm2515 = vweird.f32 %v2386
      %vm2516 = vweird.f32 %v2510
      %vm2517 = vmor %vm2515, %vm2516
      %v2518 = vsel %vm2517, %v2510, %v2514
      %v2519 = vand.u32 2147483647, %v2386
      %vm2520 = vcmp.eq.f32.partialorder %v2519, 8.507059e+37
      %v2521 = vand.u32 %v2386, 2147483648
      %v2522 = vor.u32 1.1754944e-38, %v2521
      %v2523 = vsel %vm2520, %v2522, %v2518
      %v2524 = vmul.f32 1.0, %v2523
      %v2525 = vrcp.pop %v2387
      %v2526 = vmul.f32 %v2387, %v2525
      %v2527 = vsub.f32 1.0, %v2526
      %v2528 = vmul.f32 %v2525, %v2527
      %v2529 = vadd.f32 %v2525, %v2528
      %vm2530 = vweird.f32 %v2387
      %vm2531 = vweird.f32 %v2525
      %vm2532 = vmor %vm2530, %vm2531
      %v2533 = vsel %vm2532, %v2525, %v2529
      %v2534 = vand.u32 2147483647, %v2387
      %vm2535 = vcmp.eq.f32.partialorder %v2534, 8.507059e+37
      %v2536 = vand.u32 %v2387, 2147483648
      %v2537 = vor.u32 1.1754944e-38, %v2536
      %v2538 = vsel %vm2535, %v2537, %v2533
      %v2539 = vmul.f32 1.0, %v2538
      %v2540 = vrcp.pop %v2388
      %v2541 = vmul.f32 %v2388, %v2540
      %v2542 = vsub.f32 1.0, %v2541
      %v2543 = vmul.f32 %v2540, %v2542
      %v2544 = vadd.f32 %v2540, %v2543
      %vm2545 = vweird.f32 %v2388
      %vm2546 = vweird.f32 %v2540
      %vm2547 = vmor %vm2545, %vm2546
      %v2548 = vsel %vm2547, %v2540, %v2544
      %v2549 = vand.u32 2147483647, %v2388
      %vm2550 = vcmp.eq.f32.partialorder %v2549, 8.507059e+37
      %v2551 = vand.u32 %v2388, 2147483648
      %v2552 = vor.u32 1.1754944e-38, %v2551
      %v2553 = vsel %vm2550, %v2552, %v2548
      %v2554 = vmul.f32 1.0, %v2553
      %v2555 = vrcp.pop %v2389
      %v2556 = vmul.f32 %v2389, %v2555
      %v2557 = vsub.f32 1.0, %v2556
      %v2558 = vmul.f32 %v2555, %v2557
      %v2559 = vadd.f32 %v2555, %v2558
      %vm2560 = vweird.f32 %v2389
      %vm2561 = vweird.f32 %v2555
      %vm2562 = vmor %vm2560, %vm2561
      %v2563 = vsel %vm2562, %v2555, %v2559
      %v2564 = vand.u32 2147483647, %v2389
      %vm2565 = vcmp.eq.f32.partialorder %v2564, 8.507059e+37
      %v2566 = vand.u32 %v2389, 2147483648
      %v2567 = vor.u32 1.1754944e-38, %v2566
      %v2568 = vsel %vm2565, %v2567, %v2563
      %v2569 = vmul.f32 1.0, %v2568
      %v2570 = vtanh.pop %v2338
      %v2571 = vtanh.pop %v2339
      %v2572 = vtanh.pop %v2340
      %v2573 = vtanh.pop %v2341
      %v2574 = vmul.f32 %v2464, %v1944
      %v2575 = vmul.f32 %v2479, %v1945
      %v2576 = vmul.f32 %v2494, %v1946
      %v2577 = vmul.f32 %v2509, %v1947
      %v2578 = vmul.f32 %v2404, %v2570
      %v2579 = vmul.f32 %v2419, %v2571
      %v2580 = vmul.f32 %v2434, %v2572
      %v2581 = vmul.f32 %v2449, %v2573
      %v2582 = vadd.f32 %v2574, %v2578
      %v2583 = vadd.f32 %v2575, %v2579
      %v2584 = vadd.f32 %v2576, %v2580
      %v2585 = vadd.f32 %v2577, %v2581
      %v2586 = vtanh.pop %v2582
      %v2587 = vtanh.pop %v2583
      %v2588 = vtanh.pop %v2584
      %v2589 = vtanh.pop %v2585
      %v2590 = vmul.f32 %v2524, %v2586
      %v2591 = vmul.f32 %v2539, %v2587
      %v2592 = vmul.f32 %v2554, %v2588
      %v2593 = vmul.f32 %v2569, %v2589
      %s2594 = scalar_lea.vmem [#allocation2], %s1964
      %2595 = vst [vmem:[%s2594] sm:$0xff] %v2590
      %2596 = vst [vmem:[%s2594 + $0x8] sm:$0xff] %v2591
      %s2597 = scalar_lea.vmem [#allocation3], %s1968
      %2598 = vst [vmem:[%s2597] sm:$0xff] %v2592
      %2599 = vst [vmem:[%s2597 + $0x8] sm:$0xff] %v2593
    $region42: #{seq_classifier_forward.1} parent=1 // loop_footer
      %s38 = sadd.s32 1, %s34
    $region43: #{seq_classifier_forward.1} parent=1 // loop_footer_branch
      %33 = sbr.rel target = $region39
    $region44: #{seq_classifier_forward.1} parent=1 // loop_exit
      _
    loop: start=0, step=1, limit=32
    $region45: #{seq_classifier_forward.1} parent=1 // loop_pre_header
      _
    $region46: #{seq_classifier_forward.1} parent=1 // loop_header
      %s2601 = sphi 0, %s2605
      %p2602 = scmp.ge.s32.totalorder %s2601, 32
      %v2606 = vphi 0.0, %v4574
      %v2607 = vphi 0.0, %v4575
      %v2608 = vphi 0.0, %v4576
      %v2609 = vphi 0.0, %v4577
      %v2610 = vphi 0.0, %v4566
      %v2611 = vphi 0.0, %v4567
      %v2612 = vphi 0.0, %v4568
      %v2613 = vphi 0.0, %v4569
      %v2614 = vphi 0.0, %v4604
    $region47: #{seq_classifier_forward.1} parent=1 // loop_header_branch
      %2604 = sbr.rel (%p2602) target = $region51
    $region48: #{seq_classifier_forward.1} parent=1 // loop_body
      %s2615 = smul.u32 %s2601, 4
      %s2616 = ssub.s32 127, %s2615
      %s2617 = smul.u32 %s2615, 16
      %s2618 = scalar_lea.vmem [#allocation2], %s2617
      %v2619 = vld [vmem:[%s2618] sm:$0xff]
      %v2620 = vld [vmem:[%s2618 + $0x8] sm:$0xff]
      %s2621 = scalar_lea.vmem [#allocation3], %s2617
      %v2622 = vld [vmem:[%s2621] sm:$0xff]
      %v2623 = vld [vmem:[%s2621 + $0x8] sm:$0xff]
      %s2624 = smul.u32 %s2616, 16
      %s2625 = scalar_lea.vmem [#allocation2], %s2624
      %v2626 = vld [vmem:[%s2625] sm:$0xff]
      %v2627 = vld [vmem:[%s2625 + $0x8] sm:$0xff]
      %s2628 = scalar_lea.vmem [#allocation3], %s2624
      %v2629 = vld [vmem:[%s2628] sm:$0xff]
      %v2630 = vld [vmem:[%s2628 + $0x8] sm:$0xff]
      %v2631 = vld [vmem:[%s4] sm:$0xff]
      %v2632 = vld [vmem:[%s4 + $0x8] sm:$0xff]
      %v2633 = vld [vmem:[%s4 + $0x10] sm:$0xff]
      %v2634 = vld [vmem:[%s4 + $0x18] sm:$0xff]
      %v2635 = vld [vmem:[%s4 + $0x20] sm:$0xff]
      %v2636 = vld [vmem:[%s4 + $0x28] sm:$0xff]
      %v2637 = vld [vmem:[%s4 + $0x30] sm:$0xff]
      %v2638 = vld [vmem:[%s4 + $0x38] sm:$0xff]
      %v2639 = vld [vmem:[%s4 + $0x40] sm:$0xff]
      %v2640 = vld [vmem:[%s4 + $0x48] sm:$0xff]
      %v2641 = vld [vmem:[%s4 + $0x50] sm:$0xff]
      %v2642 = vld [vmem:[%s4 + $0x58] sm:$0xff]
      %v2643 = vld [vmem:[%s4 + $0x60] sm:$0xff]
      %v2644 = vld [vmem:[%s4 + $0x68] sm:$0xff]
      %v2645 = vld [vmem:[%s4 + $0x70] sm:$0xff]
      %v2646 = vld [vmem:[%s4 + $0x78] sm:$0xff]
      %v2647 = vld [vmem:[%s6] sm:$0xff]
      %v2648 = vld [vmem:[%s6 + $0x8] sm:$0xff]
      %v2649 = vld [vmem:[%s6 + $0x10] sm:$0xff]
      %v2650 = vld [vmem:[%s6 + $0x18] sm:$0xff]
      %v2651 = vld [vmem:[%s6 + $0x20] sm:$0xff]
      %v2652 = vld [vmem:[%s6 + $0x28] sm:$0xff]
      %v2653 = vld [vmem:[%s6 + $0x30] sm:$0xff]
      %v2654 = vld [vmem:[%s6 + $0x38] sm:$0xff]
      %v2655 = vld [vmem:[%s6 + $0x40] sm:$0xff]
      %v2656 = vld [vmem:[%s6 + $0x48] sm:$0xff]
      %v2657 = vld [vmem:[%s6 + $0x50] sm:$0xff]
      %v2658 = vld [vmem:[%s6 + $0x58] sm:$0xff]
      %v2659 = vld [vmem:[%s6 + $0x60] sm:$0xff]
      %v2660 = vld [vmem:[%s6 + $0x68] sm:$0xff]
      %v2661 = vld [vmem:[%s6 + $0x70] sm:$0xff]
      %v2662 = vld [vmem:[%s6 + $0x78] sm:$0xff]
      %2664 = vset.pattern.permute.xlu0 0
      %2665 = vperm.xlu0 %2664, %v2647
      %v2666 = vpop.permute.xlu0 %2665
      %2669 = vset.pattern.permute.xlu0 0
      %2670 = vperm.xlu0 %2669, %v2648
      %v2671 = vpop.permute.xlu0 %2670
      %2674 = vset.pattern.permute.xlu0 0
      %2675 = vperm.xlu0 %2674, %v2649
      %v2676 = vpop.permute.xlu0 %2675
      %2679 = vset.pattern.permute.xlu0 0
      %2680 = vperm.xlu0 %2679, %v2650
      %v2681 = vpop.permute.xlu0 %2680
      %2684 = vset.pattern.permute.xlu0 0
      %2685 = vperm.xlu0 %2684, %v2651
      %v2686 = vpop.permute.xlu0 %2685
      %2689 = vset.pattern.permute.xlu0 0
      %2690 = vperm.xlu0 %2689, %v2652
      %v2691 = vpop.permute.xlu0 %2690
      %2694 = vset.pattern.permute.xlu0 0
      %2695 = vperm.xlu0 %2694, %v2653
      %v2696 = vpop.permute.xlu0 %2695
      %2699 = vset.pattern.permute.xlu0 0
      %2700 = vperm.xlu0 %2699, %v2654
      %v2701 = vpop.permute.xlu0 %2700
      %2704 = vset.pattern.permute.xlu0 0
      %2705 = vperm.xlu0 %2704, %v2655
      %v2706 = vpop.permute.xlu0 %2705
      %2709 = vset.pattern.permute.xlu0 0
      %2710 = vperm.xlu0 %2709, %v2656
      %v2711 = vpop.permute.xlu0 %2710
      %2714 = vset.pattern.permute.xlu0 0
      %2715 = vperm.xlu0 %2714, %v2657
      %v2716 = vpop.permute.xlu0 %2715
      %2719 = vset.pattern.permute.xlu0 0
      %2720 = vperm.xlu0 %2719, %v2658
      %v2721 = vpop.permute.xlu0 %2720
      %2724 = vset.pattern.permute.xlu0 0
      %2725 = vperm.xlu0 %2724, %v2659
      %v2726 = vpop.permute.xlu0 %2725
      %2729 = vset.pattern.permute.xlu0 0
      %2730 = vperm.xlu0 %2729, %v2660
      %v2731 = vpop.permute.xlu0 %2730
      %2734 = vset.pattern.permute.xlu0 0
      %2735 = vperm.xlu0 %2734, %v2661
      %v2736 = vpop.permute.xlu0 %2735
      %2739 = vset.pattern.permute.xlu0 0
      %2740 = vperm.xlu0 %2739, %v2662
      %v2741 = vpop.permute.xlu0 %2740
      %vm2743 = vcmask 523264
      %v2745 = vsel %vm2743, %v2631, 0
      %v2748 = vsel %vm2743, %v2632, 0
      %v2751 = vsel %vm2743, %v2633, 0
      %v2754 = vsel %vm2743, %v2634, 0
      %v2757 = vsel %vm2743, %v2635, 0
      %v2760 = vsel %vm2743, %v2636, 0
      %v2763 = vsel %vm2743, %v2637, 0
      %v2766 = vsel %vm2743, %v2638, 0
      %v2769 = vsel %vm2743, %v2639, 0
      %v2772 = vsel %vm2743, %v2640, 0
      %v2775 = vsel %vm2743, %v2641, 0
      %v2778 = vsel %vm2743, %v2642, 0
      %v2781 = vsel %vm2743, %v2643, 0
      %v2784 = vsel %vm2743, %v2644, 0
      %v2787 = vsel %vm2743, %v2645, 0
      %v2790 = vsel %vm2743, %v2646, 0
      %2792 = vmatpush.msra.mxu0 0.0
      %2793 = vmatpush.msra.mxu0 0.0
      %2794 = vmatpush.msra.mxu0 0.0
      %2795 = vmatpush.msra.mxu0 0.0
      %2796 = vmatpush.msra.mxu0 0.0
      %2797 = vmatpush.msra.mxu0 0.0
      %2798 = vmatpush.msra.mxu0 0.0
      %2799 = vmatpush.msra.mxu0 0.0
      %2800 = vmatpush.msra.mxu0 %v2630
      %2801 = vmatpush.msra.mxu0 %v2629
      %2802 = vmatpush.msra.mxu0 %v2627
      %2803 = vmatpush.msra.mxu0 %v2626
      %2804 = vmatpush.msra.mxu0 %v2623
      %2805 = vmatpush.msra.mxu0 %v2622
      %2806 = vmatpush.msra.mxu0 %v2620
      %2807 = vmatpush.msra.mxu0 %v2619
      %2808 = vmatmul.f32.gmra.mxu0 %v2745
      %v2809 = vpop.f32.mrf.mxu0
      %v2810 = vadd.f32 %v2666, %v2809
      %2811 = vmatmul.f32.gmra.mxu0 %v2748
      %v2812 = vpop.f32.mrf.mxu0
      %v2813 = vadd.f32 %v2671, %v2812
      %2814 = vmatmul.f32.gmra.mxu0 %v2751
      %v2815 = vpop.f32.mrf.mxu0
      %v2816 = vadd.f32 %v2676, %v2815
      %2817 = vmatmul.f32.gmra.mxu0 %v2754
      %v2818 = vpop.f32.mrf.mxu0
      %v2819 = vadd.f32 %v2681, %v2818
      %2820 = vmatmul.f32.gmra.mxu0 %v2757
      %v2821 = vpop.f32.mrf.mxu0
      %v2822 = vadd.f32 %v2686, %v2821
      %2823 = vmatmul.f32.gmra.mxu0 %v2760
      %v2824 = vpop.f32.mrf.mxu0
      %v2825 = vadd.f32 %v2691, %v2824
      %2826 = vmatmul.f32.gmra.mxu0 %v2763
      %v2827 = vpop.f32.mrf.mxu0
      %v2828 = vadd.f32 %v2696, %v2827
      %2829 = vmatmul.f32.gmra.mxu0 %v2766
      %v2830 = vpop.f32.mrf.mxu0
      %v2831 = vadd.f32 %v2701, %v2830
      %2832 = vmatmul.f32.gmra.mxu0 %v2769
      %v2833 = vpop.f32.mrf.mxu0
      %v2834 = vadd.f32 %v2706, %v2833
      %2835 = vmatmul.f32.gmra.mxu0 %v2772
      %v2836 = vpop.f32.mrf.mxu0
      %v2837 = vadd.f32 %v2711, %v2836
      %2838 = vmatmul.f32.gmra.mxu0 %v2775
      %v2839 = vpop.f32.mrf.mxu0
      %v2840 = vadd.f32 %v2716, %v2839
      %2841 = vmatmul.f32.gmra.mxu0 %v2778
      %v2842 = vpop.f32.mrf.mxu0
      %v2843 = vadd.f32 %v2721, %v2842
      %2844 = vmatmul.f32.gmra.mxu0 %v2781
      %v2845 = vpop.f32.mrf.mxu0
      %v2846 = vadd.f32 %v2726, %v2845
      %2847 = vmatmul.f32.gmra.mxu0 %v2784
      %v2848 = vpop.f32.mrf.mxu0
      %v2849 = vadd.f32 %v2731, %v2848
      %2850 = vmatmul.f32.gmra.mxu0 %v2787
      %v2851 = vpop.f32.mrf.mxu0
      %v2852 = vadd.f32 %v2736, %v2851
      %2853 = vmatmul.f32.gmra.mxu0 %v2790
      %v2854 = vpop.f32.mrf.mxu0
      %v2855 = vadd.f32 %v2741, %v2854
      %2856 = vdwg.mxu0
      %v2857 = vld [vmem:[%s5] sm:$0xff]
      %v2858 = vld [vmem:[%s5 + $0x8] sm:$0xff]
      %v2859 = vld [vmem:[%s5 + $0x10] sm:$0xff]
      %v2860 = vld [vmem:[%s5 + $0x18] sm:$0xff]
      %v2861 = vld [vmem:[%s5 + $0x20] sm:$0xff]
      %v2862 = vld [vmem:[%s5 + $0x28] sm:$0xff]
      %v2863 = vld [vmem:[%s5 + $0x30] sm:$0xff]
      %v2864 = vld [vmem:[%s5 + $0x38] sm:$0xff]
      %v2865 = vld [vmem:[%s5 + $0x40] sm:$0xff]
      %v2866 = vld [vmem:[%s5 + $0x48] sm:$0xff]
      %v2867 = vld [vmem:[%s5 + $0x50] sm:$0xff]
      %v2868 = vld [vmem:[%s5 + $0x58] sm:$0xff]
      %v2869 = vld [vmem:[%s5 + $0x60] sm:$0xff]
      %v2870 = vld [vmem:[%s5 + $0x68] sm:$0xff]
      %v2871 = vld [vmem:[%s5 + $0x70] sm:$0xff]
      %v2872 = vld [vmem:[%s5 + $0x78] sm:$0xff]
      %vm2873 = vcmask 261120
      %v2875 = vsel %vm2873, %v2857, 0
      %v2878 = vsel %vm2873, %v2858, 0
      %v2881 = vsel %vm2873, %v2859, 0
      %v2884 = vsel %vm2873, %v2860, 0
      %v2887 = vsel %vm2873, %v2861, 0
      %v2890 = vsel %vm2873, %v2862, 0
      %v2893 = vsel %vm2873, %v2863, 0
      %v2896 = vsel %vm2873, %v2864, 0
      %v2899 = vsel %vm2873, %v2865, 0
      %v2902 = vsel %vm2873, %v2866, 0
      %v2905 = vsel %vm2873, %v2867, 0
      %v2908 = vsel %vm2873, %v2868, 0
      %v2911 = vsel %vm2873, %v2869, 0
      %v2914 = vsel %vm2873, %v2870, 0
      %v2917 = vsel %vm2873, %v2871, 0
      %v2920 = vsel %vm2873, %v2872, 0
      %2922 = vmatpush.msra.mxu0 0.0
      %2923 = vmatpush.msra.mxu0 0.0
      %2924 = vmatpush.msra.mxu0 0.0
      %2925 = vmatpush.msra.mxu0 0.0
      %2926 = vmatpush.msra.mxu0 0.0
      %2927 = vmatpush.msra.mxu0 0.0
      %2928 = vmatpush.msra.mxu0 0.0
      %2929 = vmatpush.msra.mxu0 0.0
      %2930 = vmatpush.msra.mxu0 0.0
      %2931 = vmatpush.msra.mxu0 0.0
      %2932 = vmatpush.msra.mxu0 0.0
      %2933 = vmatpush.msra.mxu0 0.0
      %2934 = vmatpush.msra.mxu0 %v2609
      %2935 = vmatpush.msra.mxu0 %v2608
      %2936 = vmatpush.msra.mxu0 %v2607
      %2937 = vmatpush.msra.mxu0 %v2606
      %2938 = vmatmul.f32.gmra.mxu0 %v2875
      %v2939 = vpop.f32.mrf.mxu0
      %v2940 = vadd.f32 0.0, %v2939
      %2941 = vmatmul.f32.gmra.mxu0 %v2878
      %v2942 = vpop.f32.mrf.mxu0
      %v2943 = vadd.f32 0.0, %v2942
      %2944 = vmatmul.f32.gmra.mxu0 %v2881
      %v2945 = vpop.f32.mrf.mxu0
      %v2946 = vadd.f32 0.0, %v2945
      %2947 = vmatmul.f32.gmra.mxu0 %v2884
      %v2948 = vpop.f32.mrf.mxu0
      %v2949 = vadd.f32 0.0, %v2948
      %2950 = vmatmul.f32.gmra.mxu0 %v2887
      %v2951 = vpop.f32.mrf.mxu0
      %v2952 = vadd.f32 0.0, %v2951
      %2953 = vmatmul.f32.gmra.mxu0 %v2890
      %v2954 = vpop.f32.mrf.mxu0
      %v2955 = vadd.f32 0.0, %v2954
      %2956 = vmatmul.f32.gmra.mxu0 %v2893
      %v2957 = vpop.f32.mrf.mxu0
      %v2958 = vadd.f32 0.0, %v2957
      %2959 = vmatmul.f32.gmra.mxu0 %v2896
      %v2960 = vpop.f32.mrf.mxu0
      %v2961 = vadd.f32 0.0, %v2960
      %2962 = vmatmul.f32.gmra.mxu0 %v2899
      %v2963 = vpop.f32.mrf.mxu0
      %v2964 = vadd.f32 0.0, %v2963
      %2965 = vmatmul.f32.gmra.mxu0 %v2902
      %v2966 = vpop.f32.mrf.mxu0
      %v2967 = vadd.f32 0.0, %v2966
      %2968 = vmatmul.f32.gmra.mxu0 %v2905
      %v2969 = vpop.f32.mrf.mxu0
      %v2970 = vadd.f32 0.0, %v2969
      %2971 = vmatmul.f32.gmra.mxu0 %v2908
      %v2972 = vpop.f32.mrf.mxu0
      %v2973 = vadd.f32 0.0, %v2972
      %2974 = vmatmul.f32.gmra.mxu0 %v2911
      %v2975 = vpop.f32.mrf.mxu0
      %v2976 = vadd.f32 0.0, %v2975
      %2977 = vmatmul.f32.gmra.mxu0 %v2914
      %v2978 = vpop.f32.mrf.mxu0
      %v2979 = vadd.f32 0.0, %v2978
      %2980 = vmatmul.f32.gmra.mxu0 %v2917
      %v2981 = vpop.f32.mrf.mxu0
      %v2982 = vadd.f32 0.0, %v2981
      %2983 = vmatmul.f32.gmra.mxu0 %v2920
      %v2984 = vpop.f32.mrf.mxu0
      %v2985 = vadd.f32 0.0, %v2984
      %2986 = vdwg.mxu0
      %v2987 = vadd.f32 %v2810, %v2940
      %v2988 = vadd.f32 %v2813, %v2943
      %v2989 = vadd.f32 %v2816, %v2946
      %v2990 = vadd.f32 %v2819, %v2949
      %v2991 = vadd.f32 %v2822, %v2952
      %v2992 = vadd.f32 %v2825, %v2955
      %v2993 = vadd.f32 %v2828, %v2958
      %v2994 = vadd.f32 %v2831, %v2961
      %v2995 = vadd.f32 %v2834, %v2964
      %v2996 = vadd.f32 %v2837, %v2967
      %v2997 = vadd.f32 %v2840, %v2970
      %v2998 = vadd.f32 %v2843, %v2973
      %v2999 = vadd.f32 %v2846, %v2976
      %v3000 = vadd.f32 %v2849, %v2979
      %v3001 = vadd.f32 %v2852, %v2982
      %v3002 = vadd.f32 %v2855, %v2985
      %v3003 = vxor.u32 %v2987, 2147483648
      %v3004 = vxor.u32 %v2988, 2147483648
      %v3005 = vxor.u32 %v2989, 2147483648
      %v3006 = vxor.u32 %v2990, 2147483648
      %v3007 = vxor.u32 %v2991, 2147483648
      %v3008 = vxor.u32 %v2992, 2147483648
      %v3009 = vxor.u32 %v2993, 2147483648
      %v3010 = vxor.u32 %v2994, 2147483648
      %v3011 = vxor.u32 %v2995, 2147483648
      %v3012 = vxor.u32 %v2996, 2147483648
      %v3013 = vxor.u32 %v2997, 2147483648
      %v3014 = vxor.u32 %v2998, 2147483648
      %v3015 = vmul.f32 %v3003, 1.442695
      %v3016 = vpow.pop %v3015
      %v3017 = vmul.f32 %v3004, 1.442695
      %v3018 = vpow.pop %v3017
      %v3019 = vmul.f32 %v3005, 1.442695
      %v3020 = vpow.pop %v3019
      %v3021 = vmul.f32 %v3006, 1.442695
      %v3022 = vpow.pop %v3021
      %v3023 = vmul.f32 %v3007, 1.442695
      %v3024 = vpow.pop %v3023
      %v3025 = vmul.f32 %v3008, 1.442695
      %v3026 = vpow.pop %v3025
      %v3027 = vmul.f32 %v3009, 1.442695
      %v3028 = vpow.pop %v3027
      %v3029 = vmul.f32 %v3010, 1.442695
      %v3030 = vpow.pop %v3029
      %v3031 = vmul.f32 %v3011, 1.442695
      %v3032 = vpow.pop %v3031
      %v3033 = vmul.f32 %v3012, 1.442695
      %v3034 = vpow.pop %v3033
      %v3035 = vmul.f32 %v3013, 1.442695
      %v3036 = vpow.pop %v3035
      %v3037 = vmul.f32 %v3014, 1.442695
      %v3038 = vpow.pop %v3037
      %v3039 = vadd.f32 %v3016, 1.0
      %v3040 = vadd.f32 %v3018, 1.0
      %v3041 = vadd.f32 %v3020, 1.0
      %v3042 = vadd.f32 %v3022, 1.0
      %v3043 = vadd.f32 %v3024, 1.0
      %v3044 = vadd.f32 %v3026, 1.0
      %v3045 = vadd.f32 %v3028, 1.0
      %v3046 = vadd.f32 %v3030, 1.0
      %v3047 = vadd.f32 %v3032, 1.0
      %v3048 = vadd.f32 %v3034, 1.0
      %v3049 = vadd.f32 %v3036, 1.0
      %v3050 = vadd.f32 %v3038, 1.0
      %v3051 = vrcp.pop %v3039
      %v3052 = vmul.f32 %v3039, %v3051
      %v3053 = vsub.f32 1.0, %v3052
      %v3054 = vmul.f32 %v3051, %v3053
      %v3055 = vadd.f32 %v3051, %v3054
      %vm3056 = vweird.f32 %v3039
      %vm3057 = vweird.f32 %v3051
      %vm3058 = vmor %vm3056, %vm3057
      %v3059 = vsel %vm3058, %v3051, %v3055
      %v3060 = vand.u32 2147483647, %v3039
      %vm3061 = vcmp.eq.f32.partialorder %v3060, 8.507059e+37
      %v3062 = vand.u32 %v3039, 2147483648
      %v3063 = vor.u32 1.1754944e-38, %v3062
      %v3064 = vsel %vm3061, %v3063, %v3059
      %v3065 = vmul.f32 1.0, %v3064
      %v3066 = vrcp.pop %v3040
      %v3067 = vmul.f32 %v3040, %v3066
      %v3068 = vsub.f32 1.0, %v3067
      %v3069 = vmul.f32 %v3066, %v3068
      %v3070 = vadd.f32 %v3066, %v3069
      %vm3071 = vweird.f32 %v3040
      %vm3072 = vweird.f32 %v3066
      %vm3073 = vmor %vm3071, %vm3072
      %v3074 = vsel %vm3073, %v3066, %v3070
      %v3075 = vand.u32 2147483647, %v3040
      %vm3076 = vcmp.eq.f32.partialorder %v3075, 8.507059e+37
      %v3077 = vand.u32 %v3040, 2147483648
      %v3078 = vor.u32 1.1754944e-38, %v3077
      %v3079 = vsel %vm3076, %v3078, %v3074
      %v3080 = vmul.f32 1.0, %v3079
      %v3081 = vrcp.pop %v3041
      %v3082 = vmul.f32 %v3041, %v3081
      %v3083 = vsub.f32 1.0, %v3082
      %v3084 = vmul.f32 %v3081, %v3083
      %v3085 = vadd.f32 %v3081, %v3084
      %vm3086 = vweird.f32 %v3041
      %vm3087 = vweird.f32 %v3081
      %vm3088 = vmor %vm3086, %vm3087
      %v3089 = vsel %vm3088, %v3081, %v3085
      %v3090 = vand.u32 2147483647, %v3041
      %vm3091 = vcmp.eq.f32.partialorder %v3090, 8.507059e+37
      %v3092 = vand.u32 %v3041, 2147483648
      %v3093 = vor.u32 1.1754944e-38, %v3092
      %v3094 = vsel %vm3091, %v3093, %v3089
      %v3095 = vmul.f32 1.0, %v3094
      %v3096 = vrcp.pop %v3042
      %v3097 = vmul.f32 %v3042, %v3096
      %v3098 = vsub.f32 1.0, %v3097
      %v3099 = vmul.f32 %v3096, %v3098
      %v3100 = vadd.f32 %v3096, %v3099
      %vm3101 = vweird.f32 %v3042
      %vm3102 = vweird.f32 %v3096
      %vm3103 = vmor %vm3101, %vm3102
      %v3104 = vsel %vm3103, %v3096, %v3100
      %v3105 = vand.u32 2147483647, %v3042
      %vm3106 = vcmp.eq.f32.partialorder %v3105, 8.507059e+37
      %v3107 = vand.u32 %v3042, 2147483648
      %v3108 = vor.u32 1.1754944e-38, %v3107
      %v3109 = vsel %vm3106, %v3108, %v3104
      %v3110 = vmul.f32 1.0, %v3109
      %v3111 = vrcp.pop %v3043
      %v3112 = vmul.f32 %v3043, %v3111
      %v3113 = vsub.f32 1.0, %v3112
      %v3114 = vmul.f32 %v3111, %v3113
      %v3115 = vadd.f32 %v3111, %v3114
      %vm3116 = vweird.f32 %v3043
      %vm3117 = vweird.f32 %v3111
      %vm3118 = vmor %vm3116, %vm3117
      %v3119 = vsel %vm3118, %v3111, %v3115
      %v3120 = vand.u32 2147483647, %v3043
      %vm3121 = vcmp.eq.f32.partialorder %v3120, 8.507059e+37
      %v3122 = vand.u32 %v3043, 2147483648
      %v3123 = vor.u32 1.1754944e-38, %v3122
      %v3124 = vsel %vm3121, %v3123, %v3119
      %v3125 = vmul.f32 1.0, %v3124
      %v3126 = vrcp.pop %v3044
      %v3127 = vmul.f32 %v3044, %v3126
      %v3128 = vsub.f32 1.0, %v3127
      %v3129 = vmul.f32 %v3126, %v3128
      %v3130 = vadd.f32 %v3126, %v3129
      %vm3131 = vweird.f32 %v3044
      %vm3132 = vweird.f32 %v3126
      %vm3133 = vmor %vm3131, %vm3132
      %v3134 = vsel %vm3133, %v3126, %v3130
      %v3135 = vand.u32 2147483647, %v3044
      %vm3136 = vcmp.eq.f32.partialorder %v3135, 8.507059e+37
      %v3137 = vand.u32 %v3044, 2147483648
      %v3138 = vor.u32 1.1754944e-38, %v3137
      %v3139 = vsel %vm3136, %v3138, %v3134
      %v3140 = vmul.f32 1.0, %v3139
      %v3141 = vrcp.pop %v3045
      %v3142 = vmul.f32 %v3045, %v3141
      %v3143 = vsub.f32 1.0, %v3142
      %v3144 = vmul.f32 %v3141, %v3143
      %v3145 = vadd.f32 %v3141, %v3144
      %vm3146 = vweird.f32 %v3045
      %vm3147 = vweird.f32 %v3141
      %vm3148 = vmor %vm3146, %vm3147
      %v3149 = vsel %vm3148, %v3141, %v3145
      %v3150 = vand.u32 2147483647, %v3045
      %vm3151 = vcmp.eq.f32.partialorder %v3150, 8.507059e+37
      %v3152 = vand.u32 %v3045, 2147483648
      %v3153 = vor.u32 1.1754944e-38, %v3152
      %v3154 = vsel %vm3151, %v3153, %v3149
      %v3155 = vmul.f32 1.0, %v3154
      %v3156 = vrcp.pop %v3046
      %v3157 = vmul.f32 %v3046, %v3156
      %v3158 = vsub.f32 1.0, %v3157
      %v3159 = vmul.f32 %v3156, %v3158
      %v3160 = vadd.f32 %v3156, %v3159
      %vm3161 = vweird.f32 %v3046
      %vm3162 = vweird.f32 %v3156
      %vm3163 = vmor %vm3161, %vm3162
      %v3164 = vsel %vm3163, %v3156, %v3160
      %v3165 = vand.u32 2147483647, %v3046
      %vm3166 = vcmp.eq.f32.partialorder %v3165, 8.507059e+37
      %v3167 = vand.u32 %v3046, 2147483648
      %v3168 = vor.u32 1.1754944e-38, %v3167
      %v3169 = vsel %vm3166, %v3168, %v3164
      %v3170 = vmul.f32 1.0, %v3169
      %v3171 = vrcp.pop %v3047
      %v3172 = vmul.f32 %v3047, %v3171
      %v3173 = vsub.f32 1.0, %v3172
      %v3174 = vmul.f32 %v3171, %v3173
      %v3175 = vadd.f32 %v3171, %v3174
      %vm3176 = vweird.f32 %v3047
      %vm3177 = vweird.f32 %v3171
      %vm3178 = vmor %vm3176, %vm3177
      %v3179 = vsel %vm3178, %v3171, %v3175
      %v3180 = vand.u32 2147483647, %v3047
      %vm3181 = vcmp.eq.f32.partialorder %v3180, 8.507059e+37
      %v3182 = vand.u32 %v3047, 2147483648
      %v3183 = vor.u32 1.1754944e-38, %v3182
      %v3184 = vsel %vm3181, %v3183, %v3179
      %v3185 = vmul.f32 1.0, %v3184
      %v3186 = vrcp.pop %v3048
      %v3187 = vmul.f32 %v3048, %v3186
      %v3188 = vsub.f32 1.0, %v3187
      %v3189 = vmul.f32 %v3186, %v3188
      %v3190 = vadd.f32 %v3186, %v3189
      %vm3191 = vweird.f32 %v3048
      %vm3192 = vweird.f32 %v3186
      %vm3193 = vmor %vm3191, %vm3192
      %v3194 = vsel %vm3193, %v3186, %v3190
      %v3195 = vand.u32 2147483647, %v3048
      %vm3196 = vcmp.eq.f32.partialorder %v3195, 8.507059e+37
      %v3197 = vand.u32 %v3048, 2147483648
      %v3198 = vor.u32 1.1754944e-38, %v3197
      %v3199 = vsel %vm3196, %v3198, %v3194
      %v3200 = vmul.f32 1.0, %v3199
      %v3201 = vrcp.pop %v3049
      %v3202 = vmul.f32 %v3049, %v3201
      %v3203 = vsub.f32 1.0, %v3202
      %v3204 = vmul.f32 %v3201, %v3203
      %v3205 = vadd.f32 %v3201, %v3204
      %vm3206 = vweird.f32 %v3049
      %vm3207 = vweird.f32 %v3201
      %vm3208 = vmor %vm3206, %vm3207
      %v3209 = vsel %vm3208, %v3201, %v3205
      %v3210 = vand.u32 2147483647, %v3049
      %vm3211 = vcmp.eq.f32.partialorder %v3210, 8.507059e+37
      %v3212 = vand.u32 %v3049, 2147483648
      %v3213 = vor.u32 1.1754944e-38, %v3212
      %v3214 = vsel %vm3211, %v3213, %v3209
      %v3215 = vmul.f32 1.0, %v3214
      %v3216 = vrcp.pop %v3050
      %v3217 = vmul.f32 %v3050, %v3216
      %v3218 = vsub.f32 1.0, %v3217
      %v3219 = vmul.f32 %v3216, %v3218
      %v3220 = vadd.f32 %v3216, %v3219
      %vm3221 = vweird.f32 %v3050
      %vm3222 = vweird.f32 %v3216
      %vm3223 = vmor %vm3221, %vm3222
      %v3224 = vsel %vm3223, %v3216, %v3220
      %v3225 = vand.u32 2147483647, %v3050
      %vm3226 = vcmp.eq.f32.partialorder %v3225, 8.507059e+37
      %v3227 = vand.u32 %v3050, 2147483648
      %v3228 = vor.u32 1.1754944e-38, %v3227
      %v3229 = vsel %vm3226, %v3228, %v3224
      %v3230 = vmul.f32 1.0, %v3229
      %v3231 = vtanh.pop %v2999
      %v3232 = vtanh.pop %v3000
      %v3233 = vtanh.pop %v3001
      %v3234 = vtanh.pop %v3002
      %v3235 = vmul.f32 %v3125, %v2610
      %v3236 = vmul.f32 %v3140, %v2611
      %v3237 = vmul.f32 %v3155, %v2612
      %v3238 = vmul.f32 %v3170, %v2613
      %v3239 = vmul.f32 %v3065, %v3231
      %v3240 = vmul.f32 %v3080, %v3232
      %v3241 = vmul.f32 %v3095, %v3233
      %v3242 = vmul.f32 %v3110, %v3234
      %v3243 = vadd.f32 %v3235, %v3239
      %v3244 = vadd.f32 %v3236, %v3240
      %v3245 = vadd.f32 %v3237, %v3241
      %v3246 = vadd.f32 %v3238, %v3242
      %v3247 = vtanh.pop %v3243
      %v3248 = vtanh.pop %v3244
      %v3249 = vtanh.pop %v3245
      %v3250 = vtanh.pop %v3246
      %v3251 = vmul.f32 %v3185, %v3247
      %v3252 = vmul.f32 %v3200, %v3248
      %v3253 = vmul.f32 %v3215, %v3249
      %v3254 = vmul.f32 %v3230, %v3250
      %s3255 = smul.u32 %s2615, 8
      %s3256 = scalar_lea.vmem %s7, %s3255
      %v3257 = vld [vmem:[%s3256] sm:$0xff]
      %v3259 = vsel %vm2873, %v3257, 0
      %3261 = vmatpush.msra.mxu0 0.0
      %3262 = vmatpush.msra.mxu0 0.0
      %3263 = vmatpush.msra.mxu0 0.0
      %3264 = vmatpush.msra.mxu0 0.0
      %3265 = vmatpush.msra.mxu0 0.0
      %3266 = vmatpush.msra.mxu0 0.0
      %3267 = vmatpush.msra.mxu0 0.0
      %3268 = vmatpush.msra.mxu0 0.0
      %3269 = vmatpush.msra.mxu0 0.0
      %3270 = vmatpush.msra.mxu0 0.0
      %3271 = vmatpush.msra.mxu0 0.0
      %3272 = vmatpush.msra.mxu0 0.0
      %3273 = vmatpush.msra.mxu0 %v3254
      %3274 = vmatpush.msra.mxu0 %v3253
      %3275 = vmatpush.msra.mxu0 %v3252
      %3276 = vmatpush.msra.mxu0 %v3251
      %3277 = vmatmul.f32.gmra.mxu0 %v3259
      %v3278 = vpop.f32.mrf.mxu0
      %v3279 = vadd.f32 0.0, %v3278
      %3280 = vdwg.mxu0
      %v3281 = vadd.f32 %v2614, %v3279
      %s3282 = sadd.s32 %s2615, 1
      %s3283 = ssub.s32 126, %s2615
      %s3284 = smul.u32 %s3282, 16
      %s3285 = scalar_lea.vmem [#allocation2], %s3284
      %v3286 = vld [vmem:[%s3285] sm:$0xff]
      %v3287 = vld [vmem:[%s3285 + $0x8] sm:$0xff]
      %s3288 = scalar_lea.vmem [#allocation3], %s3284
      %v3289 = vld [vmem:[%s3288] sm:$0xff]
      %v3290 = vld [vmem:[%s3288 + $0x8] sm:$0xff]
      %s3291 = smul.u32 %s3283, 16
      %s3292 = scalar_lea.vmem [#allocation2], %s3291
      %v3293 = vld [vmem:[%s3292] sm:$0xff]
      %v3294 = vld [vmem:[%s3292 + $0x8] sm:$0xff]
      %s3295 = scalar_lea.vmem [#allocation3], %s3291
      %v3296 = vld [vmem:[%s3295] sm:$0xff]
      %v3297 = vld [vmem:[%s3295 + $0x8] sm:$0xff]
      %3298 = vmatpush.msra.mxu0 0.0
      %3299 = vmatpush.msra.mxu0 0.0
      %3300 = vmatpush.msra.mxu0 0.0
      %3301 = vmatpush.msra.mxu0 0.0
      %3302 = vmatpush.msra.mxu0 0.0
      %3303 = vmatpush.msra.mxu0 0.0
      %3304 = vmatpush.msra.mxu0 0.0
      %3305 = vmatpush.msra.mxu0 0.0
      %3306 = vmatpush.msra.mxu0 %v3297
      %3307 = vmatpush.msra.mxu0 %v3296
      %3308 = vmatpush.msra.mxu0 %v3294
      %3309 = vmatpush.msra.mxu0 %v3293
      %3310 = vmatpush.msra.mxu0 %v3290
      %3311 = vmatpush.msra.mxu0 %v3289
      %3312 = vmatpush.msra.mxu0 %v3287
      %3313 = vmatpush.msra.mxu0 %v3286
      %3314 = vmatmul.f32.gmra.mxu0 %v2745
      %v3315 = vpop.f32.mrf.mxu0
      %v3316 = vadd.f32 %v2666, %v3315
      %3317 = vmatmul.f32.gmra.mxu0 %v2748
      %v3318 = vpop.f32.mrf.mxu0
      %v3319 = vadd.f32 %v2671, %v3318
      %3320 = vmatmul.f32.gmra.mxu0 %v2751
      %v3321 = vpop.f32.mrf.mxu0
      %v3322 = vadd.f32 %v2676, %v3321
      %3323 = vmatmul.f32.gmra.mxu0 %v2754
      %v3324 = vpop.f32.mrf.mxu0
      %v3325 = vadd.f32 %v2681, %v3324
      %3326 = vmatmul.f32.gmra.mxu0 %v2757
      %v3327 = vpop.f32.mrf.mxu0
      %v3328 = vadd.f32 %v2686, %v3327
      %3329 = vmatmul.f32.gmra.mxu0 %v2760
      %v3330 = vpop.f32.mrf.mxu0
      %v3331 = vadd.f32 %v2691, %v3330
      %3332 = vmatmul.f32.gmra.mxu0 %v2763
      %v3333 = vpop.f32.mrf.mxu0
      %v3334 = vadd.f32 %v2696, %v3333
      %3335 = vmatmul.f32.gmra.mxu0 %v2766
      %v3336 = vpop.f32.mrf.mxu0
      %v3337 = vadd.f32 %v2701, %v3336
      %3338 = vmatmul.f32.gmra.mxu0 %v2769
      %v3339 = vpop.f32.mrf.mxu0
      %v3340 = vadd.f32 %v2706, %v3339
      %3341 = vmatmul.f32.gmra.mxu0 %v2772
      %v3342 = vpop.f32.mrf.mxu0
      %v3343 = vadd.f32 %v2711, %v3342
      %3344 = vmatmul.f32.gmra.mxu0 %v2775
      %v3345 = vpop.f32.mrf.mxu0
      %v3346 = vadd.f32 %v2716, %v3345
      %3347 = vmatmul.f32.gmra.mxu0 %v2778
      %v3348 = vpop.f32.mrf.mxu0
      %v3349 = vadd.f32 %v2721, %v3348
      %3350 = vmatmul.f32.gmra.mxu0 %v2781
      %v3351 = vpop.f32.mrf.mxu0
      %v3352 = vadd.f32 %v2726, %v3351
      %3353 = vmatmul.f32.gmra.mxu0 %v2784
      %v3354 = vpop.f32.mrf.mxu0
      %v3355 = vadd.f32 %v2731, %v3354
      %3356 = vmatmul.f32.gmra.mxu0 %v2787
      %v3357 = vpop.f32.mrf.mxu0
      %v3358 = vadd.f32 %v2736, %v3357
      %3359 = vmatmul.f32.gmra.mxu0 %v2790
      %v3360 = vpop.f32.mrf.mxu0
      %v3361 = vadd.f32 %v2741, %v3360
      %3362 = vdwg.mxu0
      %3363 = vmatpush.msra.mxu0 0.0
      %3364 = vmatpush.msra.mxu0 0.0
      %3365 = vmatpush.msra.mxu0 0.0
      %3366 = vmatpush.msra.mxu0 0.0
      %3367 = vmatpush.msra.mxu0 0.0
      %3368 = vmatpush.msra.mxu0 0.0
      %3369 = vmatpush.msra.mxu0 0.0
      %3370 = vmatpush.msra.mxu0 0.0
      %3371 = vmatpush.msra.mxu0 0.0
      %3372 = vmatpush.msra.mxu0 0.0
      %3373 = vmatpush.msra.mxu0 0.0
      %3374 = vmatpush.msra.mxu0 0.0
      %3375 = vmatpush.msra.mxu0 %v3254
      %3376 = vmatpush.msra.mxu0 %v3253
      %3377 = vmatpush.msra.mxu0 %v3252
      %3378 = vmatpush.msra.mxu0 %v3251
      %3379 = vmatmul.f32.gmra.mxu0 %v2875
      %v3380 = vpop.f32.mrf.mxu0
      %v3381 = vadd.f32 0.0, %v3380
      %3382 = vmatmul.f32.gmra.mxu0 %v2878
      %v3383 = vpop.f32.mrf.mxu0
      %v3384 = vadd.f32 0.0, %v3383
      %3385 = vmatmul.f32.gmra.mxu0 %v2881
      %v3386 = vpop.f32.mrf.mxu0
      %v3387 = vadd.f32 0.0, %v3386
      %3388 = vmatmul.f32.gmra.mxu0 %v2884
      %v3389 = vpop.f32.mrf.mxu0
      %v3390 = vadd.f32 0.0, %v3389
      %3391 = vmatmul.f32.gmra.mxu0 %v2887
      %v3392 = vpop.f32.mrf.mxu0
      %v3393 = vadd.f32 0.0, %v3392
      %3394 = vmatmul.f32.gmra.mxu0 %v2890
      %v3395 = vpop.f32.mrf.mxu0
      %v3396 = vadd.f32 0.0, %v3395
      %3397 = vmatmul.f32.gmra.mxu0 %v2893
      %v3398 = vpop.f32.mrf.mxu0
      %v3399 = vadd.f32 0.0, %v3398
      %3400 = vmatmul.f32.gmra.mxu0 %v2896
      %v3401 = vpop.f32.mrf.mxu0
      %v3402 = vadd.f32 0.0, %v3401
      %3403 = vmatmul.f32.gmra.mxu0 %v2899
      %v3404 = vpop.f32.mrf.mxu0
      %v3405 = vadd.f32 0.0, %v3404
      %3406 = vmatmul.f32.gmra.mxu0 %v2902
      %v3407 = vpop.f32.mrf.mxu0
      %v3408 = vadd.f32 0.0, %v3407
      %3409 = vmatmul.f32.gmra.mxu0 %v2905
      %v3410 = vpop.f32.mrf.mxu0
      %v3411 = vadd.f32 0.0, %v3410
      %3412 = vmatmul.f32.gmra.mxu0 %v2908
      %v3413 = vpop.f32.mrf.mxu0
      %v3414 = vadd.f32 0.0, %v3413
      %3415 = vmatmul.f32.gmra.mxu0 %v2911
      %v3416 = vpop.f32.mrf.mxu0
      %v3417 = vadd.f32 0.0, %v3416
      %3418 = vmatmul.f32.gmra.mxu0 %v2914
      %v3419 = vpop.f32.mrf.mxu0
      %v3420 = vadd.f32 0.0, %v3419
      %3421 = vmatmul.f32.gmra.mxu0 %v2917
      %v3422 = vpop.f32.mrf.mxu0
      %v3423 = vadd.f32 0.0, %v3422
      %3424 = vmatmul.f32.gmra.mxu0 %v2920
      %v3425 = vpop.f32.mrf.mxu0
      %v3426 = vadd.f32 0.0, %v3425
      %3427 = vdwg.mxu0
      %v3428 = vadd.f32 %v3316, %v3381
      %v3429 = vadd.f32 %v3319, %v3384
      %v3430 = vadd.f32 %v3322, %v3387
      %v3431 = vadd.f32 %v3325, %v3390
      %v3432 = vadd.f32 %v3328, %v3393
      %v3433 = vadd.f32 %v3331, %v3396
      %v3434 = vadd.f32 %v3334, %v3399
      %v3435 = vadd.f32 %v3337, %v3402
      %v3436 = vadd.f32 %v3340, %v3405
      %v3437 = vadd.f32 %v3343, %v3408
      %v3438 = vadd.f32 %v3346, %v3411
      %v3439 = vadd.f32 %v3349, %v3414
      %v3440 = vadd.f32 %v3352, %v3417
      %v3441 = vadd.f32 %v3355, %v3420
      %v3442 = vadd.f32 %v3358, %v3423
      %v3443 = vadd.f32 %v3361, %v3426
      %v3444 = vxor.u32 %v3428, 2147483648
      %v3445 = vxor.u32 %v3429, 2147483648
      %v3446 = vxor.u32 %v3430, 2147483648
      %v3447 = vxor.u32 %v3431, 2147483648
      %v3448 = vxor.u32 %v3432, 2147483648
      %v3449 = vxor.u32 %v3433, 2147483648
      %v3450 = vxor.u32 %v3434, 2147483648
      %v3451 = vxor.u32 %v3435, 2147483648
      %v3452 = vxor.u32 %v3436, 2147483648
      %v3453 = vxor.u32 %v3437, 2147483648
      %v3454 = vxor.u32 %v3438, 2147483648
      %v3455 = vxor.u32 %v3439, 2147483648
      %v3456 = vmul.f32 %v3444, 1.442695
      %v3457 = vpow.pop %v3456
      %v3458 = vmul.f32 %v3445, 1.442695
      %v3459 = vpow.pop %v3458
      %v3460 = vmul.f32 %v3446, 1.442695
      %v3461 = vpow.pop %v3460
      %v3462 = vmul.f32 %v3447, 1.442695
      %v3463 = vpow.pop %v3462
      %v3464 = vmul.f32 %v3448, 1.442695
      %v3465 = vpow.pop %v3464
      %v3466 = vmul.f32 %v3449, 1.442695
      %v3467 = vpow.pop %v3466
      %v3468 = vmul.f32 %v3450, 1.442695
      %v3469 = vpow.pop %v3468
      %v3470 = vmul.f32 %v3451, 1.442695
      %v3471 = vpow.pop %v3470
      %v3472 = vmul.f32 %v3452, 1.442695
      %v3473 = vpow.pop %v3472
      %v3474 = vmul.f32 %v3453, 1.442695
      %v3475 = vpow.pop %v3474
      %v3476 = vmul.f32 %v3454, 1.442695
      %v3477 = vpow.pop %v3476
      %v3478 = vmul.f32 %v3455, 1.442695
      %v3479 = vpow.pop %v3478
      %v3480 = vadd.f32 %v3457, 1.0
      %v3481 = vadd.f32 %v3459, 1.0
      %v3482 = vadd.f32 %v3461, 1.0
      %v3483 = vadd.f32 %v3463, 1.0
      %v3484 = vadd.f32 %v3465, 1.0
      %v3485 = vadd.f32 %v3467, 1.0
      %v3486 = vadd.f32 %v3469, 1.0
      %v3487 = vadd.f32 %v3471, 1.0
      %v3488 = vadd.f32 %v3473, 1.0
      %v3489 = vadd.f32 %v3475, 1.0
      %v3490 = vadd.f32 %v3477, 1.0
      %v3491 = vadd.f32 %v3479, 1.0
      %v3492 = vrcp.pop %v3480
      %v3493 = vmul.f32 %v3480, %v3492
      %v3494 = vsub.f32 1.0, %v3493
      %v3495 = vmul.f32 %v3492, %v3494
      %v3496 = vadd.f32 %v3492, %v3495
      %vm3497 = vweird.f32 %v3480
      %vm3498 = vweird.f32 %v3492
      %vm3499 = vmor %vm3497, %vm3498
      %v3500 = vsel %vm3499, %v3492, %v3496
      %v3501 = vand.u32 2147483647, %v3480
      %vm3502 = vcmp.eq.f32.partialorder %v3501, 8.507059e+37
      %v3503 = vand.u32 %v3480, 2147483648
      %v3504 = vor.u32 1.1754944e-38, %v3503
      %v3505 = vsel %vm3502, %v3504, %v3500
      %v3506 = vmul.f32 1.0, %v3505
      %v3507 = vrcp.pop %v3481
      %v3508 = vmul.f32 %v3481, %v3507
      %v3509 = vsub.f32 1.0, %v3508
      %v3510 = vmul.f32 %v3507, %v3509
      %v3511 = vadd.f32 %v3507, %v3510
      %vm3512 = vweird.f32 %v3481
      %vm3513 = vweird.f32 %v3507
      %vm3514 = vmor %vm3512, %vm3513
      %v3515 = vsel %vm3514, %v3507, %v3511
      %v3516 = vand.u32 2147483647, %v3481
      %vm3517 = vcmp.eq.f32.partialorder %v3516, 8.507059e+37
      %v3518 = vand.u32 %v3481, 2147483648
      %v3519 = vor.u32 1.1754944e-38, %v3518
      %v3520 = vsel %vm3517, %v3519, %v3515
      %v3521 = vmul.f32 1.0, %v3520
      %v3522 = vrcp.pop %v3482
      %v3523 = vmul.f32 %v3482, %v3522
      %v3524 = vsub.f32 1.0, %v3523
      %v3525 = vmul.f32 %v3522, %v3524
      %v3526 = vadd.f32 %v3522, %v3525
      %vm3527 = vweird.f32 %v3482
      %vm3528 = vweird.f32 %v3522
      %vm3529 = vmor %vm3527, %vm3528
      %v3530 = vsel %vm3529, %v3522, %v3526
      %v3531 = vand.u32 2147483647, %v3482
      %vm3532 = vcmp.eq.f32.partialorder %v3531, 8.507059e+37
      %v3533 = vand.u32 %v3482, 2147483648
      %v3534 = vor.u32 1.1754944e-38, %v3533
      %v3535 = vsel %vm3532, %v3534, %v3530
      %v3536 = vmul.f32 1.0, %v3535
      %v3537 = vrcp.pop %v3483
      %v3538 = vmul.f32 %v3483, %v3537
      %v3539 = vsub.f32 1.0, %v3538
      %v3540 = vmul.f32 %v3537, %v3539
      %v3541 = vadd.f32 %v3537, %v3540
      %vm3542 = vweird.f32 %v3483
      %vm3543 = vweird.f32 %v3537
      %vm3544 = vmor %vm3542, %vm3543
      %v3545 = vsel %vm3544, %v3537, %v3541
      %v3546 = vand.u32 2147483647, %v3483
      %vm3547 = vcmp.eq.f32.partialorder %v3546, 8.507059e+37
      %v3548 = vand.u32 %v3483, 2147483648
      %v3549 = vor.u32 1.1754944e-38, %v3548
      %v3550 = vsel %vm3547, %v3549, %v3545
      %v3551 = vmul.f32 1.0, %v3550
      %v3552 = vrcp.pop %v3484
      %v3553 = vmul.f32 %v3484, %v3552
      %v3554 = vsub.f32 1.0, %v3553
      %v3555 = vmul.f32 %v3552, %v3554
      %v3556 = vadd.f32 %v3552, %v3555
      %vm3557 = vweird.f32 %v3484
      %vm3558 = vweird.f32 %v3552
      %vm3559 = vmor %vm3557, %vm3558
      %v3560 = vsel %vm3559, %v3552, %v3556
      %v3561 = vand.u32 2147483647, %v3484
      %vm3562 = vcmp.eq.f32.partialorder %v3561, 8.507059e+37
      %v3563 = vand.u32 %v3484, 2147483648
      %v3564 = vor.u32 1.1754944e-38, %v3563
      %v3565 = vsel %vm3562, %v3564, %v3560
      %v3566 = vmul.f32 1.0, %v3565
      %v3567 = vrcp.pop %v3485
      %v3568 = vmul.f32 %v3485, %v3567
      %v3569 = vsub.f32 1.0, %v3568
      %v3570 = vmul.f32 %v3567, %v3569
      %v3571 = vadd.f32 %v3567, %v3570
      %vm3572 = vweird.f32 %v3485
      %vm3573 = vweird.f32 %v3567
      %vm3574 = vmor %vm3572, %vm3573
      %v3575 = vsel %vm3574, %v3567, %v3571
      %v3576 = vand.u32 2147483647, %v3485
      %vm3577 = vcmp.eq.f32.partialorder %v3576, 8.507059e+37
      %v3578 = vand.u32 %v3485, 2147483648
      %v3579 = vor.u32 1.1754944e-38, %v3578
      %v3580 = vsel %vm3577, %v3579, %v3575
      %v3581 = vmul.f32 1.0, %v3580
      %v3582 = vrcp.pop %v3486
      %v3583 = vmul.f32 %v3486, %v3582
      %v3584 = vsub.f32 1.0, %v3583
      %v3585 = vmul.f32 %v3582, %v3584
      %v3586 = vadd.f32 %v3582, %v3585
      %vm3587 = vweird.f32 %v3486
      %vm3588 = vweird.f32 %v3582
      %vm3589 = vmor %vm3587, %vm3588
      %v3590 = vsel %vm3589, %v3582, %v3586
      %v3591 = vand.u32 2147483647, %v3486
      %vm3592 = vcmp.eq.f32.partialorder %v3591, 8.507059e+37
      %v3593 = vand.u32 %v3486, 2147483648
      %v3594 = vor.u32 1.1754944e-38, %v3593
      %v3595 = vsel %vm3592, %v3594, %v3590
      %v3596 = vmul.f32 1.0, %v3595
      %v3597 = vrcp.pop %v3487
      %v3598 = vmul.f32 %v3487, %v3597
      %v3599 = vsub.f32 1.0, %v3598
      %v3600 = vmul.f32 %v3597, %v3599
      %v3601 = vadd.f32 %v3597, %v3600
      %vm3602 = vweird.f32 %v3487
      %vm3603 = vweird.f32 %v3597
      %vm3604 = vmor %vm3602, %vm3603
      %v3605 = vsel %vm3604, %v3597, %v3601
      %v3606 = vand.u32 2147483647, %v3487
      %vm3607 = vcmp.eq.f32.partialorder %v3606, 8.507059e+37
      %v3608 = vand.u32 %v3487, 2147483648
      %v3609 = vor.u32 1.1754944e-38, %v3608
      %v3610 = vsel %vm3607, %v3609, %v3605
      %v3611 = vmul.f32 1.0, %v3610
      %v3612 = vrcp.pop %v3488
      %v3613 = vmul.f32 %v3488, %v3612
      %v3614 = vsub.f32 1.0, %v3613
      %v3615 = vmul.f32 %v3612, %v3614
      %v3616 = vadd.f32 %v3612, %v3615
      %vm3617 = vweird.f32 %v3488
      %vm3618 = vweird.f32 %v3612
      %vm3619 = vmor %vm3617, %vm3618
      %v3620 = vsel %vm3619, %v3612, %v3616
      %v3621 = vand.u32 2147483647, %v3488
      %vm3622 = vcmp.eq.f32.partialorder %v3621, 8.507059e+37
      %v3623 = vand.u32 %v3488, 2147483648
      %v3624 = vor.u32 1.1754944e-38, %v3623
      %v3625 = vsel %vm3622, %v3624, %v3620
      %v3626 = vmul.f32 1.0, %v3625
      %v3627 = vrcp.pop %v3489
      %v3628 = vmul.f32 %v3489, %v3627
      %v3629 = vsub.f32 1.0, %v3628
      %v3630 = vmul.f32 %v3627, %v3629
      %v3631 = vadd.f32 %v3627, %v3630
      %vm3632 = vweird.f32 %v3489
      %vm3633 = vweird.f32 %v3627
      %vm3634 = vmor %vm3632, %vm3633
      %v3635 = vsel %vm3634, %v3627, %v3631
      %v3636 = vand.u32 2147483647, %v3489
      %vm3637 = vcmp.eq.f32.partialorder %v3636, 8.507059e+37
      %v3638 = vand.u32 %v3489, 2147483648
      %v3639 = vor.u32 1.1754944e-38, %v3638
      %v3640 = vsel %vm3637, %v3639, %v3635
      %v3641 = vmul.f32 1.0, %v3640
      %v3642 = vrcp.pop %v3490
      %v3643 = vmul.f32 %v3490, %v3642
      %v3644 = vsub.f32 1.0, %v3643
      %v3645 = vmul.f32 %v3642, %v3644
      %v3646 = vadd.f32 %v3642, %v3645
      %vm3647 = vweird.f32 %v3490
      %vm3648 = vweird.f32 %v3642
      %vm3649 = vmor %vm3647, %vm3648
      %v3650 = vsel %vm3649, %v3642, %v3646
      %v3651 = vand.u32 2147483647, %v3490
      %vm3652 = vcmp.eq.f32.partialorder %v3651, 8.507059e+37
      %v3653 = vand.u32 %v3490, 2147483648
      %v3654 = vor.u32 1.1754944e-38, %v3653
      %v3655 = vsel %vm3652, %v3654, %v3650
      %v3656 = vmul.f32 1.0, %v3655
      %v3657 = vrcp.pop %v3491
      %v3658 = vmul.f32 %v3491, %v3657
      %v3659 = vsub.f32 1.0, %v3658
      %v3660 = vmul.f32 %v3657, %v3659
      %v3661 = vadd.f32 %v3657, %v3660
      %vm3662 = vweird.f32 %v3491
      %vm3663 = vweird.f32 %v3657
      %vm3664 = vmor %vm3662, %vm3663
      %v3665 = vsel %vm3664, %v3657, %v3661
      %v3666 = vand.u32 2147483647, %v3491
      %vm3667 = vcmp.eq.f32.partialorder %v3666, 8.507059e+37
      %v3668 = vand.u32 %v3491, 2147483648
      %v3669 = vor.u32 1.1754944e-38, %v3668
      %v3670 = vsel %vm3667, %v3669, %v3665
      %v3671 = vmul.f32 1.0, %v3670
      %v3672 = vtanh.pop %v3440
      %v3673 = vtanh.pop %v3441
      %v3674 = vtanh.pop %v3442
      %v3675 = vtanh.pop %v3443
      %v3676 = vmul.f32 %v3566, %v3243
      %v3677 = vmul.f32 %v3581, %v3244
      %v3678 = vmul.f32 %v3596, %v3245
      %v3679 = vmul.f32 %v3611, %v3246
      %v3680 = vmul.f32 %v3506, %v3672
      %v3681 = vmul.f32 %v3521, %v3673
      %v3682 = vmul.f32 %v3536, %v3674
      %v3683 = vmul.f32 %v3551, %v3675
      %v3684 = vadd.f32 %v3676, %v3680
      %v3685 = vadd.f32 %v3677, %v3681
      %v3686 = vadd.f32 %v3678, %v3682
      %v3687 = vadd.f32 %v3679, %v3683
      %v3688 = vtanh.pop %v3684
      %v3689 = vtanh.pop %v3685
      %v3690 = vtanh.pop %v3686
      %v3691 = vtanh.pop %v3687
      %v3692 = vmul.f32 %v3626, %v3688
      %v3693 = vmul.f32 %v3641, %v3689
      %v3694 = vmul.f32 %v3656, %v3690
      %v3695 = vmul.f32 %v3671, %v3691
      %s3696 = smul.u32 %s3282, 8
      %s3697 = scalar_lea.vmem %s7, %s3696
      %v3698 = vld [vmem:[%s3697] sm:$0xff]
      %v3700 = vsel %vm2873, %v3698, 0
      %3702 = vmatpush.msra.mxu0 0.0
      %3703 = vmatpush.msra.mxu0 0.0
      %3704 = vmatpush.msra.mxu0 0.0
      %3705 = vmatpush.msra.mxu0 0.0
      %3706 = vmatpush.msra.mxu0 0.0
      %3707 = vmatpush.msra.mxu0 0.0
      %3708 = vmatpush.msra.mxu0 0.0
      %3709 = vmatpush.msra.mxu0 0.0
      %3710 = vmatpush.msra.mxu0 0.0
      %3711 = vmatpush.msra.mxu0 0.0
      %3712 = vmatpush.msra.mxu0 0.0
      %3713 = vmatpush.msra.mxu0 0.0
      %3714 = vmatpush.msra.mxu0 %v3695
      %3715 = vmatpush.msra.mxu0 %v3694
      %3716 = vmatpush.msra.mxu0 %v3693
      %3717 = vmatpush.msra.mxu0 %v3692
      %3718 = vmatmul.f32.gmra.mxu0 %v3700
      %v3719 = vpop.f32.mrf.mxu0
      %v3720 = vadd.f32 0.0, %v3719
      %3721 = vdwg.mxu0
      %v3722 = vadd.f32 %v3281, %v3720
      %s3723 = sadd.s32 %s2615, 2
      %s3724 = ssub.s32 125, %s2615
      %s3725 = smul.u32 %s3723, 16
      %s3726 = scalar_lea.vmem [#allocation2], %s3725
      %v3727 = vld [vmem:[%s3726] sm:$0xff]
      %v3728 = vld [vmem:[%s3726 + $0x8] sm:$0xff]
      %s3729 = scalar_lea.vmem [#allocation3], %s3725
      %v3730 = vld [vmem:[%s3729] sm:$0xff]
      %v3731 = vld [vmem:[%s3729 + $0x8] sm:$0xff]
      %s3732 = smul.u32 %s3724, 16
      %s3733 = scalar_lea.vmem [#allocation2], %s3732
      %v3734 = vld [vmem:[%s3733] sm:$0xff]
      %v3735 = vld [vmem:[%s3733 + $0x8] sm:$0xff]
      %s3736 = scalar_lea.vmem [#allocation3], %s3732
      %v3737 = vld [vmem:[%s3736] sm:$0xff]
      %v3738 = vld [vmem:[%s3736 + $0x8] sm:$0xff]
      %3739 = vmatpush.msra.mxu0 0.0
      %3740 = vmatpush.msra.mxu0 0.0
      %3741 = vmatpush.msra.mxu0 0.0
      %3742 = vmatpush.msra.mxu0 0.0
      %3743 = vmatpush.msra.mxu0 0.0
      %3744 = vmatpush.msra.mxu0 0.0
      %3745 = vmatpush.msra.mxu0 0.0
      %3746 = vmatpush.msra.mxu0 0.0
      %3747 = vmatpush.msra.mxu0 %v3738
      %3748 = vmatpush.msra.mxu0 %v3737
      %3749 = vmatpush.msra.mxu0 %v3735
      %3750 = vmatpush.msra.mxu0 %v3734
      %3751 = vmatpush.msra.mxu0 %v3731
      %3752 = vmatpush.msra.mxu0 %v3730
      %3753 = vmatpush.msra.mxu0 %v3728
      %3754 = vmatpush.msra.mxu0 %v3727
      %3755 = vmatmul.f32.gmra.mxu0 %v2745
      %v3756 = vpop.f32.mrf.mxu0
      %v3757 = vadd.f32 %v2666, %v3756
      %3758 = vmatmul.f32.gmra.mxu0 %v2748
      %v3759 = vpop.f32.mrf.mxu0
      %v3760 = vadd.f32 %v2671, %v3759
      %3761 = vmatmul.f32.gmra.mxu0 %v2751
      %v3762 = vpop.f32.mrf.mxu0
      %v3763 = vadd.f32 %v2676, %v3762
      %3764 = vmatmul.f32.gmra.mxu0 %v2754
      %v3765 = vpop.f32.mrf.mxu0
      %v3766 = vadd.f32 %v2681, %v3765
      %3767 = vmatmul.f32.gmra.mxu0 %v2757
      %v3768 = vpop.f32.mrf.mxu0
      %v3769 = vadd.f32 %v2686, %v3768
      %3770 = vmatmul.f32.gmra.mxu0 %v2760
      %v3771 = vpop.f32.mrf.mxu0
      %v3772 = vadd.f32 %v2691, %v3771
      %3773 = vmatmul.f32.gmra.mxu0 %v2763
      %v3774 = vpop.f32.mrf.mxu0
      %v3775 = vadd.f32 %v2696, %v3774
      %3776 = vmatmul.f32.gmra.mxu0 %v2766
      %v3777 = vpop.f32.mrf.mxu0
      %v3778 = vadd.f32 %v2701, %v3777
      %3779 = vmatmul.f32.gmra.mxu0 %v2769
      %v3780 = vpop.f32.mrf.mxu0
      %v3781 = vadd.f32 %v2706, %v3780
      %3782 = vmatmul.f32.gmra.mxu0 %v2772
      %v3783 = vpop.f32.mrf.mxu0
      %v3784 = vadd.f32 %v2711, %v3783
      %3785 = vmatmul.f32.gmra.mxu0 %v2775
      %v3786 = vpop.f32.mrf.mxu0
      %v3787 = vadd.f32 %v2716, %v3786
      %3788 = vmatmul.f32.gmra.mxu0 %v2778
      %v3789 = vpop.f32.mrf.mxu0
      %v3790 = vadd.f32 %v2721, %v3789
      %3791 = vmatmul.f32.gmra.mxu0 %v2781
      %v3792 = vpop.f32.mrf.mxu0
      %v3793 = vadd.f32 %v2726, %v3792
      %3794 = vmatmul.f32.gmra.mxu0 %v2784
      %v3795 = vpop.f32.mrf.mxu0
      %v3796 = vadd.f32 %v2731, %v3795
      %3797 = vmatmul.f32.gmra.mxu0 %v2787
      %v3798 = vpop.f32.mrf.mxu0
      %v3799 = vadd.f32 %v2736, %v3798
      %3800 = vmatmul.f32.gmra.mxu0 %v2790
      %v3801 = vpop.f32.mrf.mxu0
      %v3802 = vadd.f32 %v2741, %v3801
      %3803 = vdwg.mxu0
      %3804 = vmatpush.msra.mxu0 0.0
      %3805 = vmatpush.msra.mxu0 0.0
      %3806 = vmatpush.msra.mxu0 0.0
      %3807 = vmatpush.msra.mxu0 0.0
      %3808 = vmatpush.msra.mxu0 0.0
      %3809 = vmatpush.msra.mxu0 0.0
      %3810 = vmatpush.msra.mxu0 0.0
      %3811 = vmatpush.msra.mxu0 0.0
      %3812 = vmatpush.msra.mxu0 0.0
      %3813 = vmatpush.msra.mxu0 0.0
      %3814 = vmatpush.msra.mxu0 0.0
      %3815 = vmatpush.msra.mxu0 0.0
      %3816 = vmatpush.msra.mxu0 %v3695
      %3817 = vmatpush.msra.mxu0 %v3694
      %3818 = vmatpush.msra.mxu0 %v3693
      %3819 = vmatpush.msra.mxu0 %v3692
      %3820 = vmatmul.f32.gmra.mxu0 %v2875
      %v3821 = vpop.f32.mrf.mxu0
      %v3822 = vadd.f32 0.0, %v3821
      %3823 = vmatmul.f32.gmra.mxu0 %v2878
      %v3824 = vpop.f32.mrf.mxu0
      %v3825 = vadd.f32 0.0, %v3824
      %3826 = vmatmul.f32.gmra.mxu0 %v2881
      %v3827 = vpop.f32.mrf.mxu0
      %v3828 = vadd.f32 0.0, %v3827
      %3829 = vmatmul.f32.gmra.mxu0 %v2884
      %v3830 = vpop.f32.mrf.mxu0
      %v3831 = vadd.f32 0.0, %v3830
      %3832 = vmatmul.f32.gmra.mxu0 %v2887
      %v3833 = vpop.f32.mrf.mxu0
      %v3834 = vadd.f32 0.0, %v3833
      %3835 = vmatmul.f32.gmra.mxu0 %v2890
      %v3836 = vpop.f32.mrf.mxu0
      %v3837 = vadd.f32 0.0, %v3836
      %3838 = vmatmul.f32.gmra.mxu0 %v2893
      %v3839 = vpop.f32.mrf.mxu0
      %v3840 = vadd.f32 0.0, %v3839
      %3841 = vmatmul.f32.gmra.mxu0 %v2896
      %v3842 = vpop.f32.mrf.mxu0
      %v3843 = vadd.f32 0.0, %v3842
      %3844 = vmatmul.f32.gmra.mxu0 %v2899
      %v3845 = vpop.f32.mrf.mxu0
      %v3846 = vadd.f32 0.0, %v3845
      %3847 = vmatmul.f32.gmra.mxu0 %v2902
      %v3848 = vpop.f32.mrf.mxu0
      %v3849 = vadd.f32 0.0, %v3848
      %3850 = vmatmul.f32.gmra.mxu0 %v2905
      %v3851 = vpop.f32.mrf.mxu0
      %v3852 = vadd.f32 0.0, %v3851
      %3853 = vmatmul.f32.gmra.mxu0 %v2908
      %v3854 = vpop.f32.mrf.mxu0
      %v3855 = vadd.f32 0.0, %v3854
      %3856 = vmatmul.f32.gmra.mxu0 %v2911
      %v3857 = vpop.f32.mrf.mxu0
      %v3858 = vadd.f32 0.0, %v3857
      %3859 = vmatmul.f32.gmra.mxu0 %v2914
      %v3860 = vpop.f32.mrf.mxu0
      %v3861 = vadd.f32 0.0, %v3860
      %3862 = vmatmul.f32.gmra.mxu0 %v2917
      %v3863 = vpop.f32.mrf.mxu0
      %v3864 = vadd.f32 0.0, %v3863
      %3865 = vmatmul.f32.gmra.mxu0 %v2920
      %v3866 = vpop.f32.mrf.mxu0
      %v3867 = vadd.f32 0.0, %v3866
      %3868 = vdwg.mxu0
      %v3869 = vadd.f32 %v3757, %v3822
      %v3870 = vadd.f32 %v3760, %v3825
      %v3871 = vadd.f32 %v3763, %v3828
      %v3872 = vadd.f32 %v3766, %v3831
      %v3873 = vadd.f32 %v3769, %v3834
      %v3874 = vadd.f32 %v3772, %v3837
      %v3875 = vadd.f32 %v3775, %v3840
      %v3876 = vadd.f32 %v3778, %v3843
      %v3877 = vadd.f32 %v3781, %v3846
      %v3878 = vadd.f32 %v3784, %v3849
      %v3879 = vadd.f32 %v3787, %v3852
      %v3880 = vadd.f32 %v3790, %v3855
      %v3881 = vadd.f32 %v3793, %v3858
      %v3882 = vadd.f32 %v3796, %v3861
      %v3883 = vadd.f32 %v3799, %v3864
      %v3884 = vadd.f32 %v3802, %v3867
      %v3885 = vxor.u32 %v3869, 2147483648
      %v3886 = vxor.u32 %v3870, 2147483648
      %v3887 = vxor.u32 %v3871, 2147483648
      %v3888 = vxor.u32 %v3872, 2147483648
      %v3889 = vxor.u32 %v3873, 2147483648
      %v3890 = vxor.u32 %v3874, 2147483648
      %v3891 = vxor.u32 %v3875, 2147483648
      %v3892 = vxor.u32 %v3876, 2147483648
      %v3893 = vxor.u32 %v3877, 2147483648
      %v3894 = vxor.u32 %v3878, 2147483648
      %v3895 = vxor.u32 %v3879, 2147483648
      %v3896 = vxor.u32 %v3880, 2147483648
      %v3897 = vmul.f32 %v3885, 1.442695
      %v3898 = vpow.pop %v3897
      %v3899 = vmul.f32 %v3886, 1.442695
      %v3900 = vpow.pop %v3899
      %v3901 = vmul.f32 %v3887, 1.442695
      %v3902 = vpow.pop %v3901
      %v3903 = vmul.f32 %v3888, 1.442695
      %v3904 = vpow.pop %v3903
      %v3905 = vmul.f32 %v3889, 1.442695
      %v3906 = vpow.pop %v3905
      %v3907 = vmul.f32 %v3890, 1.442695
      %v3908 = vpow.pop %v3907
      %v3909 = vmul.f32 %v3891, 1.442695
      %v3910 = vpow.pop %v3909
      %v3911 = vmul.f32 %v3892, 1.442695
      %v3912 = vpow.pop %v3911
      %v3913 = vmul.f32 %v3893, 1.442695
      %v3914 = vpow.pop %v3913
      %v3915 = vmul.f32 %v3894, 1.442695
      %v3916 = vpow.pop %v3915
      %v3917 = vmul.f32 %v3895, 1.442695
      %v3918 = vpow.pop %v3917
      %v3919 = vmul.f32 %v3896, 1.442695
      %v3920 = vpow.pop %v3919
      %v3921 = vadd.f32 %v3898, 1.0
      %v3922 = vadd.f32 %v3900, 1.0
      %v3923 = vadd.f32 %v3902, 1.0
      %v3924 = vadd.f32 %v3904, 1.0
      %v3925 = vadd.f32 %v3906, 1.0
      %v3926 = vadd.f32 %v3908, 1.0
      %v3927 = vadd.f32 %v3910, 1.0
      %v3928 = vadd.f32 %v3912, 1.0
      %v3929 = vadd.f32 %v3914, 1.0
      %v3930 = vadd.f32 %v3916, 1.0
      %v3931 = vadd.f32 %v3918, 1.0
      %v3932 = vadd.f32 %v3920, 1.0
      %v3933 = vrcp.pop %v3921
      %v3934 = vmul.f32 %v3921, %v3933
      %v3935 = vsub.f32 1.0, %v3934
      %v3936 = vmul.f32 %v3933, %v3935
      %v3937 = vadd.f32 %v3933, %v3936
      %vm3938 = vweird.f32 %v3921
      %vm3939 = vweird.f32 %v3933
      %vm3940 = vmor %vm3938, %vm3939
      %v3941 = vsel %vm3940, %v3933, %v3937
      %v3942 = vand.u32 2147483647, %v3921
      %vm3943 = vcmp.eq.f32.partialorder %v3942, 8.507059e+37
      %v3944 = vand.u32 %v3921, 2147483648
      %v3945 = vor.u32 1.1754944e-38, %v3944
      %v3946 = vsel %vm3943, %v3945, %v3941
      %v3947 = vmul.f32 1.0, %v3946
      %v3948 = vrcp.pop %v3922
      %v3949 = vmul.f32 %v3922, %v3948
      %v3950 = vsub.f32 1.0, %v3949
      %v3951 = vmul.f32 %v3948, %v3950
      %v3952 = vadd.f32 %v3948, %v3951
      %vm3953 = vweird.f32 %v3922
      %vm3954 = vweird.f32 %v3948
      %vm3955 = vmor %vm3953, %vm3954
      %v3956 = vsel %vm3955, %v3948, %v3952
      %v3957 = vand.u32 2147483647, %v3922
      %vm3958 = vcmp.eq.f32.partialorder %v3957, 8.507059e+37
      %v3959 = vand.u32 %v3922, 2147483648
      %v3960 = vor.u32 1.1754944e-38, %v3959
      %v3961 = vsel %vm3958, %v3960, %v3956
      %v3962 = vmul.f32 1.0, %v3961
      %v3963 = vrcp.pop %v3923
      %v3964 = vmul.f32 %v3923, %v3963
      %v3965 = vsub.f32 1.0, %v3964
      %v3966 = vmul.f32 %v3963, %v3965
      %v3967 = vadd.f32 %v3963, %v3966
      %vm3968 = vweird.f32 %v3923
      %vm3969 = vweird.f32 %v3963
      %vm3970 = vmor %vm3968, %vm3969
      %v3971 = vsel %vm3970, %v3963, %v3967
      %v3972 = vand.u32 2147483647, %v3923
      %vm3973 = vcmp.eq.f32.partialorder %v3972, 8.507059e+37
      %v3974 = vand.u32 %v3923, 2147483648
      %v3975 = vor.u32 1.1754944e-38, %v3974
      %v3976 = vsel %vm3973, %v3975, %v3971
      %v3977 = vmul.f32 1.0, %v3976
      %v3978 = vrcp.pop %v3924
      %v3979 = vmul.f32 %v3924, %v3978
      %v3980 = vsub.f32 1.0, %v3979
      %v3981 = vmul.f32 %v3978, %v3980
      %v3982 = vadd.f32 %v3978, %v3981
      %vm3983 = vweird.f32 %v3924
      %vm3984 = vweird.f32 %v3978
      %vm3985 = vmor %vm3983, %vm3984
      %v3986 = vsel %vm3985, %v3978, %v3982
      %v3987 = vand.u32 2147483647, %v3924
      %vm3988 = vcmp.eq.f32.partialorder %v3987, 8.507059e+37
      %v3989 = vand.u32 %v3924, 2147483648
      %v3990 = vor.u32 1.1754944e-38, %v3989
      %v3991 = vsel %vm3988, %v3990, %v3986
      %v3992 = vmul.f32 1.0, %v3991
      %v3993 = vrcp.pop %v3925
      %v3994 = vmul.f32 %v3925, %v3993
      %v3995 = vsub.f32 1.0, %v3994
      %v3996 = vmul.f32 %v3993, %v3995
      %v3997 = vadd.f32 %v3993, %v3996
      %vm3998 = vweird.f32 %v3925
      %vm3999 = vweird.f32 %v3993
      %vm4000 = vmor %vm3998, %vm3999
      %v4001 = vsel %vm4000, %v3993, %v3997
      %v4002 = vand.u32 2147483647, %v3925
      %vm4003 = vcmp.eq.f32.partialorder %v4002, 8.507059e+37
      %v4004 = vand.u32 %v3925, 2147483648
      %v4005 = vor.u32 1.1754944e-38, %v4004
      %v4006 = vsel %vm4003, %v4005, %v4001
      %v4007 = vmul.f32 1.0, %v4006
      %v4008 = vrcp.pop %v3926
      %v4009 = vmul.f32 %v3926, %v4008
      %v4010 = vsub.f32 1.0, %v4009
      %v4011 = vmul.f32 %v4008, %v4010
      %v4012 = vadd.f32 %v4008, %v4011
      %vm4013 = vweird.f32 %v3926
      %vm4014 = vweird.f32 %v4008
      %vm4015 = vmor %vm4013, %vm4014
      %v4016 = vsel %vm4015, %v4008, %v4012
      %v4017 = vand.u32 2147483647, %v3926
      %vm4018 = vcmp.eq.f32.partialorder %v4017, 8.507059e+37
      %v4019 = vand.u32 %v3926, 2147483648
      %v4020 = vor.u32 1.1754944e-38, %v4019
      %v4021 = vsel %vm4018, %v4020, %v4016
      %v4022 = vmul.f32 1.0, %v4021
      %v4023 = vrcp.pop %v3927
      %v4024 = vmul.f32 %v3927, %v4023
      %v4025 = vsub.f32 1.0, %v4024
      %v4026 = vmul.f32 %v4023, %v4025
      %v4027 = vadd.f32 %v4023, %v4026
      %vm4028 = vweird.f32 %v3927
      %vm4029 = vweird.f32 %v4023
      %vm4030 = vmor %vm4028, %vm4029
      %v4031 = vsel %vm4030, %v4023, %v4027
      %v4032 = vand.u32 2147483647, %v3927
      %vm4033 = vcmp.eq.f32.partialorder %v4032, 8.507059e+37
      %v4034 = vand.u32 %v3927, 2147483648
      %v4035 = vor.u32 1.1754944e-38, %v4034
      %v4036 = vsel %vm4033, %v4035, %v4031
      %v4037 = vmul.f32 1.0, %v4036
      %v4038 = vrcp.pop %v3928
      %v4039 = vmul.f32 %v3928, %v4038
      %v4040 = vsub.f32 1.0, %v4039
      %v4041 = vmul.f32 %v4038, %v4040
      %v4042 = vadd.f32 %v4038, %v4041
      %vm4043 = vweird.f32 %v3928
      %vm4044 = vweird.f32 %v4038
      %vm4045 = vmor %vm4043, %vm4044
      %v4046 = vsel %vm4045, %v4038, %v4042
      %v4047 = vand.u32 2147483647, %v3928
      %vm4048 = vcmp.eq.f32.partialorder %v4047, 8.507059e+37
      %v4049 = vand.u32 %v3928, 2147483648
      %v4050 = vor.u32 1.1754944e-38, %v4049
      %v4051 = vsel %vm4048, %v4050, %v4046
      %v4052 = vmul.f32 1.0, %v4051
      %v4053 = vrcp.pop %v3929
      %v4054 = vmul.f32 %v3929, %v4053
      %v4055 = vsub.f32 1.0, %v4054
      %v4056 = vmul.f32 %v4053, %v4055
      %v4057 = vadd.f32 %v4053, %v4056
      %vm4058 = vweird.f32 %v3929
      %vm4059 = vweird.f32 %v4053
      %vm4060 = vmor %vm4058, %vm4059
      %v4061 = vsel %vm4060, %v4053, %v4057
      %v4062 = vand.u32 2147483647, %v3929
      %vm4063 = vcmp.eq.f32.partialorder %v4062, 8.507059e+37
      %v4064 = vand.u32 %v3929, 2147483648
      %v4065 = vor.u32 1.1754944e-38, %v4064
      %v4066 = vsel %vm4063, %v4065, %v4061
      %v4067 = vmul.f32 1.0, %v4066
      %v4068 = vrcp.pop %v3930
      %v4069 = vmul.f32 %v3930, %v4068
      %v4070 = vsub.f32 1.0, %v4069
      %v4071 = vmul.f32 %v4068, %v4070
      %v4072 = vadd.f32 %v4068, %v4071
      %vm4073 = vweird.f32 %v3930
      %vm4074 = vweird.f32 %v4068
      %vm4075 = vmor %vm4073, %vm4074
      %v4076 = vsel %vm4075, %v4068, %v4072
      %v4077 = vand.u32 2147483647, %v3930
      %vm4078 = vcmp.eq.f32.partialorder %v4077, 8.507059e+37
      %v4079 = vand.u32 %v3930, 2147483648
      %v4080 = vor.u32 1.1754944e-38, %v4079
      %v4081 = vsel %vm4078, %v4080, %v4076
      %v4082 = vmul.f32 1.0, %v4081
      %v4083 = vrcp.pop %v3931
      %v4084 = vmul.f32 %v3931, %v4083
      %v4085 = vsub.f32 1.0, %v4084
      %v4086 = vmul.f32 %v4083, %v4085
      %v4087 = vadd.f32 %v4083, %v4086
      %vm4088 = vweird.f32 %v3931
      %vm4089 = vweird.f32 %v4083
      %vm4090 = vmor %vm4088, %vm4089
      %v4091 = vsel %vm4090, %v4083, %v4087
      %v4092 = vand.u32 2147483647, %v3931
      %vm4093 = vcmp.eq.f32.partialorder %v4092, 8.507059e+37
      %v4094 = vand.u32 %v3931, 2147483648
      %v4095 = vor.u32 1.1754944e-38, %v4094
      %v4096 = vsel %vm4093, %v4095, %v4091
      %v4097 = vmul.f32 1.0, %v4096
      %v4098 = vrcp.pop %v3932
      %v4099 = vmul.f32 %v3932, %v4098
      %v4100 = vsub.f32 1.0, %v4099
      %v4101 = vmul.f32 %v4098, %v4100
      %v4102 = vadd.f32 %v4098, %v4101
      %vm4103 = vweird.f32 %v3932
      %vm4104 = vweird.f32 %v4098
      %vm4105 = vmor %vm4103, %vm4104
      %v4106 = vsel %vm4105, %v4098, %v4102
      %v4107 = vand.u32 2147483647, %v3932
      %vm4108 = vcmp.eq.f32.partialorder %v4107, 8.507059e+37
      %v4109 = vand.u32 %v3932, 2147483648
      %v4110 = vor.u32 1.1754944e-38, %v4109
      %v4111 = vsel %vm4108, %v4110, %v4106
      %v4112 = vmul.f32 1.0, %v4111
      %v4113 = vtanh.pop %v3881
      %v4114 = vtanh.pop %v3882
      %v4115 = vtanh.pop %v3883
      %v4116 = vtanh.pop %v3884
      %v4117 = vmul.f32 %v4007, %v3684
      %v4118 = vmul.f32 %v4022, %v3685
      %v4119 = vmul.f32 %v4037, %v3686
      %v4120 = vmul.f32 %v4052, %v3687
      %v4121 = vmul.f32 %v3947, %v4113
      %v4122 = vmul.f32 %v3962, %v4114
      %v4123 = vmul.f32 %v3977, %v4115
      %v4124 = vmul.f32 %v3992, %v4116
      %v4125 = vadd.f32 %v4117, %v4121
      %v4126 = vadd.f32 %v4118, %v4122
      %v4127 = vadd.f32 %v4119, %v4123
      %v4128 = vadd.f32 %v4120, %v4124
      %v4129 = vtanh.pop %v4125
      %v4130 = vtanh.pop %v4126
      %v4131 = vtanh.pop %v4127
      %v4132 = vtanh.pop %v4128
      %v4133 = vmul.f32 %v4067, %v4129
      %v4134 = vmul.f32 %v4082, %v4130
      %v4135 = vmul.f32 %v4097, %v4131
      %v4136 = vmul.f32 %v4112, %v4132
      %s4137 = smul.u32 %s3723, 8
      %s4138 = scalar_lea.vmem %s7, %s4137
      %v4139 = vld [vmem:[%s4138] sm:$0xff]
      %v4141 = vsel %vm2873, %v4139, 0
      %4143 = vmatpush.msra.mxu0 0.0
      %4144 = vmatpush.msra.mxu0 0.0
      %4145 = vmatpush.msra.mxu0 0.0
      %4146 = vmatpush.msra.mxu0 0.0
      %4147 = vmatpush.msra.mxu0 0.0
      %4148 = vmatpush.msra.mxu0 0.0
      %4149 = vmatpush.msra.mxu0 0.0
      %4150 = vmatpush.msra.mxu0 0.0
      %4151 = vmatpush.msra.mxu0 0.0
      %4152 = vmatpush.msra.mxu0 0.0
      %4153 = vmatpush.msra.mxu0 0.0
      %4154 = vmatpush.msra.mxu0 0.0
      %4155 = vmatpush.msra.mxu0 %v4136
      %4156 = vmatpush.msra.mxu0 %v4135
      %4157 = vmatpush.msra.mxu0 %v4134
      %4158 = vmatpush.msra.mxu0 %v4133
      %4159 = vmatmul.f32.gmra.mxu0 %v4141
      %v4160 = vpop.f32.mrf.mxu0
      %v4161 = vadd.f32 0.0, %v4160
      %4162 = vdwg.mxu0
      %v4163 = vadd.f32 %v3722, %v4161
      %s4164 = sadd.s32 %s2615, 3
      %s4165 = ssub.s32 124, %s2615
      %s4166 = smul.u32 %s4164, 16
      %s4167 = scalar_lea.vmem [#allocation2], %s4166
      %v4168 = vld [vmem:[%s4167] sm:$0xff]
      %v4169 = vld [vmem:[%s4167 + $0x8] sm:$0xff]
      %s4170 = scalar_lea.vmem [#allocation3], %s4166
      %v4171 = vld [vmem:[%s4170] sm:$0xff]
      %v4172 = vld [vmem:[%s4170 + $0x8] sm:$0xff]
      %s4173 = smul.u32 %s4165, 16
      %s4174 = scalar_lea.vmem [#allocation2], %s4173
      %v4175 = vld [vmem:[%s4174] sm:$0xff]
      %v4176 = vld [vmem:[%s4174 + $0x8] sm:$0xff]
      %s4177 = scalar_lea.vmem [#allocation3], %s4173
      %v4178 = vld [vmem:[%s4177] sm:$0xff]
      %v4179 = vld [vmem:[%s4177 + $0x8] sm:$0xff]
      %4180 = vmatpush.msra.mxu0 0.0
      %4181 = vmatpush.msra.mxu0 0.0
      %4182 = vmatpush.msra.mxu0 0.0
      %4183 = vmatpush.msra.mxu0 0.0
      %4184 = vmatpush.msra.mxu0 0.0
      %4185 = vmatpush.msra.mxu0 0.0
      %4186 = vmatpush.msra.mxu0 0.0
      %4187 = vmatpush.msra.mxu0 0.0
      %4188 = vmatpush.msra.mxu0 %v4179
      %4189 = vmatpush.msra.mxu0 %v4178
      %4190 = vmatpush.msra.mxu0 %v4176
      %4191 = vmatpush.msra.mxu0 %v4175
      %4192 = vmatpush.msra.mxu0 %v4172
      %4193 = vmatpush.msra.mxu0 %v4171
      %4194 = vmatpush.msra.mxu0 %v4169
      %4195 = vmatpush.msra.mxu0 %v4168
      %4196 = vmatmul.f32.gmra.mxu0 %v2745
      %v4197 = vpop.f32.mrf.mxu0
      %v4198 = vadd.f32 %v2666, %v4197
      %4199 = vmatmul.f32.gmra.mxu0 %v2748
      %v4200 = vpop.f32.mrf.mxu0
      %v4201 = vadd.f32 %v2671, %v4200
      %4202 = vmatmul.f32.gmra.mxu0 %v2751
      %v4203 = vpop.f32.mrf.mxu0
      %v4204 = vadd.f32 %v2676, %v4203
      %4205 = vmatmul.f32.gmra.mxu0 %v2754
      %v4206 = vpop.f32.mrf.mxu0
      %v4207 = vadd.f32 %v2681, %v4206
      %4208 = vmatmul.f32.gmra.mxu0 %v2757
      %v4209 = vpop.f32.mrf.mxu0
      %v4210 = vadd.f32 %v2686, %v4209
      %4211 = vmatmul.f32.gmra.mxu0 %v2760
      %v4212 = vpop.f32.mrf.mxu0
      %v4213 = vadd.f32 %v2691, %v4212
      %4214 = vmatmul.f32.gmra.mxu0 %v2763
      %v4215 = vpop.f32.mrf.mxu0
      %v4216 = vadd.f32 %v2696, %v4215
      %4217 = vmatmul.f32.gmra.mxu0 %v2766
      %v4218 = vpop.f32.mrf.mxu0
      %v4219 = vadd.f32 %v2701, %v4218
      %4220 = vmatmul.f32.gmra.mxu0 %v2769
      %v4221 = vpop.f32.mrf.mxu0
      %v4222 = vadd.f32 %v2706, %v4221
      %4223 = vmatmul.f32.gmra.mxu0 %v2772
      %v4224 = vpop.f32.mrf.mxu0
      %v4225 = vadd.f32 %v2711, %v4224
      %4226 = vmatmul.f32.gmra.mxu0 %v2775
      %v4227 = vpop.f32.mrf.mxu0
      %v4228 = vadd.f32 %v2716, %v4227
      %4229 = vmatmul.f32.gmra.mxu0 %v2778
      %v4230 = vpop.f32.mrf.mxu0
      %v4231 = vadd.f32 %v2721, %v4230
      %4232 = vmatmul.f32.gmra.mxu0 %v2781
      %v4233 = vpop.f32.mrf.mxu0
      %v4234 = vadd.f32 %v2726, %v4233
      %4235 = vmatmul.f32.gmra.mxu0 %v2784
      %v4236 = vpop.f32.mrf.mxu0
      %v4237 = vadd.f32 %v2731, %v4236
      %4238 = vmatmul.f32.gmra.mxu0 %v2787
      %v4239 = vpop.f32.mrf.mxu0
      %v4240 = vadd.f32 %v2736, %v4239
      %4241 = vmatmul.f32.gmra.mxu0 %v2790
      %v4242 = vpop.f32.mrf.mxu0
      %v4243 = vadd.f32 %v2741, %v4242
      %4244 = vdwg.mxu0
      %4245 = vmatpush.msra.mxu0 0.0
      %4246 = vmatpush.msra.mxu0 0.0
      %4247 = vmatpush.msra.mxu0 0.0
      %4248 = vmatpush.msra.mxu0 0.0
      %4249 = vmatpush.msra.mxu0 0.0
      %4250 = vmatpush.msra.mxu0 0.0
      %4251 = vmatpush.msra.mxu0 0.0
      %4252 = vmatpush.msra.mxu0 0.0
      %4253 = vmatpush.msra.mxu0 0.0
      %4254 = vmatpush.msra.mxu0 0.0
      %4255 = vmatpush.msra.mxu0 0.0
      %4256 = vmatpush.msra.mxu0 0.0
      %4257 = vmatpush.msra.mxu0 %v4136
      %4258 = vmatpush.msra.mxu0 %v4135
      %4259 = vmatpush.msra.mxu0 %v4134
      %4260 = vmatpush.msra.mxu0 %v4133
      %4261 = vmatmul.f32.gmra.mxu0 %v2875
      %v4262 = vpop.f32.mrf.mxu0
      %v4263 = vadd.f32 0.0, %v4262
      %4264 = vmatmul.f32.gmra.mxu0 %v2878
      %v4265 = vpop.f32.mrf.mxu0
      %v4266 = vadd.f32 0.0, %v4265
      %4267 = vmatmul.f32.gmra.mxu0 %v2881
      %v4268 = vpop.f32.mrf.mxu0
      %v4269 = vadd.f32 0.0, %v4268
      %4270 = vmatmul.f32.gmra.mxu0 %v2884
      %v4271 = vpop.f32.mrf.mxu0
      %v4272 = vadd.f32 0.0, %v4271
      %4273 = vmatmul.f32.gmra.mxu0 %v2887
      %v4274 = vpop.f32.mrf.mxu0
      %v4275 = vadd.f32 0.0, %v4274
      %4276 = vmatmul.f32.gmra.mxu0 %v2890
      %v4277 = vpop.f32.mrf.mxu0
      %v4278 = vadd.f32 0.0, %v4277
      %4279 = vmatmul.f32.gmra.mxu0 %v2893
      %v4280 = vpop.f32.mrf.mxu0
      %v4281 = vadd.f32 0.0, %v4280
      %4282 = vmatmul.f32.gmra.mxu0 %v2896
      %v4283 = vpop.f32.mrf.mxu0
      %v4284 = vadd.f32 0.0, %v4283
      %4285 = vmatmul.f32.gmra.mxu0 %v2899
      %v4286 = vpop.f32.mrf.mxu0
      %v4287 = vadd.f32 0.0, %v4286
      %4288 = vmatmul.f32.gmra.mxu0 %v2902
      %v4289 = vpop.f32.mrf.mxu0
      %v4290 = vadd.f32 0.0, %v4289
      %4291 = vmatmul.f32.gmra.mxu0 %v2905
      %v4292 = vpop.f32.mrf.mxu0
      %v4293 = vadd.f32 0.0, %v4292
      %4294 = vmatmul.f32.gmra.mxu0 %v2908
      %v4295 = vpop.f32.mrf.mxu0
      %v4296 = vadd.f32 0.0, %v4295
      %4297 = vmatmul.f32.gmra.mxu0 %v2911
      %v4298 = vpop.f32.mrf.mxu0
      %v4299 = vadd.f32 0.0, %v4298
      %4300 = vmatmul.f32.gmra.mxu0 %v2914
      %v4301 = vpop.f32.mrf.mxu0
      %v4302 = vadd.f32 0.0, %v4301
      %4303 = vmatmul.f32.gmra.mxu0 %v2917
      %v4304 = vpop.f32.mrf.mxu0
      %v4305 = vadd.f32 0.0, %v4304
      %4306 = vmatmul.f32.gmra.mxu0 %v2920
      %v4307 = vpop.f32.mrf.mxu0
      %v4308 = vadd.f32 0.0, %v4307
      %4309 = vdwg.mxu0
      %v4310 = vadd.f32 %v4198, %v4263
      %v4311 = vadd.f32 %v4201, %v4266
      %v4312 = vadd.f32 %v4204, %v4269
      %v4313 = vadd.f32 %v4207, %v4272
      %v4314 = vadd.f32 %v4210, %v4275
      %v4315 = vadd.f32 %v4213, %v4278
      %v4316 = vadd.f32 %v4216, %v4281
      %v4317 = vadd.f32 %v4219, %v4284
      %v4318 = vadd.f32 %v4222, %v4287
      %v4319 = vadd.f32 %v4225, %v4290
      %v4320 = vadd.f32 %v4228, %v4293
      %v4321 = vadd.f32 %v4231, %v4296
      %v4322 = vadd.f32 %v4234, %v4299
      %v4323 = vadd.f32 %v4237, %v4302
      %v4324 = vadd.f32 %v4240, %v4305
      %v4325 = vadd.f32 %v4243, %v4308
      %v4326 = vxor.u32 %v4310, 2147483648
      %v4327 = vxor.u32 %v4311, 2147483648
      %v4328 = vxor.u32 %v4312, 2147483648
      %v4329 = vxor.u32 %v4313, 2147483648
      %v4330 = vxor.u32 %v4314, 2147483648
      %v4331 = vxor.u32 %v4315, 2147483648
      %v4332 = vxor.u32 %v4316, 2147483648
      %v4333 = vxor.u32 %v4317, 2147483648
      %v4334 = vxor.u32 %v4318, 2147483648
      %v4335 = vxor.u32 %v4319, 2147483648
      %v4336 = vxor.u32 %v4320, 2147483648
      %v4337 = vxor.u32 %v4321, 2147483648
      %v4338 = vmul.f32 %v4326, 1.442695
      %v4339 = vpow.pop %v4338
      %v4340 = vmul.f32 %v4327, 1.442695
      %v4341 = vpow.pop %v4340
      %v4342 = vmul.f32 %v4328, 1.442695
      %v4343 = vpow.pop %v4342
      %v4344 = vmul.f32 %v4329, 1.442695
      %v4345 = vpow.pop %v4344
      %v4346 = vmul.f32 %v4330, 1.442695
      %v4347 = vpow.pop %v4346
      %v4348 = vmul.f32 %v4331, 1.442695
      %v4349 = vpow.pop %v4348
      %v4350 = vmul.f32 %v4332, 1.442695
      %v4351 = vpow.pop %v4350
      %v4352 = vmul.f32 %v4333, 1.442695
      %v4353 = vpow.pop %v4352
      %v4354 = vmul.f32 %v4334, 1.442695
      %v4355 = vpow.pop %v4354
      %v4356 = vmul.f32 %v4335, 1.442695
      %v4357 = vpow.pop %v4356
      %v4358 = vmul.f32 %v4336, 1.442695
      %v4359 = vpow.pop %v4358
      %v4360 = vmul.f32 %v4337, 1.442695
      %v4361 = vpow.pop %v4360
      %v4362 = vadd.f32 %v4339, 1.0
      %v4363 = vadd.f32 %v4341, 1.0
      %v4364 = vadd.f32 %v4343, 1.0
      %v4365 = vadd.f32 %v4345, 1.0
      %v4366 = vadd.f32 %v4347, 1.0
      %v4367 = vadd.f32 %v4349, 1.0
      %v4368 = vadd.f32 %v4351, 1.0
      %v4369 = vadd.f32 %v4353, 1.0
      %v4370 = vadd.f32 %v4355, 1.0
      %v4371 = vadd.f32 %v4357, 1.0
      %v4372 = vadd.f32 %v4359, 1.0
      %v4373 = vadd.f32 %v4361, 1.0
      %v4374 = vrcp.pop %v4362
      %v4375 = vmul.f32 %v4362, %v4374
      %v4376 = vsub.f32 1.0, %v4375
      %v4377 = vmul.f32 %v4374, %v4376
      %v4378 = vadd.f32 %v4374, %v4377
      %vm4379 = vweird.f32 %v4362
      %vm4380 = vweird.f32 %v4374
      %vm4381 = vmor %vm4379, %vm4380
      %v4382 = vsel %vm4381, %v4374, %v4378
      %v4383 = vand.u32 2147483647, %v4362
      %vm4384 = vcmp.eq.f32.partialorder %v4383, 8.507059e+37
      %v4385 = vand.u32 %v4362, 2147483648
      %v4386 = vor.u32 1.1754944e-38, %v4385
      %v4387 = vsel %vm4384, %v4386, %v4382
      %v4388 = vmul.f32 1.0, %v4387
      %v4389 = vrcp.pop %v4363
      %v4390 = vmul.f32 %v4363, %v4389
      %v4391 = vsub.f32 1.0, %v4390
      %v4392 = vmul.f32 %v4389, %v4391
      %v4393 = vadd.f32 %v4389, %v4392
      %vm4394 = vweird.f32 %v4363
      %vm4395 = vweird.f32 %v4389
      %vm4396 = vmor %vm4394, %vm4395
      %v4397 = vsel %vm4396, %v4389, %v4393
      %v4398 = vand.u32 2147483647, %v4363
      %vm4399 = vcmp.eq.f32.partialorder %v4398, 8.507059e+37
      %v4400 = vand.u32 %v4363, 2147483648
      %v4401 = vor.u32 1.1754944e-38, %v4400
      %v4402 = vsel %vm4399, %v4401, %v4397
      %v4403 = vmul.f32 1.0, %v4402
      %v4404 = vrcp.pop %v4364
      %v4405 = vmul.f32 %v4364, %v4404
      %v4406 = vsub.f32 1.0, %v4405
      %v4407 = vmul.f32 %v4404, %v4406
      %v4408 = vadd.f32 %v4404, %v4407
      %vm4409 = vweird.f32 %v4364
      %vm4410 = vweird.f32 %v4404
      %vm4411 = vmor %vm4409, %vm4410
      %v4412 = vsel %vm4411, %v4404, %v4408
      %v4413 = vand.u32 2147483647, %v4364
      %vm4414 = vcmp.eq.f32.partialorder %v4413, 8.507059e+37
      %v4415 = vand.u32 %v4364, 2147483648
      %v4416 = vor.u32 1.1754944e-38, %v4415
      %v4417 = vsel %vm4414, %v4416, %v4412
      %v4418 = vmul.f32 1.0, %v4417
      %v4419 = vrcp.pop %v4365
      %v4420 = vmul.f32 %v4365, %v4419
      %v4421 = vsub.f32 1.0, %v4420
      %v4422 = vmul.f32 %v4419, %v4421
      %v4423 = vadd.f32 %v4419, %v4422
      %vm4424 = vweird.f32 %v4365
      %vm4425 = vweird.f32 %v4419
      %vm4426 = vmor %vm4424, %vm4425
      %v4427 = vsel %vm4426, %v4419, %v4423
      %v4428 = vand.u32 2147483647, %v4365
      %vm4429 = vcmp.eq.f32.partialorder %v4428, 8.507059e+37
      %v4430 = vand.u32 %v4365, 2147483648
      %v4431 = vor.u32 1.1754944e-38, %v4430
      %v4432 = vsel %vm4429, %v4431, %v4427
      %v4433 = vmul.f32 1.0, %v4432
      %v4434 = vrcp.pop %v4366
      %v4435 = vmul.f32 %v4366, %v4434
      %v4436 = vsub.f32 1.0, %v4435
      %v4437 = vmul.f32 %v4434, %v4436
      %v4438 = vadd.f32 %v4434, %v4437
      %vm4439 = vweird.f32 %v4366
      %vm4440 = vweird.f32 %v4434
      %vm4441 = vmor %vm4439, %vm4440
      %v4442 = vsel %vm4441, %v4434, %v4438
      %v4443 = vand.u32 2147483647, %v4366
      %vm4444 = vcmp.eq.f32.partialorder %v4443, 8.507059e+37
      %v4445 = vand.u32 %v4366, 2147483648
      %v4446 = vor.u32 1.1754944e-38, %v4445
      %v4447 = vsel %vm4444, %v4446, %v4442
      %v4448 = vmul.f32 1.0, %v4447
      %v4449 = vrcp.pop %v4367
      %v4450 = vmul.f32 %v4367, %v4449
      %v4451 = vsub.f32 1.0, %v4450
      %v4452 = vmul.f32 %v4449, %v4451
      %v4453 = vadd.f32 %v4449, %v4452
      %vm4454 = vweird.f32 %v4367
      %vm4455 = vweird.f32 %v4449
      %vm4456 = vmor %vm4454, %vm4455
      %v4457 = vsel %vm4456, %v4449, %v4453
      %v4458 = vand.u32 2147483647, %v4367
      %vm4459 = vcmp.eq.f32.partialorder %v4458, 8.507059e+37
      %v4460 = vand.u32 %v4367, 2147483648
      %v4461 = vor.u32 1.1754944e-38, %v4460
      %v4462 = vsel %vm4459, %v4461, %v4457
      %v4463 = vmul.f32 1.0, %v4462
      %v4464 = vrcp.pop %v4368
      %v4465 = vmul.f32 %v4368, %v4464
      %v4466 = vsub.f32 1.0, %v4465
      %v4467 = vmul.f32 %v4464, %v4466
      %v4468 = vadd.f32 %v4464, %v4467
      %vm4469 = vweird.f32 %v4368
      %vm4470 = vweird.f32 %v4464
      %vm4471 = vmor %vm4469, %vm4470
      %v4472 = vsel %vm4471, %v4464, %v4468
      %v4473 = vand.u32 2147483647, %v4368
      %vm4474 = vcmp.eq.f32.partialorder %v4473, 8.507059e+37
      %v4475 = vand.u32 %v4368, 2147483648
      %v4476 = vor.u32 1.1754944e-38, %v4475
      %v4477 = vsel %vm4474, %v4476, %v4472
      %v4478 = vmul.f32 1.0, %v4477
      %v4479 = vrcp.pop %v4369
      %v4480 = vmul.f32 %v4369, %v4479
      %v4481 = vsub.f32 1.0, %v4480
      %v4482 = vmul.f32 %v4479, %v4481
      %v4483 = vadd.f32 %v4479, %v4482
      %vm4484 = vweird.f32 %v4369
      %vm4485 = vweird.f32 %v4479
      %vm4486 = vmor %vm4484, %vm4485
      %v4487 = vsel %vm4486, %v4479, %v4483
      %v4488 = vand.u32 2147483647, %v4369
      %vm4489 = vcmp.eq.f32.partialorder %v4488, 8.507059e+37
      %v4490 = vand.u32 %v4369, 2147483648
      %v4491 = vor.u32 1.1754944e-38, %v4490
      %v4492 = vsel %vm4489, %v4491, %v4487
      %v4493 = vmul.f32 1.0, %v4492
      %v4494 = vrcp.pop %v4370
      %v4495 = vmul.f32 %v4370, %v4494
      %v4496 = vsub.f32 1.0, %v4495
      %v4497 = vmul.f32 %v4494, %v4496
      %v4498 = vadd.f32 %v4494, %v4497
      %vm4499 = vweird.f32 %v4370
      %vm4500 = vweird.f32 %v4494
      %vm4501 = vmor %vm4499, %vm4500
      %v4502 = vsel %vm4501, %v4494, %v4498
      %v4503 = vand.u32 2147483647, %v4370
      %vm4504 = vcmp.eq.f32.partialorder %v4503, 8.507059e+37
      %v4505 = vand.u32 %v4370, 2147483648
      %v4506 = vor.u32 1.1754944e-38, %v4505
      %v4507 = vsel %vm4504, %v4506, %v4502
      %v4508 = vmul.f32 1.0, %v4507
      %v4509 = vrcp.pop %v4371
      %v4510 = vmul.f32 %v4371, %v4509
      %v4511 = vsub.f32 1.0, %v4510
      %v4512 = vmul.f32 %v4509, %v4511
      %v4513 = vadd.f32 %v4509, %v4512
      %vm4514 = vweird.f32 %v4371
      %vm4515 = vweird.f32 %v4509
      %vm4516 = vmor %vm4514, %vm4515
      %v4517 = vsel %vm4516, %v4509, %v4513
      %v4518 = vand.u32 2147483647, %v4371
      %vm4519 = vcmp.eq.f32.partialorder %v4518, 8.507059e+37
      %v4520 = vand.u32 %v4371, 2147483648
      %v4521 = vor.u32 1.1754944e-38, %v4520
      %v4522 = vsel %vm4519, %v4521, %v4517
      %v4523 = vmul.f32 1.0, %v4522
      %v4524 = vrcp.pop %v4372
      %v4525 = vmul.f32 %v4372, %v4524
      %v4526 = vsub.f32 1.0, %v4525
      %v4527 = vmul.f32 %v4524, %v4526
      %v4528 = vadd.f32 %v4524, %v4527
      %vm4529 = vweird.f32 %v4372
      %vm4530 = vweird.f32 %v4524
      %vm4531 = vmor %vm4529, %vm4530
      %v4532 = vsel %vm4531, %v4524, %v4528
      %v4533 = vand.u32 2147483647, %v4372
      %vm4534 = vcmp.eq.f32.partialorder %v4533, 8.507059e+37
      %v4535 = vand.u32 %v4372, 2147483648
      %v4536 = vor.u32 1.1754944e-38, %v4535
      %v4537 = vsel %vm4534, %v4536, %v4532
      %v4538 = vmul.f32 1.0, %v4537
      %v4539 = vrcp.pop %v4373
      %v4540 = vmul.f32 %v4373, %v4539
      %v4541 = vsub.f32 1.0, %v4540
      %v4542 = vmul.f32 %v4539, %v4541
      %v4543 = vadd.f32 %v4539, %v4542
      %vm4544 = vweird.f32 %v4373
      %vm4545 = vweird.f32 %v4539
      %vm4546 = vmor %vm4544, %vm4545
      %v4547 = vsel %vm4546, %v4539, %v4543
      %v4548 = vand.u32 2147483647, %v4373
      %vm4549 = vcmp.eq.f32.partialorder %v4548, 8.507059e+37
      %v4550 = vand.u32 %v4373, 2147483648
      %v4551 = vor.u32 1.1754944e-38, %v4550
      %v4552 = vsel %vm4549, %v4551, %v4547
      %v4553 = vmul.f32 1.0, %v4552
      %v4554 = vtanh.pop %v4322
      %v4555 = vtanh.pop %v4323
      %v4556 = vtanh.pop %v4324
      %v4557 = vtanh.pop %v4325
      %v4558 = vmul.f32 %v4448, %v4125
      %v4559 = vmul.f32 %v4463, %v4126
      %v4560 = vmul.f32 %v4478, %v4127
      %v4561 = vmul.f32 %v4493, %v4128
      %v4562 = vmul.f32 %v4388, %v4554
      %v4563 = vmul.f32 %v4403, %v4555
      %v4564 = vmul.f32 %v4418, %v4556
      %v4565 = vmul.f32 %v4433, %v4557
      %v4566 = vadd.f32 %v4558, %v4562
      %v4567 = vadd.f32 %v4559, %v4563
      %v4568 = vadd.f32 %v4560, %v4564
      %v4569 = vadd.f32 %v4561, %v4565
      %v4570 = vtanh.pop %v4566
      %v4571 = vtanh.pop %v4567
      %v4572 = vtanh.pop %v4568
      %v4573 = vtanh.pop %v4569
      %v4574 = vmul.f32 %v4508, %v4570
      %v4575 = vmul.f32 %v4523, %v4571
      %v4576 = vmul.f32 %v4538, %v4572
      %v4577 = vmul.f32 %v4553, %v4573
      %s4578 = smul.u32 %s4164, 8
      %s4579 = scalar_lea.vmem %s7, %s4578
      %v4580 = vld [vmem:[%s4579] sm:$0xff]
      %v4582 = vsel %vm2873, %v4580, 0
      %4584 = vmatpush.msra.mxu0 0.0
      %4585 = vmatpush.msra.mxu0 0.0
      %4586 = vmatpush.msra.mxu0 0.0
      %4587 = vmatpush.msra.mxu0 0.0
      %4588 = vmatpush.msra.mxu0 0.0
      %4589 = vmatpush.msra.mxu0 0.0
      %4590 = vmatpush.msra.mxu0 0.0
      %4591 = vmatpush.msra.mxu0 0.0
      %4592 = vmatpush.msra.mxu0 0.0
      %4593 = vmatpush.msra.mxu0 0.0
      %4594 = vmatpush.msra.mxu0 0.0
      %4595 = vmatpush.msra.mxu0 0.0
      %4596 = vmatpush.msra.mxu0 %v4577
      %4597 = vmatpush.msra.mxu0 %v4576
      %4598 = vmatpush.msra.mxu0 %v4575
      %4599 = vmatpush.msra.mxu0 %v4574
      %4600 = vmatmul.f32.gmra.mxu0 %v4582
      %v4601 = vpop.f32.mrf.mxu0
      %v4602 = vadd.f32 0.0, %v4601
      %4603 = vdwg.mxu0
      %v4604 = vadd.f32 %v4163, %v4602
    $region49: #{seq_classifier_forward.1} parent=1 // loop_footer
      %s2605 = sadd.s32 1, %s2601
    $region50: #{seq_classifier_forward.1} parent=1 // loop_footer_branch
      %2600 = sbr.rel target = $region46
    $region51: #{seq_classifier_forward.1} parent=1 // loop_exit
      _
    %v4605 = vld [vmem:[%s8] sm:$0xff]
    %4607 = vset.pattern.permute.xlu0 0
    %4608 = vperm.xlu0 %4607, %v4605
    %v4609 = vpop.permute.xlu0 %4608
    %v4611 = vadd.f32 %v2614, %v4609
    %4612 = vst [vmem:[#allocation4] sm:$0xff] %v4611
    // Predicated region
    $region52: #{seq_classifier_forward.1} parent=1 // pred_check
      _
    $region53: #{seq_classifier_forward.1} parent=1 // pred_check_branch
      %4614 = sbr.rel (0) target = $region55
    $region54: #{seq_classifier_forward.1} parent=1 // pred_region
      %4616 = vsyncadd [#allocation5], 0
      %s4618 = sshll.u32 [#allocation4], 4
      %s4619 = int_to_ptr.vmem [resolvable:$true] %s4618
      %s4620 = sshll.u32 %s9, 4
      %s4621 = int_to_ptr.hbm [resolvable:$true] %s4620
      %4623 = dma.vmem_to_hbm [thread:$0]  %s4619, 128, %s4621, [#allocation5]
    $region55: #{seq_classifier_forward.1} parent=1 // pred_fallthru
      _
    // Predicated region
    $region56: #{seq_classifier_forward.1} parent=1 // pred_check
      _
    $region57: #{seq_classifier_forward.1} parent=1 // pred_check_branch
      %4625 = sbr.rel (0) target = $region59
    $region58: #{seq_classifier_forward.1} parent=1 // pred_region
      %4627 = dma.done [#allocation5], 128
    $region59: #{seq_classifier_forward.1} parent=1 // pred_fallthru
      _
    %4628 = vsyncpa [#allocation5], 1

</llo_original>
